<compile_context>
chip_gen: v7x
topology: tpu7x:2x2x1
jax: 0.10.0
libtpu: 0.0.40
codegen_flags: <defaults>
</compile_context>

<pallas_src>
from functools import partial

import jax
import jax.numpy as jnp
from jax import lax
from jax.experimental import pallas as pl
from jax.experimental.pallas import tpu as pltpu


# ----------------------------- kernel ----------------------------------------


def _bottleneck_kernel(x_ref, w1_ref, b1_ref, w2_ref, b2_ref, w3_ref, b3_ref,
                       o_ref, patches_ref, *, dilation):
    # x_ref: (1, H, W, C) bf16; C / P lane-padded to multiples of 128.
    # patches_ref: (H*W, 9*P) bf16 VMEM scratch (im2col slab for conv2).
    H, W, C = x_ref.shape[1], x_ref.shape[2], x_ref.shape[3]
    P = w1_ref.shape[1]
    HW = H * W
    d = dilation
    dW = d * W

    x = x_ref[0].reshape(HW, C)                                    # bf16

    # ---- conv1 (1x1, BN1 scale folded into w1) + bias + ReLU (f32) ----
    t1 = jnp.dot(x, w1_ref[...], preferred_element_type=jnp.float32)
    t1 = jnp.maximum(t1 + b1_ref[...], 0.0)                        # (HW, P) f32

    # ---- conv2: 3x3, dilation d, SAME padding d -> one wide-K matmul --------
    # Column (W) shifts by +-d: XLU roll on the flattened HW axis + a narrow
    # (HW, 1) boundary mask that zeroes entries wrapped across a row boundary.
    wcol = lax.broadcasted_iota(jnp.int32, (HW, 1), 0) % W
    t1_b = t1.astype(jnp.bfloat16)                                           # dw = 0
    s_neg = jnp.where(wcol >= d, pltpu.roll(t1, shift=d, axis=0),
                      0.0).astype(jnp.bfloat16)                              # t1[h, w-d]
    s_pos = jnp.where(wcol < W - d, pltpu.roll(t1, shift=HW - d, axis=0),
                      0.0).astype(jnp.bfloat16)                              # t1[h, w+d]
    w_taps = (s_neg, t1_b, s_pos)                                            # dw = -d, 0, +d

    # Row (H) shifts by +-d: sublane-aligned block stores straight into the
    # bf16 im2col scratch slab.  Tap order (kh, kw) matches the w2 reshape.
    zrows = jnp.zeros((dW, P), jnp.bfloat16)
    for ti, dh in enumerate((-d, 0, d)):
        for tj, s in enumerate(w_taps):
            col = (ti * 3 + tj) * P
            if dh == 0:
                patches_ref[pl.ds(0, HW), pl.ds(col, P)] = s
            elif dh > 0:  # value at (h+d, w)
                patches_ref[pl.ds(0, HW - dW), pl.ds(col, P)] = s[dW:, :]
                patches_ref[pl.ds(HW - dW, dW), pl.ds(col, P)] = zrows
            else:         # value at (h-d, w)
                patches_ref[pl.ds(0, dW), pl.ds(col, P)] = zrows
                patches_ref[pl.ds(dW, HW - dW), pl.ds(col, P)] = s[:HW - dW, :]

    t2 = jnp.dot(patches_ref[...], w2_ref[...],
                 preferred_element_type=jnp.float32)               # (HW, P) f32
    t2 = jnp.maximum(t2 + b2_ref[...], 0.0)

    # ---- conv3 (1x1, BN3 scale folded) + bias + residual + ReLU ----
    t3 = jnp.dot(t2.astype(jnp.bfloat16), w3_ref[...],
                 preferred_element_type=jnp.float32)               # (HW, C) f32
    out = jnp.maximum(t3 + b3_ref[...] + x.astype(jnp.float32), 0.0)
    o_ref[0] = out.reshape(H, W, C).astype(o_ref.dtype)


# ----------------------------- wrapper ----------------------------------------


def _round_up(x, m):
    return ((x + m - 1) // m) * m


def _pad_axis(a, size, axis):
    if a.shape[axis] == size:
        return a
    widths = [(0, 0)] * a.ndim
    widths[axis] = (0, size - a.shape[axis])
    return jnp.pad(a, widths)


def _fold_bn(gamma, beta, mean, var, eps=1e-5):
    scale = gamma / jnp.sqrt(var + eps)
    bias = beta - mean * scale
    return scale, bias


def bottleneck_pallas_nhwc(x_nhwc, params, dilation=1):
    """Fused Bottleneck forward. x_nhwc: (N, H, W, C) with C == 4 * planes.
    Eval-mode BatchNorm, stride=1, identity residual (module defaults).
    Returns bf16 NHWC (channel-sliced back to C)."""
    (w1, w2, w3, bn1, bn2, bn3) = params
    N, H, W, C = x_nhwc.shape
    P = w1.shape[1]
    assert C == 4 * P, "inplanes != planes * 4"
    assert 0 < dilation < min(H, W)

    s1, b1 = _fold_bn(*bn1)
    s2, b2 = _fold_bn(*bn2)
    s3, b3 = _fold_bn(*bn3)

    # Fold BN scales into the conv weights (per output channel); keep biases only.
    w1f = w1 * s1[None, :]
    w2f = w2 * s2[None, None, None, :]        # HWIO, scale on O
    w3f = w3 * s3[None, :]

    # Lane-dense channel padding (channels live on the 128-wide lane axis).
    LANE = 128
    Cp, Pp = _round_up(C, LANE), _round_up(P, LANE)

    # bf16 activations at the kernel boundary (mem-bound kernel -> halve HBM I/O).
    xp = _pad_axis(x_nhwc.astype(jnp.bfloat16), Cp, 3)                  # (N,H,W,Cp) bf16
    w1p = _pad_axis(_pad_axis(w1f, Cp, 0), Pp, 1).astype(jnp.bfloat16)  # (Cp, Pp)
    w2p = (_pad_axis(_pad_axis(w2f, Pp, 2), Pp, 3)
           .reshape(9 * Pp, Pp).astype(jnp.bfloat16))                   # (9Pp, Pp)
    w3p = _pad_axis(_pad_axis(w3f, Pp, 0), Cp, 1).astype(jnp.bfloat16)  # (Pp, Cp)
    b1p = _pad_axis(b1, Pp, 0).reshape(1, Pp)                           # f32
    b2p = _pad_axis(b2, Pp, 0).reshape(1, Pp)
    b3p = _pad_axis(b3, Cp, 0).reshape(1, Cp)

    in_specs = [
        pl.BlockSpec((1, H, W, Cp), lambda n: (n, 0, 0, 0)),   # x (bf16)
        pl.BlockSpec((Cp, Pp), lambda n: (0, 0)),              # w1 (scale-folded)
        pl.BlockSpec((1, Pp), lambda n: (0, 0)),               # bn1 bias
        pl.BlockSpec((9 * Pp, Pp), lambda n: (0, 0)),          # w2 flattened (9Pp, Pp)
        pl.BlockSpec((1, Pp), lambda n: (0, 0)),               # bn2 bias
        pl.BlockSpec((Pp, Cp), lambda n: (0, 0)),              # w3
        pl.BlockSpec((1, Cp), lambda n: (0, 0)),               # bn3 bias
    ]
    out_specs = pl.BlockSpec((1, H, W, Cp), lambda n: (n, 0, 0, 0))

    # Rough per-step VMEM budget (double-buffered x/out, weights, im2col slab,
    # f32 temporaries) with headroom; capped below the v7x 64 MiB physical size.
    bytes_xo = H * W * Cp * 2
    bytes_w = (Cp * Pp + 9 * Pp * Pp + Pp * Cp) * 2 + (2 * Pp + Cp) * 4
    bytes_slab = H * W * 9 * Pp * 2
    bytes_tmp = 4 * H * W * max(Pp, Cp) * 4
    est = 2 * (2 * bytes_xo) + 2 * bytes_w + bytes_slab + bytes_tmp
    vmem_limit = int(min(64 * 2**20, max(16 * 2**20, 2 * est)))

    out_padded = pl.pallas_call(
        partial(_bottleneck_kernel, dilation=dilation),
        out_shape=jax.ShapeDtypeStruct((N, H, W, Cp), jnp.bfloat16),
        grid_spec=pltpu.PrefetchScalarGridSpec(
            num_scalar_prefetch=0,
            grid=(N,),
            in_specs=in_specs,
            out_specs=out_specs,
            scratch_shapes=[pltpu.VMEM((H * W, 9 * Pp), jnp.bfloat16)],
        ),
        compiler_params=pltpu.CompilerParams(
            dimension_semantics=("parallel",),
            vmem_limit_bytes=vmem_limit,
        ),
    )(xp, w1p, b1p, w2p, b2p, w3p, b3p)

    # NOTE: when chaining bottleneck blocks, keep activations NHWC and
    # channel-padded between layers so this slice (and the pad above) vanish.
    return out_padded[..., :C]


def bottleneck_pallas_nchw(x_nchw, params, dilation=1):
    # NOTE: if the surrounding model already runs NHWC, call
    # bottleneck_pallas_nhwc directly and skip these two HBM round-trips.
    x_nhwc = jnp.transpose(x_nchw, (0, 2, 3, 1))
    out = bottleneck_pallas_nhwc(x_nhwc, params, dilation)
    return jnp.transpose(out, (0, 3, 1, 2)).astype(x_nchw.dtype)


# ----------------------------- reference & test -------------------------------


def _make_params(key, inplanes, planes):
    ks = jax.random.split(key, 15)
    w1 = jax.random.normal(ks[0], (inplanes, planes), jnp.float32) * 0.1
    w2 = jax.random.normal(ks[1], (3, 3, planes, planes), jnp.float32) * 0.1  # HWIO
    w3 = jax.random.normal(ks[2], (planes, inplanes), jnp.float32) * 0.1

    def bn(k0, k1, k2, k3, c):
        gamma = jax.random.uniform(k0, (c,), jnp.float32, 0.5, 1.5)
        beta = jax.random.normal(k1, (c,), jnp.float32) * 0.1
        mean = jax.random.normal(k2, (c,), jnp.float32) * 0.1
        var = jax.random.uniform(k3, (c,), jnp.float32, 0.5, 1.5)
        return (gamma, beta, mean, var)

    bn1 = bn(ks[3], ks[4], ks[5], ks[6], planes)
    bn2 = bn(ks[7], ks[8], ks[9], ks[10], planes)
    bn3 = bn(ks[11], ks[12], ks[13], ks[14], inplanes)
    return (w1, w2, w3, bn1, bn2, bn3)


def _reference_nchw(x_nchw, params, dilation=1):
    """Pure-JAX f32 reference (eval-mode BN), NHWC internally."""
    (w1, w2, w3, bn1, bn2, bn3) = params
    s1, b1 = _fold_bn(*bn1)
    s2, b2 = _fold_bn(*bn2)
    s3, b3 = _fold_bn(*bn3)
    x = jnp.transpose(x_nchw, (0, 2, 3, 1))
    t = jnp.einsum('nhwc,cp->nhwp', x, w1)
    t = jax.nn.relu(t * s1 + b1)
    t = lax.conv_general_dilated(
        t, w2, window_strides=(1, 1),
        padding=((dilation, dilation), (dilation, dilation)),
        rhs_dilation=(dilation, dilation),
        dimension_numbers=('NHWC', 'HWIO', 'NHWC'))
    t = jax.nn.relu(t * s2 + b2)
    t = jnp.einsum('nhwp,pc->nhwc', t, w3)
    t = t * s3 + b3
    out = jax.nn.relu(t + x)
    return jnp.transpose(out, (0, 3, 1, 2))


if __name__ == "__main__":
    planes = 4
    inplanes = planes * 4          # module asserts out_channels == planes * 4
    N, H, W = 2, 16, 16

    key = jax.random.PRNGKey(0)
    kx, kp = jax.random.split(key)
    x = jax.random.normal(kx, (N, inplanes, H, W), jnp.float32)   # NCHW, like PyTorch
    params = _make_params(kp, inplanes, planes)

    fn = jax.jit(bottleneck_pallas_nchw, static_argnames=("dilation",))

    for dilation in (1, 2):        # module default is 1; Det.py also uses dilated blocks
        out = jax.block_until_ready(fn(x, params, dilation=dilation))
        ref = _reference_nchw(x, params, dilation=dilation)
        assert out.shape == (N, inplanes, H, W)
        max_err = float(jnp.max(jnp.abs(out.astype(jnp.float32) - ref)))
        # bf16 activations in/out + bf16 MXU inputs -> loose tolerance vs f32 ref.
        if not jnp.allclose(out.astype(jnp.float32), ref, atol=5e-2, rtol=5e-2):
            raise AssertionError(
                f"mismatch vs reference (dilation={dilation}, max_err={max_err})")

    print("KERNEL_OK")
</pallas_src>

<mosaic_0001>
module attributes {stable_mosaic.version = 11 : i64} {
  func.func @_bottleneck_kernel(%arg0: i32, %arg1: memref<1x16x16x128xbf16, #tpu.memory_space<vmem>>, %arg2: memref<128x128xbf16, #tpu.memory_space<vmem>>, %arg3: memref<1x128xf32, #tpu.memory_space<vmem>>, %arg4: memref<1152x128xbf16, #tpu.memory_space<vmem>>, %arg5: memref<1x128xf32, #tpu.memory_space<vmem>>, %arg6: memref<128x128xbf16, #tpu.memory_space<vmem>>, %arg7: memref<1x128xf32, #tpu.memory_space<vmem>>, %arg8: memref<1x16x16x128xbf16, #tpu.memory_space<vmem>>, %arg9: memref<256x1152xbf16, #tpu.memory_space<vmem>>) attributes {dimension_semantics = [#tpu.dimension_semantics<parallel>], iteration_bounds = array<i64: 2>, scalar_prefetch = 0 : i64, scratch_operands = 1 : i64, tpu.core_type = #tpu.core_type<tc>, window_params = [{transform_indices = @transform_0, window_bounds = array<i64: 1, 16, 16, 128>}, {pipeline_mode = #tpu.pipeline_mode<synchronous>, transform_indices = @transform_1, window_bounds = array<i64: 128, 128>}, {pipeline_mode = #tpu.pipeline_mode<synchronous>, transform_indices = @transform_2, window_bounds = array<i64: 1, 128>}, {pipeline_mode = #tpu.pipeline_mode<synchronous>, transform_indices = @transform_3, window_bounds = array<i64: 1152, 128>}, {pipeline_mode = #tpu.pipeline_mode<synchronous>, transform_indices = @transform_4, window_bounds = array<i64: 1, 128>}, {pipeline_mode = #tpu.pipeline_mode<synchronous>, transform_indices = @transform_5, window_bounds = array<i64: 128, 128>}, {pipeline_mode = #tpu.pipeline_mode<synchronous>, transform_indices = @transform_6, window_bounds = array<i64: 1, 128>}, {transform_indices = @transform_7, window_bounds = array<i64: 1, 16, 16, 128>}]} {
    %c0 = arith.constant 0 : index
    %c0_0 = arith.constant 0 : index
    %c0_1 = arith.constant 0 : index
    %c0_2 = arith.constant 0 : index
    %0 = vector.load %arg1[%c0, %c0_0, %c0_1, %c0_2] : memref<1x16x16x128xbf16, #tpu.memory_space<vmem>>, vector<1x16x16x128xbf16>
    %1 = vector.shape_cast %0 : vector<1x16x16x128xbf16> to vector<16x16x128xbf16>
    %2 = vector.shape_cast %1 : vector<16x16x128xbf16> to vector<256x128xbf16>
    %c0_3 = arith.constant 0 : index
    %c0_4 = arith.constant 0 : index
    %3 = vector.load %arg2[%c0_3, %c0_4] : memref<128x128xbf16, #tpu.memory_space<vmem>>, vector<128x128xbf16>
    %cst = arith.constant dense<0.000000e+00> : vector<256x128xf32>
    %4 = tpu.matmul %2, %3, %cst {dimension_numbers = #tpu.dot_dimension_numbers<[1], [0], [0], [1], [0, 0, 1, 1], [], []>} : vector<256x128xbf16>, vector<128x128xbf16>, vector<256x128xf32> -> vector<256x128xf32>
    %c0_5 = arith.constant 0 : index
    %c0_6 = arith.constant 0 : index
    %5 = vector.load %arg3[%c0_5, %c0_6] : memref<1x128xf32, #tpu.memory_space<vmem>>, vector<1x128xf32>
    %6 = vector.broadcast %5 : vector<1x128xf32> to vector<256x128xf32>
    %7 = arith.addf %4, %6 : vector<256x128xf32>
    %cst_7 = arith.constant 0.000000e+00 : f32
    %8 = vector.broadcast %cst_7 : f32 to vector<256x128xf32>
    %9 = arith.maximumf %7, %8 : vector<256x128xf32>
    %10 = tpu.iota {dimensions = array<i32: 0>} : vector<256x1xi32>
    %c16_i32 = arith.constant 16 : i32
    %c0_i32 = arith.constant 0 : i32
    %11 = arith.cmpi eq, %c16_i32, %c0_i32 : i32
    %c1_i32 = arith.constant 1 : i32
    %12 = arith.select %11, %c1_i32, %c16_i32 : i32
    %13 = vector.broadcast %12 : i32 to vector<256x1xi32>
    %14 = arith.remsi %10, %13 : vector<256x1xi32>
    %c0_i32_8 = arith.constant 0 : i32
    %15 = vector.broadcast %c0_i32_8 : i32 to vector<256x1xi32>
    %16 = arith.cmpi ne, %14, %15 : vector<256x1xi32>
    %c0_i32_9 = arith.constant 0 : i32
    %17 = vector.broadcast %c0_i32_9 : i32 to vector<256x1xi32>
    %18 = arith.cmpi slt, %14, %17 : vector<256x1xi32>
    %c0_i32_10 = arith.constant 0 : i32
    %19 = arith.cmpi slt, %12, %c0_i32_10 : i32
    %20 = vector.broadcast %19 : i1 to vector<256x1xi1>
    %21 = vector.broadcast %20 : vector<256x1xi1> to vector<256x1xi1>
    %22 = arith.xori %18, %21 : vector<256x1xi1>
    %23 = arith.andi %22, %16 : vector<256x1xi1>
    %24 = vector.broadcast %12 : i32 to vector<256x1xi32>
    %25 = arith.addi %14, %24 : vector<256x1xi32>
    %26 = arith.select %23, %25, %14 : vector<256x1xi1>, vector<256x1xi32>
    %27 = arith.truncf %9 : vector<256x128xf32> to vector<256x128xbf16>
    %c1_i32_11 = arith.constant 1 : i32
    %28 = vector.broadcast %c1_i32_11 : i32 to vector<256x1xi32>
    %29 = arith.cmpi sge, %26, %28 : vector<256x1xi32>
    %c1_i32_12 = arith.constant 1 : i32
    %30 = tpu.dynamic_rotate %9 by %c1_i32_12 dim 0 : vector<256x128xf32>, i32 -> vector<256x128xf32>
    %cst_13 = arith.constant 0.000000e+00 : f32
    %31 = vector.shape_cast %29 : vector<256x1xi1> to vector<256x1xi1>
    %32 = vector.broadcast %31 : vector<256x1xi1> to vector<256x128xi1>
    %33 = vector.broadcast %cst_13 : f32 to vector<256x128xf32>
    %34 = arith.select %32, %30, %33 : vector<256x128xi1>, vector<256x128xf32>
    %35 = arith.truncf %34 : vector<256x128xf32> to vector<256x128xbf16>
    %c15_i32 = arith.constant 15 : i32
    %36 = vector.broadcast %c15_i32 : i32 to vector<256x1xi32>
    %37 = arith.cmpi slt, %26, %36 : vector<256x1xi32>
    %c255_i32 = arith.constant 255 : i32
    %38 = tpu.dynamic_rotate %9 by %c255_i32 dim 0 : vector<256x128xf32>, i32 -> vector<256x128xf32>
    %cst_14 = arith.constant 0.000000e+00 : f32
    %39 = vector.shape_cast %37 : vector<256x1xi1> to vector<256x1xi1>
    %40 = vector.broadcast %39 : vector<256x1xi1> to vector<256x128xi1>
    %41 = vector.broadcast %cst_14 : f32 to vector<256x128xf32>
    %42 = arith.select %40, %38, %41 : vector<256x128xi1>, vector<256x128xf32>
    %43 = arith.truncf %42 : vector<256x128xf32> to vector<256x128xbf16>
    %cst_15 = arith.constant 0.000000e+00 : bf16
    %44 = vector.broadcast %cst_15 : bf16 to vector<16x128xbf16>
    %c0_16 = arith.constant 0 : index
    %c0_17 = arith.constant 0 : index
    %45 = vector.load %arg9[%c0_16, %c0_17] : memref<256x1152xbf16, #tpu.memory_space<vmem>>, vector<16x128xbf16>
    tpu.vector_store %arg9[%c0_16, %c0_17], %44 {strides = array<i32>} : memref<256x1152xbf16, #tpu.memory_space<vmem>>, vector<16x128xbf16>,
    %46 = vector.extract_strided_slice %35 {offsets = [0, 0], sizes = [240, 128], strides = [1, 1]} : vector<256x128xbf16> to vector<240x128xbf16>
    %c16 = arith.constant 16 : index
    %c0_18 = arith.constant 0 : index
    %47 = vector.load %arg9[%c16, %c0_18] : memref<256x1152xbf16, #tpu.memory_space<vmem>>, vector<240x128xbf16>
    tpu.vector_store %arg9[%c16, %c0_18], %46 {strides = array<i32>} : memref<256x1152xbf16, #tpu.memory_space<vmem>>, vector<240x128xbf16>,
    %c0_19 = arith.constant 0 : index
    %c128 = arith.constant 128 : index
    %48 = vector.load %arg9[%c0_19, %c128] : memref<256x1152xbf16, #tpu.memory_space<vmem>>, vector<16x128xbf16>
    tpu.vector_store %arg9[%c0_19, %c128], %44 {strides = array<i32>} : memref<256x1152xbf16, #tpu.memory_space<vmem>>, vector<16x128xbf16>,
    %49 = vector.extract_strided_slice %27 {offsets = [0, 0], sizes = [240, 128], strides = [1, 1]} : vector<256x128xbf16> to vector<240x128xbf16>
    %c16_20 = arith.constant 16 : index
    %c128_21 = arith.constant 128 : index
    %50 = vector.load %arg9[%c16_20, %c128_21] : memref<256x1152xbf16, #tpu.memory_space<vmem>>, vector<240x128xbf16>
    tpu.vector_store %arg9[%c16_20, %c128_21], %49 {strides = array<i32>} : memref<256x1152xbf16, #tpu.memory_space<vmem>>, vector<240x128xbf16>,
    %c0_22 = arith.constant 0 : index
    %c256 = arith.constant 256 : index
    %51 = vector.load %arg9[%c0_22, %c256] : memref<256x1152xbf16, #tpu.memory_space<vmem>>, vector<16x128xbf16>
    tpu.vector_store %arg9[%c0_22, %c256], %44 {strides = array<i32>} : memref<256x1152xbf16, #tpu.memory_space<vmem>>, vector<16x128xbf16>,
    %52 = vector.extract_strided_slice %43 {offsets = [0, 0], sizes = [240, 128], strides = [1, 1]} : vector<256x128xbf16> to vector<240x128xbf16>
    %c16_23 = arith.constant 16 : index
    %c256_24 = arith.constant 256 : index
    %53 = vector.load %arg9[%c16_23, %c256_24] : memref<256x1152xbf16, #tpu.memory_space<vmem>>, vector<240x128xbf16>
    tpu.vector_store %arg9[%c16_23, %c256_24], %52 {strides = array<i32>} : memref<256x1152xbf16, #tpu.memory_space<vmem>>, vector<240x128xbf16>,
    %c0_25 = arith.constant 0 : index
    %c384 = arith.constant 384 : index
    %54 = vector.load %arg9[%c0_25, %c384] : memref<256x1152xbf16, #tpu.memory_space<vmem>>, vector<256x128xbf16>
    tpu.vector_store %arg9[%c0_25, %c384], %35 {strides = array<i32>} : memref<256x1152xbf16, #tpu.memory_space<vmem>>, vector<256x128xbf16>,
    %c0_26 = arith.constant 0 : index
    %c512 = arith.constant 512 : index
    %55 = vector.load %arg9[%c0_26, %c512] : memref<256x1152xbf16, #tpu.memory_space<vmem>>, vector<256x128xbf16>
    tpu.vector_store %arg9[%c0_26, %c512], %27 {strides = array<i32>} : memref<256x1152xbf16, #tpu.memory_space<vmem>>, vector<256x128xbf16>,
    %c0_27 = arith.constant 0 : index
    %c640 = arith.constant 640 : index
    %56 = vector.load %arg9[%c0_27, %c640] : memref<256x1152xbf16, #tpu.memory_space<vmem>>, vector<256x128xbf16>
    tpu.vector_store %arg9[%c0_27, %c640], %43 {strides = array<i32>} : memref<256x1152xbf16, #tpu.memory_space<vmem>>, vector<256x128xbf16>,
    %57 = vector.extract_strided_slice %35 {offsets = [16, 0], sizes = [240, 128], strides = [1, 1]} : vector<256x128xbf16> to vector<240x128xbf16>
    %c0_28 = arith.constant 0 : index
    %c768 = arith.constant 768 : index
    %58 = vector.load %arg9[%c0_28, %c768] : memref<256x1152xbf16, #tpu.memory_space<vmem>>, vector<240x128xbf16>
    tpu.vector_store %arg9[%c0_28, %c768], %57 {strides = array<i32>} : memref<256x1152xbf16, #tpu.memory_space<vmem>>, vector<240x128xbf16>,
    %c240 = arith.constant 240 : index
    %c768_29 = arith.constant 768 : index
    %59 = vector.load %arg9[%c240, %c768_29] : memref<256x1152xbf16, #tpu.memory_space<vmem>>, vector<16x128xbf16>
    tpu.vector_store %arg9[%c240, %c768_29], %44 {strides = array<i32>} : memref<256x1152xbf16, #tpu.memory_space<vmem>>, vector<16x128xbf16>,
    %60 = vector.extract_strided_slice %27 {offsets = [16, 0], sizes = [240, 128], strides = [1, 1]} : vector<256x128xbf16> to vector<240x128xbf16>
    %c0_30 = arith.constant 0 : index
    %c896 = arith.constant 896 : index
    %61 = vector.load %arg9[%c0_30, %c896] : memref<256x1152xbf16, #tpu.memory_space<vmem>>, vector<240x128xbf16>
    tpu.vector_store %arg9[%c0_30, %c896], %60 {strides = array<i32>} : memref<256x1152xbf16, #tpu.memory_space<vmem>>, vector<240x128xbf16>,
    %c240_31 = arith.constant 240 : index
    %c896_32 = arith.constant 896 : index
    %62 = vector.load %arg9[%c240_31, %c896_32] : memref<256x1152xbf16, #tpu.memory_space<vmem>>, vector<16x128xbf16>
    tpu.vector_store %arg9[%c240_31, %c896_32], %44 {strides = array<i32>} : memref<256x1152xbf16, #tpu.memory_space<vmem>>, vector<16x128xbf16>,
    %63 = vector.extract_strided_slice %43 {offsets = [16, 0], sizes = [240, 128], strides = [1, 1]} : vector<256x128xbf16> to vector<240x128xbf16>
    %c0_33 = arith.constant 0 : index
    %c1024 = arith.constant 1024 : index
    %64 = vector.load %arg9[%c0_33, %c1024] : memref<256x1152xbf16, #tpu.memory_space<vmem>>, vector<240x128xbf16>
    tpu.vector_store %arg9[%c0_33, %c1024], %63 {strides = array<i32>} : memref<256x1152xbf16, #tpu.memory_space<vmem>>, vector<240x128xbf16>,
    %c240_34 = arith.constant 240 : index
    %c1024_35 = arith.constant 1024 : index
    %65 = vector.load %arg9[%c240_34, %c1024_35] : memref<256x1152xbf16, #tpu.memory_space<vmem>>, vector<16x128xbf16>
    tpu.vector_store %arg9[%c240_34, %c1024_35], %44 {strides = array<i32>} : memref<256x1152xbf16, #tpu.memory_space<vmem>>, vector<16x128xbf16>,
    %c0_36 = arith.constant 0 : index
    %c0_37 = arith.constant 0 : index
    %66 = vector.load %arg9[%c0_36, %c0_37] : memref<256x1152xbf16, #tpu.memory_space<vmem>>, vector<256x1152xbf16>
    %c0_38 = arith.constant 0 : index
    %c0_39 = arith.constant 0 : index
    %67 = vector.load %arg4[%c0_38, %c0_39] : memref<1152x128xbf16, #tpu.memory_space<vmem>>, vector<1152x128xbf16>
    %cst_40 = arith.constant dense<0.000000e+00> : vector<256x128xf32>
    %68 = tpu.matmul %66, %67, %cst_40 {dimension_numbers = #tpu.dot_dimension_numbers<[1], [0], [0], [1], [0, 0, 1, 1], [], []>} : vector<256x1152xbf16>, vector<1152x128xbf16>, vector<256x128xf32> -> vector<256x128xf32>
    %c0_41 = arith.constant 0 : index
    %c0_42 = arith.constant 0 : index
    %69 = vector.load %arg5[%c0_41, %c0_42] : memref<1x128xf32, #tpu.memory_space<vmem>>, vector<1x128xf32>
    %70 = vector.broadcast %69 : vector<1x128xf32> to vector<256x128xf32>
    %71 = arith.addf %68, %70 : vector<256x128xf32>
    %cst_43 = arith.constant 0.000000e+00 : f32
    %72 = vector.broadcast %cst_43 : f32 to vector<256x128xf32>
    %73 = arith.maximumf %71, %72 : vector<256x128xf32>
    %74 = arith.truncf %73 : vector<256x128xf32> to vector<256x128xbf16>
    %c0_44 = arith.constant 0 : index
    %c0_45 = arith.constant 0 : index
    %75 = vector.load %arg6[%c0_44, %c0_45] : memref<128x128xbf16, #tpu.memory_space<vmem>>, vector<128x128xbf16>
    %cst_46 = arith.constant dense<0.000000e+00> : vector<256x128xf32>
    %76 = tpu.matmul %74, %75, %cst_46 {dimension_numbers = #tpu.dot_dimension_numbers<[1], [0], [0], [1], [0, 0, 1, 1], [], []>} : vector<256x128xbf16>, vector<128x128xbf16>, vector<256x128xf32> -> vector<256x128xf32>
    %c0_47 = arith.constant 0 : index
    %c0_48 = arith.constant 0 : index
    %77 = vector.load %arg7[%c0_47, %c0_48] : memref<1x128xf32, #tpu.memory_space<vmem>>, vector<1x128xf32>
    %78 = vector.broadcast %77 : vector<1x128xf32> to vector<256x128xf32>
    %79 = arith.addf %76, %78 : vector<256x128xf32>
    %80 = arith.extf %2 : vector<256x128xbf16> to vector<256x128xf32>
    %81 = arith.addf %79, %80 : vector<256x128xf32>
    %cst_49 = arith.constant 0.000000e+00 : f32
    %82 = vector.broadcast %cst_49 : f32 to vector<256x128xf32>
    %83 = arith.maximumf %81, %82 : vector<256x128xf32>
    %84 = vector.shape_cast %83 : vector<256x128xf32> to vector<16x16x128xf32>
    %85 = arith.truncf %84 : vector<16x16x128xf32> to vector<16x16x128xbf16>
    %c0_50 = arith.constant 0 : index
    %c0_51 = arith.constant 0 : index
    %c0_52 = arith.constant 0 : index
    %c0_53 = arith.constant 0 : index
    %86 = vector.load %arg8[%c0_50, %c0_51, %c0_52, %c0_53] : memref<1x16x16x128xbf16, #tpu.memory_space<vmem>>, vector<1x16x16x128xbf16>
    %87 = vector.shape_cast %86 : vector<1x16x16x128xbf16> to vector<16x16x128xbf16>
    %88 = vector.shape_cast %85 : vector<16x16x128xbf16> to vector<1x16x16x128xbf16>
    tpu.vector_store %arg8[%c0_50, %c0_51, %c0_52, %c0_53], %88 {strides = array<i32>} : memref<1x16x16x128xbf16, #tpu.memory_space<vmem>>, vector<1x16x16x128xbf16>,
    return
  }
  func.func @transform_0(%arg0: i32) -> (i32, i32, i32, i32) {
    %c0_i32 = arith.constant 0 : i32
    %c0_i32_0 = arith.constant 0 : i32
    %c0_i32_1 = arith.constant 0 : i32
    %c0_i32_2 = arith.constant 0 : i32
    return %arg0, %c0_i32, %c0_i32_0, %c0_i32_1 : i32, i32, i32, i32
  }
  func.func @transform_1(%arg0: i32) -> (i32, i32) {
    %c0_i32 = arith.constant 0 : i32
    %c0_i32_0 = arith.constant 0 : i32
    %c0_i32_1 = arith.constant 0 : i32
    return %c0_i32, %c0_i32_0 : i32, i32
  }
  func.func @transform_2(%arg0: i32) -> (i32, i32) {
    %c0_i32 = arith.constant 0 : i32
    %c0_i32_0 = arith.constant 0 : i32
    %c0_i32_1 = arith.constant 0 : i32
    return %c0_i32, %c0_i32_0 : i32, i32
  }
  func.func @transform_3(%arg0: i32) -> (i32, i32) {
    %c0_i32 = arith.constant 0 : i32
    %c0_i32_0 = arith.constant 0 : i32
    %c0_i32_1 = arith.constant 0 : i32
    return %c0_i32, %c0_i32_0 : i32, i32
  }
  func.func @transform_4(%arg0: i32) -> (i32, i32) {
    %c0_i32 = arith.constant 0 : i32
    %c0_i32_0 = arith.constant 0 : i32
    %c0_i32_1 = arith.constant 0 : i32
    return %c0_i32, %c0_i32_0 : i32, i32
  }
  func.func @transform_5(%arg0: i32) -> (i32, i32) {
    %c0_i32 = arith.constant 0 : i32
    %c0_i32_0 = arith.constant 0 : i32
    %c0_i32_1 = arith.constant 0 : i32
    return %c0_i32, %c0_i32_0 : i32, i32
  }
  func.func @transform_6(%arg0: i32) -> (i32, i32) {
    %c0_i32 = arith.constant 0 : i32
    %c0_i32_0 = arith.constant 0 : i32
    %c0_i32_1 = arith.constant 0 : i32
    return %c0_i32, %c0_i32_0 : i32, i32
  }
  func.func @transform_7(%arg0: i32) -> (i32, i32, i32, i32) {
    %c0_i32 = arith.constant 0 : i32
    %c0_i32_0 = arith.constant 0 : i32
    %c0_i32_1 = arith.constant 0 : i32
    %c0_i32_2 = arith.constant 0 : i32
    return %arg0, %c0_i32, %c0_i32_0, %c0_i32_1 : i32, i32, i32, i32
  }
}

</mosaic_0001>

<llo_original>
// kernel: bottleneck_pallas_nchw.1
$region0: #{bottleneck_pallas_nchw.1}
  #allocation0 [shape = 'u32[]', space=smem, size = 0x4, offset = 0x4, fixed_abs, tag = 'smem constant byte address 0x4 - core index']
  #allocation1 [shape = 'u32[144,128]{1,0:T(1,128)}', space=vmem, size = 0x12000, scoped, tag = 'internal scratch']
  #allocation2 [shape = 'bf16[256,1152]{1,0:T(16,128)(2,1)}', space=vmem, size = 0x90000, scoped, tag = 'scratch operand']
  %s0 = inlined_call_operand.vmem [shape: bf16[2,16,16,128], index: 0, kind: input, shape index: {}]
  %s1 = inlined_call_operand.vmem [shape: bf16[128,128], index: 1, kind: input, shape index: {}]
  %s2 = inlined_call_operand.vmem [shape: f32[1,128], index: 2, kind: input, shape index: {}]
  %s3 = inlined_call_operand.vmem [shape: bf16[1152,128], index: 3, kind: input, shape index: {}]
  %s4 = inlined_call_operand.vmem [shape: f32[1,128], index: 4, kind: input, shape index: {}]
  %s5 = inlined_call_operand.vmem [shape: bf16[128,128], index: 5, kind: input, shape index: {}]
  %s6 = inlined_call_operand.vmem [shape: f32[1,128], index: 6, kind: input, shape index: {}]
  %s7 = inlined_call_operand.vmem [shape: bf16[2,16,16,128], index: 7, kind: output, shape index: {}]
  %s8 = sld [smem:[#allocation0]]
  $region61: #{bottleneck_pallas_nchw.1} parent=0
    _
  %s10 = ssub.s32 1, %s8
  %s11 = scalar_select 0, %s10, %s8
  loop: start=0, step=1, limit=4
  $region2: #{bottleneck_pallas_nchw.1} parent=0 // loop_pre_header
    _
  $region3: #{bottleneck_pallas_nchw.1} parent=0 // loop_header
    %s13 = sphi 0, %s17
    %p14 = scmp.ge.s32.totalorder %s13, 4
    %s23 = sphi 0, %s25
    %s26 = sphi 0, %s23
    %s27 = sphi 0, %s26
    %s43 = sphi 0, %s27
    %s47 = sphi 0, %s47
    %s49 = sphi 0, %s47
    %s50 = sphi 0, %s49
    %s64 = sphi 0, %s50
    %s68 = sphi 0, %s68
    %s70 = sphi 0, %s68
    %s71 = sphi 0, %s70
    %s85 = sphi 0, %s71
    %s89 = sphi 0, %s89
    %s91 = sphi 0, %s89
    %s92 = sphi 0, %s91
    %s106 = sphi 0, %s92
    %s110 = sphi 0, %s110
    %s112 = sphi 0, %s110
    %s113 = sphi 0, %s112
    %s127 = sphi 0, %s113
    %s131 = sphi 0, %s131
    %s133 = sphi 0, %s131
    %s134 = sphi 0, %s133
    %s148 = sphi 0, %s134
    %s152 = sphi 0, %s152
    %s154 = sphi 0, %s152
    %s155 = sphi 0, %s154
    %s169 = sphi 0, %s155
    %s175 = sphi 0, %s177
    %s178 = sphi 0, %s175
    %s179 = sphi 0, %s178
    %s195 = sphi 0, %s179
  $region4: #{bottleneck_pallas_nchw.1} parent=0 // loop_header_branch
    %16 = sbr.rel (%p14) target = $region8
  $region5: #{bottleneck_pallas_nchw.1} parent=0 // loop_body
    %s18 = ssub.s32 %s13, 1
    %s19 = ssub.s32 %s13, 2
    %s20 = sadd.s32 %s13, 1
    %s21 = ssub.s32 %s13, %s20
    %p22 = scmp.eq.s32.totalorder %s21, 0
    %s24 = sadd.s32 %s23, 1
    %s25 = scalar_select %p22, %s23, %s24
    %p28 = pneg %p22
    %p29 = scmp.eq.s32.totalorder %s13, 1
    %p30 = por %p28, %p29
    %p31 = scmp.ne.s32.totalorder %s23, %s26
    %p32 = scmp.eq.s32.totalorder %s13, 0
    %p33 = por %p31, %p32
    %p34 = scmp.ne.s32.totalorder %s23, %s26
    %p35 = scmp.eq.s32.totalorder %s18, 1
    %p36 = por %p34, %p35
    %p37 = scmp.ne.s32.totalorder %s26, %s27
    %p38 = scmp.eq.s32.totalorder %s18, 0
    %p39 = por %p37, %p38
    %p40 = scmp.ne.s32.totalorder %s26, %s27
    %p41 = scmp.eq.s32.totalorder %s19, 1
    %p42 = por %p40, %p41
    %p44 = scmp.ne.s32.totalorder %s27, %s43
    %p45 = scmp.eq.s32.totalorder %s19, 0
    %p46 = por %p44, %p45
    %s48 = sadd.s32 %s47, 1
    %p51 = scmp.eq.s32.totalorder %s13, 1
    %p52 = scmp.ne.s32.totalorder %s47, %s49
    %p53 = scmp.eq.s32.totalorder %s13, 0
    %p54 = por %p52, %p53
    %p55 = scmp.ne.s32.totalorder %s47, %s49
    %p56 = scmp.eq.s32.totalorder %s18, 1
    %p57 = por %p55, %p56
    %p58 = scmp.ne.s32.totalorder %s49, %s50
    %p59 = scmp.eq.s32.totalorder %s18, 0
    %p60 = por %p58, %p59
    %p61 = scmp.ne.s32.totalorder %s49, %s50
    %p62 = scmp.eq.s32.totalorder %s19, 1
    %p63 = por %p61, %p62
    %p65 = scmp.ne.s32.totalorder %s50, %s64
    %p66 = scmp.eq.s32.totalorder %s19, 0
    %p67 = por %p65, %p66
    %s69 = sadd.s32 %s68, 1
    %p72 = scmp.eq.s32.totalorder %s13, 1
    %p73 = scmp.ne.s32.totalorder %s68, %s70
    %p74 = scmp.eq.s32.totalorder %s13, 0
    %p75 = por %p73, %p74
    %p76 = scmp.ne.s32.totalorder %s68, %s70
    %p77 = scmp.eq.s32.totalorder %s18, 1
    %p78 = por %p76, %p77
    %p79 = scmp.ne.s32.totalorder %s70, %s71
    %p80 = scmp.eq.s32.totalorder %s18, 0
    %p81 = por %p79, %p80
    %p82 = scmp.ne.s32.totalorder %s70, %s71
    %p83 = scmp.eq.s32.totalorder %s19, 1
    %p84 = por %p82, %p83
    %p86 = scmp.ne.s32.totalorder %s71, %s85
    %p87 = scmp.eq.s32.totalorder %s19, 0
    %p88 = por %p86, %p87
    %s90 = sadd.s32 %s89, 1
    %p93 = scmp.eq.s32.totalorder %s13, 1
    %p94 = scmp.ne.s32.totalorder %s89, %s91
    %p95 = scmp.eq.s32.totalorder %s13, 0
    %p96 = por %p94, %p95
    %p97 = scmp.ne.s32.totalorder %s89, %s91
    %p98 = scmp.eq.s32.totalorder %s18, 1
    %p99 = por %p97, %p98
    %p100 = scmp.ne.s32.totalorder %s91, %s92
    %p101 = scmp.eq.s32.totalorder %s18, 0
    %p102 = por %p100, %p101
    %p103 = scmp.ne.s32.totalorder %s91, %s92
    %p104 = scmp.eq.s32.totalorder %s19, 1
    %p105 = por %p103, %p104
    %p107 = scmp.ne.s32.totalorder %s92, %s106
    %p108 = scmp.eq.s32.totalorder %s19, 0
    %p109 = por %p107, %p108
    %s111 = sadd.s32 %s110, 1
    %p114 = scmp.eq.s32.totalorder %s13, 1
    %p115 = scmp.ne.s32.totalorder %s110, %s112
    %p116 = scmp.eq.s32.totalorder %s13, 0
    %p117 = por %p115, %p116
    %p118 = scmp.ne.s32.totalorder %s110, %s112
    %p119 = scmp.eq.s32.totalorder %s18, 1
    %p120 = por %p118, %p119
    %p121 = scmp.ne.s32.totalorder %s112, %s113
    %p122 = scmp.eq.s32.totalorder %s18, 0
    %p123 = por %p121, %p122
    %p124 = scmp.ne.s32.totalorder %s112, %s113
    %p125 = scmp.eq.s32.totalorder %s19, 1
    %p126 = por %p124, %p125
    %p128 = scmp.ne.s32.totalorder %s113, %s127
    %p129 = scmp.eq.s32.totalorder %s19, 0
    %p130 = por %p128, %p129
    %s132 = sadd.s32 %s131, 1
    %p135 = scmp.eq.s32.totalorder %s13, 1
    %p136 = scmp.ne.s32.totalorder %s131, %s133
    %p137 = scmp.eq.s32.totalorder %s13, 0
    %p138 = por %p136, %p137
    %p139 = scmp.ne.s32.totalorder %s131, %s133
    %p140 = scmp.eq.s32.totalorder %s18, 1
    %p141 = por %p139, %p140
    %p142 = scmp.ne.s32.totalorder %s133, %s134
    %p143 = scmp.eq.s32.totalorder %s18, 0
    %p144 = por %p142, %p143
    %p145 = scmp.ne.s32.totalorder %s133, %s134
    %p146 = scmp.eq.s32.totalorder %s19, 1
    %p147 = por %p145, %p146
    %p149 = scmp.ne.s32.totalorder %s134, %s148
    %p150 = scmp.eq.s32.totalorder %s19, 0
    %p151 = por %p149, %p150
    %s153 = sadd.s32 %s152, 1
    %p156 = scmp.eq.s32.totalorder %s13, 1
    %p157 = scmp.ne.s32.totalorder %s152, %s154
    %p158 = scmp.eq.s32.totalorder %s13, 0
    %p159 = por %p157, %p158
    %p160 = scmp.ne.s32.totalorder %s152, %s154
    %p161 = scmp.eq.s32.totalorder %s18, 1
    %p162 = por %p160, %p161
    %p163 = scmp.ne.s32.totalorder %s154, %s155
    %p164 = scmp.eq.s32.totalorder %s18, 0
    %p165 = por %p163, %p164
    %p166 = scmp.ne.s32.totalorder %s154, %s155
    %p167 = scmp.eq.s32.totalorder %s19, 1
    %p168 = por %p166, %p167
    %p170 = scmp.ne.s32.totalorder %s155, %s169
    %p171 = scmp.eq.s32.totalorder %s19, 0
    %p172 = por %p170, %p171
    %s173 = ssub.s32 %s13, %s20
    %p174 = scmp.eq.s32.totalorder %s173, 0
    %s176 = sadd.s32 %s175, 1
    %s177 = scalar_select %p174, %s175, %s176
    %p180 = pneg %p174
    %p181 = scmp.eq.s32.totalorder %s13, 1
    %p182 = por %p180, %p181
    %p183 = scmp.ne.s32.totalorder %s175, %s178
    %p184 = scmp.eq.s32.totalorder %s13, 0
    %p185 = por %p183, %p184
    %p186 = scmp.ne.s32.totalorder %s175, %s178
    %p187 = scmp.eq.s32.totalorder %s18, 1
    %p188 = por %p186, %p187
    %p189 = scmp.ne.s32.totalorder %s178, %s179
    %p190 = scmp.eq.s32.totalorder %s18, 0
    %p191 = por %p189, %p190
    %p192 = scmp.ne.s32.totalorder %s178, %s179
    %p193 = scmp.eq.s32.totalorder %s19, 1
    %p194 = por %p192, %p193
    %p196 = scmp.ne.s32.totalorder %s179, %s195
    %p197 = scmp.eq.s32.totalorder %s19, 0
    %p198 = por %p196, %p197
    %p199 = scmp.le.s32.totalorder 1, %s13
    %p200 = scmp.lt.s32.totalorder %s13, 3
    %p201 = pnand %p199, %p200
    %p202 = pneg %p201
    // Predicated region
    $region9: #{bottleneck_pallas_nchw.1} parent=5 // pred_check
      _
    $region10: #{bottleneck_pallas_nchw.1} parent=5 // pred_check_branch
      %204 = sbr.rel (%p201) target = $region12
    $region11: #{bottleneck_pallas_nchw.1} parent=5 // pred_region
      %s205 = ssub.s32 %s13, 1
      // Predicated region
      $region13: #{bottleneck_pallas_nchw.1} parent=11 // pred_check
        %p206 = pneg %p60
      $region14: #{bottleneck_pallas_nchw.1} parent=11 // pred_check_branch
        %208 = sbr.rel (%p206) target = $region16
      $region15: #{bottleneck_pallas_nchw.1} parent=11 // pred_region
        _
      $region16: #{bottleneck_pallas_nchw.1} parent=11 // pred_fallthru
        _
      // Predicated region
      $region17: #{bottleneck_pallas_nchw.1} parent=11 // pred_check
        %p209 = pneg %p81
      $region18: #{bottleneck_pallas_nchw.1} parent=11 // pred_check_branch
        %211 = sbr.rel (%p209) target = $region20
      $region19: #{bottleneck_pallas_nchw.1} parent=11 // pred_region
        _
      $region20: #{bottleneck_pallas_nchw.1} parent=11 // pred_fallthru
        _
      // Predicated region
      $region21: #{bottleneck_pallas_nchw.1} parent=11 // pred_check
        %p212 = pneg %p102
      $region22: #{bottleneck_pallas_nchw.1} parent=11 // pred_check_branch
        %214 = sbr.rel (%p212) target = $region24
      $region23: #{bottleneck_pallas_nchw.1} parent=11 // pred_region
        _
      $region24: #{bottleneck_pallas_nchw.1} parent=11 // pred_fallthru
        _
      // Predicated region
      $region25: #{bottleneck_pallas_nchw.1} parent=11 // pred_check
        %p215 = pneg %p123
      $region26: #{bottleneck_pallas_nchw.1} parent=11 // pred_check_branch
        %217 = sbr.rel (%p215) target = $region28
      $region27: #{bottleneck_pallas_nchw.1} parent=11 // pred_region
        _
      $region28: #{bottleneck_pallas_nchw.1} parent=11 // pred_fallthru
        _
      // Predicated region
      $region29: #{bottleneck_pallas_nchw.1} parent=11 // pred_check
        %p218 = pneg %p144
      $region30: #{bottleneck_pallas_nchw.1} parent=11 // pred_check_branch
        %220 = sbr.rel (%p218) target = $region32
      $region31: #{bottleneck_pallas_nchw.1} parent=11 // pred_region
        _
      $region32: #{bottleneck_pallas_nchw.1} parent=11 // pred_fallthru
        _
      // Predicated region
      $region33: #{bottleneck_pallas_nchw.1} parent=11 // pred_check
        %p221 = pneg %p165
      $region34: #{bottleneck_pallas_nchw.1} parent=11 // pred_check_branch
        %223 = sbr.rel (%p221) target = $region36
      $region35: #{bottleneck_pallas_nchw.1} parent=11 // pred_region
        _
      $region36: #{bottleneck_pallas_nchw.1} parent=11 // pred_fallthru
        _
    $region12: #{bottleneck_pallas_nchw.1} parent=5 // pred_fallthru
      _
    %p224 = scmp.lt.s32.totalorder %s13, 2
    // Predicated region
    $region37: #{bottleneck_pallas_nchw.1} parent=5 // pred_check
      %p225 = pneg %p224
    $region38: #{bottleneck_pallas_nchw.1} parent=5 // pred_check_branch
      %227 = sbr.rel (%p225) target = $region40
    $region39: #{bottleneck_pallas_nchw.1} parent=5 // pred_region
      // Predicated region
      $region41: #{bottleneck_pallas_nchw.1} parent=39 // pred_check
        %p228 = pneg %p33
      $region42: #{bottleneck_pallas_nchw.1} parent=39 // pred_check_branch
        %230 = sbr.rel (%p228) target = $region44
      $region43: #{bottleneck_pallas_nchw.1} parent=39 // pred_region
        %p231 = scmp.lt.s32.totalorder %s13, 1
        %s232 = scalar_select %p231, %s13, 1
        %s233 = smul.addr %s232, 32
        %s234 = smul.addr %s233, 4
        %s235 = scalar_lea.vmem %s0, %s234
      $region44: #{bottleneck_pallas_nchw.1} parent=39 // pred_fallthru
        _
    $region40: #{bottleneck_pallas_nchw.1} parent=5 // pred_fallthru
      _
    %p236 = scmp.le.s32.totalorder 1, %s13
    %p237 = scmp.lt.s32.totalorder %s13, 3
    %p238 = pnand %p236, %p237
    %p239 = pneg %p238
    // Predicated region
    $region45: #{bottleneck_pallas_nchw.1} parent=5 // pred_check
      _
    $region46: #{bottleneck_pallas_nchw.1} parent=5 // pred_check_branch
      %241 = sbr.rel (%p238) target = $region48
    $region47: #{bottleneck_pallas_nchw.1} parent=5 // pred_region
      %s242 = ssub.s32 %s13, 1
      %p243 = scmp.lt.s32.totalorder %s18, 1
      %s244 = scalar_select %p243, %s18, 1
      %s245 = smul.addr %s244, 32
      %s246 = smul.addr %s245, 4
      %s247 = scalar_lea.vmem %s0, %s246
      %p248 = pneg %p39
      %p249 = pneg %p36
      %p250 = pneg %p60
      %p251 = pneg %p57
      %p252 = pneg %p81
      %p253 = pneg %p78
      %p254 = pneg %p102
      %p255 = pneg %p99
      %p256 = pneg %p123
      %p257 = pneg %p120
      %p258 = pneg %p144
      %p259 = pneg %p141
      %p260 = pneg %p165
      %p261 = pneg %p162
      %p262 = pneg %p191
      %p263 = pneg %p188
      %p264 = scmp.lt.s32.totalorder %s18, 1
      %s265 = scalar_select %p264, %s18, 1
      %s266 = smul.addr %s265, 32
      %s267 = smul.addr %s266, 4
      %s268 = scalar_lea.vmem %s7, %s267
      %p269 = scmp.lt.s32.totalorder %s18, 1
      %s270 = scalar_select %p269, %s18, 1
      %s271 = smul.addr %s270, 32
      %s272 = smul.addr %s271, 4
      %s273 = scalar_lea.vmem %s0, %s272
      %p274 = scmp.lt.s32.totalorder %s18, 1
      %s275 = scalar_select %p274, %s18, 1
      %s276 = smul.addr %s275, 32
      %s277 = smul.addr %s276, 4
      %s278 = scalar_lea.vmem %s7, %s277
      %v280 = vld [vmem:[%s273] sm:$0xf]
      %v281 = vld [vmem:[%s273 + $0x4] sm:$0xf]
      %v282 = vld [vmem:[%s273 + $0x8] sm:$0xf]
      %v283 = vld [vmem:[%s273 + $0xc] sm:$0xf]
      %v284 = vld [vmem:[%s273 + $0x10] sm:$0xf]
      %v285 = vld [vmem:[%s273 + $0x14] sm:$0xf]
      %v286 = vld [vmem:[%s273 + $0x18] sm:$0xf]
      %v287 = vld [vmem:[%s273 + $0x1c] sm:$0xf]
      %v288 = vld [vmem:[%s273 + $0x20] sm:$0xf]
      %v289 = vld [vmem:[%s273 + $0x24] sm:$0xf]
      %v290 = vld [vmem:[%s273 + $0x28] sm:$0xf]
      %v291 = vld [vmem:[%s273 + $0x2c] sm:$0xf]
      %v292 = vld [vmem:[%s273 + $0x30] sm:$0xf]
      %v293 = vld [vmem:[%s273 + $0x34] sm:$0xf]
      %v294 = vld [vmem:[%s273 + $0x38] sm:$0xf]
      %v295 = vld [vmem:[%s273 + $0x3c] sm:$0xf]
      %v296 = vld [vmem:[%s273 + $0x40] sm:$0xf]
      %v297 = vld [vmem:[%s273 + $0x44] sm:$0xf]
      %v298 = vld [vmem:[%s273 + $0x48] sm:$0xf]
      %v299 = vld [vmem:[%s273 + $0x4c] sm:$0xf]
      %v300 = vld [vmem:[%s273 + $0x50] sm:$0xf]
      %v301 = vld [vmem:[%s273 + $0x54] sm:$0xf]
      %v302 = vld [vmem:[%s273 + $0x58] sm:$0xf]
      %v303 = vld [vmem:[%s273 + $0x5c] sm:$0xf]
      %v304 = vld [vmem:[%s273 + $0x60] sm:$0xf]
      %v305 = vld [vmem:[%s273 + $0x64] sm:$0xf]
      %v306 = vld [vmem:[%s273 + $0x68] sm:$0xf]
      %v307 = vld [vmem:[%s273 + $0x6c] sm:$0xf]
      %v308 = vld [vmem:[%s273 + $0x70] sm:$0xf]
      %v309 = vld [vmem:[%s273 + $0x74] sm:$0xf]
      %v310 = vld [vmem:[%s273 + $0x78] sm:$0xf]
      %v311 = vld [vmem:[%s273 + $0x7c] sm:$0xf]
      %v312 = vld [vmem:[%s1] sm:$0xf]
      %v313 = vld [vmem:[%s1 + $0x4] sm:$0xf]
      %v314 = vld [vmem:[%s1 + $0x8] sm:$0xf]
      %v315 = vld [vmem:[%s1 + $0xc] sm:$0xf]
      %v316 = vld [vmem:[%s1 + $0x10] sm:$0xf]
      %v317 = vld [vmem:[%s1 + $0x14] sm:$0xf]
      %v318 = vld [vmem:[%s1 + $0x18] sm:$0xf]
      %v319 = vld [vmem:[%s1 + $0x1c] sm:$0xf]
      %v320 = vld [vmem:[%s1 + $0x20] sm:$0xf]
      %v321 = vld [vmem:[%s1 + $0x24] sm:$0xf]
      %v322 = vld [vmem:[%s1 + $0x28] sm:$0xf]
      %v323 = vld [vmem:[%s1 + $0x2c] sm:$0xf]
      %v324 = vld [vmem:[%s1 + $0x30] sm:$0xf]
      %v325 = vld [vmem:[%s1 + $0x34] sm:$0xf]
      %v326 = vld [vmem:[%s1 + $0x38] sm:$0xf]
      %v327 = vld [vmem:[%s1 + $0x3c] sm:$0xf]
      %v328 = vld [vmem:[%s2] sm:$0x1]
      %v330 = vlaneseq
      %v331 = vshrl.u32 %v330, 7
      %v332 = vsub.s32 0, %v331
      %v333 = vrot.slane %v328, %v332
      %v367 = vunpack.c.l.b16 %v280
      %v368 = vunpack.c.l.b16 %v281
      %v369 = vunpack.c.l.b16 %v282
      %v370 = vunpack.c.l.b16 %v283
      %v371 = vunpack.c.l.b16 %v284
      %v372 = vunpack.c.l.b16 %v285
      %v373 = vunpack.c.l.b16 %v286
      %v374 = vunpack.c.l.b16 %v287
      %v375 = vunpack.c.l.b16 %v288
      %v376 = vunpack.c.l.b16 %v289
      %v377 = vunpack.c.l.b16 %v290
      %v378 = vunpack.c.l.b16 %v291
      %v379 = vunpack.c.l.b16 %v292
      %v380 = vunpack.c.l.b16 %v293
      %v381 = vunpack.c.l.b16 %v294
      %v382 = vunpack.c.l.b16 %v295
      %v383 = vunpack.c.l.b16 %v296
      %v384 = vunpack.c.l.b16 %v297
      %v385 = vunpack.c.l.b16 %v298
      %v386 = vunpack.c.l.b16 %v299
      %v387 = vunpack.c.l.b16 %v300
      %v388 = vunpack.c.l.b16 %v301
      %v389 = vunpack.c.l.b16 %v302
      %v390 = vunpack.c.l.b16 %v303
      %v391 = vunpack.c.l.b16 %v304
      %v392 = vunpack.c.l.b16 %v305
      %v393 = vunpack.c.l.b16 %v306
      %v394 = vunpack.c.l.b16 %v307
      %v395 = vunpack.c.l.b16 %v308
      %v396 = vunpack.c.l.b16 %v309
      %v397 = vunpack.c.l.b16 %v310
      %v398 = vunpack.c.l.b16 %v311
      %v399 = vpack.c.b16 %v368, %v367
      %v400 = vpack.c.b16 %v370, %v369
      %v401 = vpack.c.b16 %v372, %v371
      %v402 = vpack.c.b16 %v374, %v373
      %v403 = vpack.c.b16 %v376, %v375
      %v404 = vpack.c.b16 %v378, %v377
      %v405 = vpack.c.b16 %v380, %v379
      %v406 = vpack.c.b16 %v382, %v381
      %v407 = vpack.c.b16 %v384, %v383
      %v408 = vpack.c.b16 %v386, %v385
      %v409 = vpack.c.b16 %v388, %v387
      %v410 = vpack.c.b16 %v390, %v389
      %v411 = vpack.c.b16 %v392, %v391
      %v412 = vpack.c.b16 %v394, %v393
      %v413 = vpack.c.b16 %v396, %v395
      %v414 = vpack.c.b16 %v398, %v397
      %v447 = vunpack.c.l.b16 %v312
      %v448 = vunpack.c.l.b16 %v313
      %v449 = vunpack.c.l.b16 %v314
      %v450 = vunpack.c.l.b16 %v315
      %v451 = vunpack.c.l.b16 %v316
      %v452 = vunpack.c.l.b16 %v317
      %v453 = vunpack.c.l.b16 %v318
      %v454 = vunpack.c.l.b16 %v319
      %v455 = vunpack.c.l.b16 %v320
      %v456 = vunpack.c.l.b16 %v321
      %v457 = vunpack.c.l.b16 %v322
      %v458 = vunpack.c.l.b16 %v323
      %v459 = vunpack.c.l.b16 %v324
      %v460 = vunpack.c.l.b16 %v325
      %v461 = vunpack.c.l.b16 %v326
      %v462 = vunpack.c.l.b16 %v327
      %v463 = vpack.c.b16 %v448, %v447
      %v464 = vpack.c.b16 %v450, %v449
      %v465 = vpack.c.b16 %v452, %v451
      %v466 = vpack.c.b16 %v454, %v453
      %v467 = vpack.c.b16 %v456, %v455
      %v468 = vpack.c.b16 %v458, %v457
      %v469 = vpack.c.b16 %v460, %v459
      %v470 = vpack.c.b16 %v462, %v461
      %479 = vmatprep.subr.bf16.mxu0 0
      %480 = vmatpush1.bf16.msra.mxu0 %v463
      %481 = vmatprep.subr.bf16.mxu0 0
      %482 = vmatpush1.bf16.msra.mxu0 %v464
      %483 = vmatprep.subr.bf16.mxu0 0
      %484 = vmatpush1.bf16.msra.mxu0 %v465
      %485 = vmatprep.subr.bf16.mxu0 0
      %486 = vmatpush1.bf16.msra.mxu0 %v466
      %487 = vmatprep.subr.bf16.mxu0 0
      %488 = vmatpush1.bf16.msra.mxu0 %v467
      %489 = vmatprep.subr.bf16.mxu0 0
      %490 = vmatpush1.bf16.msra.mxu0 %v468
      %491 = vmatprep.subr.bf16.mxu0 0
      %492 = vmatpush1.bf16.msra.mxu0 %v469
      %493 = vmatprep.subr.bf16.mxu0 0
      %494 = vmatpush1.bf16.msra.mxu0 %v470
      %495 = vmatprep.subr.bf16.mxu0 0
      %496 = vmatpush1.bf16.msra.mxu0 0
      %497 = vmatprep.subr.bf16.mxu0 0
      %498 = vmatpush1.bf16.msra.mxu0 0
      %499 = vmatprep.subr.bf16.mxu0 0
      %500 = vmatpush1.bf16.msra.mxu0 0
      %501 = vmatprep.subr.bf16.mxu0 0
      %502 = vmatpush1.bf16.msra.mxu0 0
      %503 = vmatprep.subr.bf16.mxu0 0
      %504 = vmatpush1.bf16.msra.mxu0 0
      %505 = vmatprep.subr.bf16.mxu0 0
      %506 = vmatpush1.bf16.msra.mxu0 0
      %507 = vmatprep.subr.bf16.mxu0 0
      %508 = vmatpush1.bf16.msra.mxu0 0
      %509 = vmatprep.subr.bf16.mxu0 0
      %510 = vmatpush1.bf16.msra.mxu0 0
      %511 = vmatprep.mubr.bf16.mxu0 0
      %512 = vmatmul.mubr.bf16.gmra.mrb[0].mxu0 %v399
      %v513 = vpop.f32.mrb[0].mxu0
      %v514 = vadd.f32 %v333, %v513
      %v515 = vpop.f32.mrb[0].mxu0
      %v516 = vpop.f32.mrb[0].mxu0
      %v517 = vadd.f32 %v333, %v516
      %v518 = vpop.f32.mrb[0].mxu0
      %519 = vmatprep.mubr.bf16.mxu0 0
      %520 = vmatmul.mubr.bf16.gmra.mrb[0].mxu0 %v400
      %v521 = vpop.f32.mrb[0].mxu0
      %v522 = vadd.f32 %v333, %v521
      %v523 = vpop.f32.mrb[0].mxu0
      %v524 = vpop.f32.mrb[0].mxu0
      %v525 = vadd.f32 %v333, %v524
      %v526 = vpop.f32.mrb[0].mxu0
      %527 = vmatprep.mubr.bf16.mxu0 0
      %528 = vmatmul.mubr.bf16.gmra.mrb[0].mxu0 %v401
      %v529 = vpop.f32.mrb[0].mxu0
      %v530 = vadd.f32 %v333, %v529
      %v531 = vpop.f32.mrb[0].mxu0
      %v532 = vpop.f32.mrb[0].mxu0
      %v533 = vadd.f32 %v333, %v532
      %v534 = vpop.f32.mrb[0].mxu0
      %535 = vmatprep.mubr.bf16.mxu0 0
      %536 = vmatmul.mubr.bf16.gmra.mrb[0].mxu0 %v402
      %v537 = vpop.f32.mrb[0].mxu0
      %v538 = vadd.f32 %v333, %v537
      %v539 = vpop.f32.mrb[0].mxu0
      %v540 = vpop.f32.mrb[0].mxu0
      %v541 = vadd.f32 %v333, %v540
      %v542 = vpop.f32.mrb[0].mxu0
      %543 = vmatprep.mubr.bf16.mxu0 0
      %544 = vmatmul.mubr.bf16.gmra.mrb[0].mxu0 %v403
      %v545 = vpop.f32.mrb[0].mxu0
      %v546 = vadd.f32 %v333, %v545
      %v547 = vpop.f32.mrb[0].mxu0
      %v548 = vpop.f32.mrb[0].mxu0
      %v549 = vadd.f32 %v333, %v548
      %v550 = vpop.f32.mrb[0].mxu0
      %551 = vmatprep.mubr.bf16.mxu0 0
      %552 = vmatmul.mubr.bf16.gmra.mrb[0].mxu0 %v404
      %v553 = vpop.f32.mrb[0].mxu0
      %v554 = vadd.f32 %v333, %v553
      %v555 = vpop.f32.mrb[0].mxu0
      %v556 = vpop.f32.mrb[0].mxu0
      %v557 = vadd.f32 %v333, %v556
      %v558 = vpop.f32.mrb[0].mxu0
      %559 = vmatprep.mubr.bf16.mxu0 0
      %560 = vmatmul.mubr.bf16.gmra.mrb[0].mxu0 %v405
      %v561 = vpop.f32.mrb[0].mxu0
      %v562 = vadd.f32 %v333, %v561
      %v563 = vpop.f32.mrb[0].mxu0
      %v564 = vpop.f32.mrb[0].mxu0
      %v565 = vadd.f32 %v333, %v564
      %v566 = vpop.f32.mrb[0].mxu0
      %567 = vmatprep.mubr.bf16.mxu0 0
      %568 = vmatmul.mubr.bf16.gmra.mrb[0].mxu0 %v406
      %v569 = vpop.f32.mrb[0].mxu0
      %v570 = vadd.f32 %v333, %v569
      %v571 = vpop.f32.mrb[0].mxu0
      %v572 = vpop.f32.mrb[0].mxu0
      %v573 = vadd.f32 %v333, %v572
      %v574 = vpop.f32.mrb[0].mxu0
      %575 = vmatprep.mubr.bf16.mxu0 0
      %576 = vmatmul.mubr.bf16.gmra.mrb[0].mxu0 %v407
      %v577 = vpop.f32.mrb[0].mxu0
      %v578 = vadd.f32 %v333, %v577
      %v579 = vpop.f32.mrb[0].mxu0
      %v580 = vpop.f32.mrb[0].mxu0
      %v581 = vadd.f32 %v333, %v580
      %v582 = vpop.f32.mrb[0].mxu0
      %583 = vmatprep.mubr.bf16.mxu0 0
      %584 = vmatmul.mubr.bf16.gmra.mrb[0].mxu0 %v408
      %v585 = vpop.f32.mrb[0].mxu0
      %v586 = vadd.f32 %v333, %v585
      %v587 = vpop.f32.mrb[0].mxu0
      %v588 = vpop.f32.mrb[0].mxu0
      %v589 = vadd.f32 %v333, %v588
      %v590 = vpop.f32.mrb[0].mxu0
      %591 = vmatprep.mubr.bf16.mxu0 0
      %592 = vmatmul.mubr.bf16.gmra.mrb[0].mxu0 %v409
      %v593 = vpop.f32.mrb[0].mxu0
      %v594 = vadd.f32 %v333, %v593
      %v595 = vpop.f32.mrb[0].mxu0
      %v596 = vpop.f32.mrb[0].mxu0
      %v597 = vadd.f32 %v333, %v596
      %v598 = vpop.f32.mrb[0].mxu0
      %599 = vmatprep.mubr.bf16.mxu0 0
      %600 = vmatmul.mubr.bf16.gmra.mrb[0].mxu0 %v410
      %v601 = vpop.f32.mrb[0].mxu0
      %v602 = vadd.f32 %v333, %v601
      %v603 = vpop.f32.mrb[0].mxu0
      %v604 = vpop.f32.mrb[0].mxu0
      %v605 = vadd.f32 %v333, %v604
      %v606 = vpop.f32.mrb[0].mxu0
      %607 = vmatprep.mubr.bf16.mxu0 0
      %608 = vmatmul.mubr.bf16.gmra.mrb[0].mxu0 %v411
      %v609 = vpop.f32.mrb[0].mxu0
      %v610 = vadd.f32 %v333, %v609
      %v611 = vpop.f32.mrb[0].mxu0
      %v612 = vpop.f32.mrb[0].mxu0
      %v613 = vadd.f32 %v333, %v612
      %v614 = vpop.f32.mrb[0].mxu0
      %615 = vmatprep.mubr.bf16.mxu0 0
      %616 = vmatmul.mubr.bf16.gmra.mrb[0].mxu0 %v412
      %v617 = vpop.f32.mrb[0].mxu0
      %v618 = vadd.f32 %v333, %v617
      %v619 = vpop.f32.mrb[0].mxu0
      %v620 = vpop.f32.mrb[0].mxu0
      %v621 = vadd.f32 %v333, %v620
      %v622 = vpop.f32.mrb[0].mxu0
      %623 = vmatprep.mubr.bf16.mxu0 0
      %624 = vmatmul.mubr.bf16.gmra.mrb[0].mxu0 %v413
      %v625 = vpop.f32.mrb[0].mxu0
      %v626 = vadd.f32 %v333, %v625
      %v627 = vpop.f32.mrb[0].mxu0
      %v628 = vpop.f32.mrb[0].mxu0
      %v629 = vadd.f32 %v333, %v628
      %v630 = vpop.f32.mrb[0].mxu0
      %631 = vmatprep.mubr.bf16.mxu0 0
      %632 = vmatmul.mubr.bf16.gmra.mrb[0].mxu0 %v414
      %v633 = vpop.f32.mrb[0].mxu0
      %v634 = vadd.f32 %v333, %v633
      %v635 = vpop.f32.mrb[0].mxu0
      %v636 = vpop.f32.mrb[0].mxu0
      %v637 = vadd.f32 %v333, %v636
      %v638 = vpop.f32.mrb[0].mxu0
      %639 = vdwg.mxu0
      %v640 = vmax.f32 %v514, 0.0
      %v641 = vmax.f32 %v517, 0.0
      %v642 = vmax.f32 %v522, 0.0
      %v643 = vmax.f32 %v525, 0.0
      %v644 = vmax.f32 %v530, 0.0
      %v645 = vmax.f32 %v533, 0.0
      %v646 = vmax.f32 %v538, 0.0
      %v647 = vmax.f32 %v541, 0.0
      %v648 = vmax.f32 %v546, 0.0
      %v649 = vmax.f32 %v549, 0.0
      %v650 = vmax.f32 %v554, 0.0
      %v651 = vmax.f32 %v557, 0.0
      %v652 = vmax.f32 %v562, 0.0
      %v653 = vmax.f32 %v565, 0.0
      %v654 = vmax.f32 %v570, 0.0
      %v655 = vmax.f32 %v573, 0.0
      %v656 = vmax.f32 %v578, 0.0
      %v657 = vmax.f32 %v581, 0.0
      %v658 = vmax.f32 %v586, 0.0
      %v659 = vmax.f32 %v589, 0.0
      %v660 = vmax.f32 %v594, 0.0
      %v661 = vmax.f32 %v597, 0.0
      %v662 = vmax.f32 %v602, 0.0
      %v663 = vmax.f32 %v605, 0.0
      %v664 = vmax.f32 %v610, 0.0
      %v665 = vmax.f32 %v613, 0.0
      %v666 = vmax.f32 %v618, 0.0
      %v667 = vmax.f32 %v621, 0.0
      %v668 = vmax.f32 %v626, 0.0
      %v669 = vmax.f32 %v629, 0.0
      %v670 = vmax.f32 %v634, 0.0
      %v671 = vmax.f32 %v637, 0.0
      %v672 = vlaneseq
      %v673 = vshrl.u32 %v672, 7
      %v674 = vadd.s32 %v673, 8
      %v675 = vadd.s32 %v673, 16
      %v676 = vadd.s32 %v673, 24
      %v677 = vadd.s32 %v673, 32
      %v678 = vadd.s32 %v673, 40
      %v679 = vadd.s32 %v673, 48
      %v680 = vadd.s32 %v673, 56
      %v681 = vadd.s32 %v673, 64
      %v682 = vadd.s32 %v673, 72
      %v683 = vadd.s32 %v673, 80
      %v684 = vadd.s32 %v673, 88
      %v685 = vadd.s32 %v673, 96
      %v686 = vadd.s32 %v673, 104
      %v687 = vadd.s32 %v673, 112
      %v688 = vadd.s32 %v673, 120
      %v689 = vadd.s32 %v673, 128
      %v690 = vadd.s32 %v673, 136
      %v691 = vadd.s32 %v673, 144
      %v692 = vadd.s32 %v673, 152
      %v693 = vadd.s32 %v673, 160
      %v694 = vadd.s32 %v673, 168
      %v695 = vadd.s32 %v673, 176
      %v696 = vadd.s32 %v673, 184
      %v697 = vadd.s32 %v673, 192
      %v698 = vadd.s32 %v673, 200
      %v699 = vadd.s32 %v673, 208
      %v700 = vadd.s32 %v673, 216
      %v701 = vadd.s32 %v673, 224
      %v702 = vadd.s32 %v673, 232
      %v703 = vadd.s32 %v673, 240
      %v704 = vadd.s32 %v673, 248
      %vm705 = vcmp.lt.s32.totalorder %v673, 0
      %v706 = vsub.s32 0, %v673
      %v707 = vsel %vm705, %v706, %v673
      %v708 = vshrl.u32 %v707, 4
      %v709 = vand.u32 %v707, 15
      %v710 = vsub.s32 0, %v709
      %v711 = vsel %vm705, %v710, %v709
      %vm712 = vcmp.lt.s32.totalorder %v674, 0
      %v713 = vsub.s32 0, %v674
      %v714 = vsel %vm712, %v713, %v674
      %v715 = vshrl.u32 %v714, 4
      %v716 = vand.u32 %v714, 15
      %v717 = vsub.s32 0, %v716
      %v718 = vsel %vm712, %v717, %v716
      %vm719 = vcmp.lt.s32.totalorder %v675, 0
      %v720 = vsub.s32 0, %v675
      %v721 = vsel %vm719, %v720, %v675
      %v722 = vshrl.u32 %v721, 4
      %v723 = vand.u32 %v721, 15
      %v724 = vsub.s32 0, %v723
      %v725 = vsel %vm719, %v724, %v723
      %vm726 = vcmp.lt.s32.totalorder %v676, 0
      %v727 = vsub.s32 0, %v676
      %v728 = vsel %vm726, %v727, %v676
      %v729 = vshrl.u32 %v728, 4
      %v730 = vand.u32 %v728, 15
      %v731 = vsub.s32 0, %v730
      %v732 = vsel %vm726, %v731, %v730
      %vm733 = vcmp.lt.s32.totalorder %v677, 0
      %v734 = vsub.s32 0, %v677
      %v735 = vsel %vm733, %v734, %v677
      %v736 = vshrl.u32 %v735, 4
      %v737 = vand.u32 %v735, 15
      %v738 = vsub.s32 0, %v737
      %v739 = vsel %vm733, %v738, %v737
      %vm740 = vcmp.lt.s32.totalorder %v678, 0
      %v741 = vsub.s32 0, %v678
      %v742 = vsel %vm740, %v741, %v678
      %v743 = vshrl.u32 %v742, 4
      %v744 = vand.u32 %v742, 15
      %v745 = vsub.s32 0, %v744
      %v746 = vsel %vm740, %v745, %v744
      %vm747 = vcmp.lt.s32.totalorder %v679, 0
      %v748 = vsub.s32 0, %v679
      %v749 = vsel %vm747, %v748, %v679
      %v750 = vshrl.u32 %v749, 4
      %v751 = vand.u32 %v749, 15
      %v752 = vsub.s32 0, %v751
      %v753 = vsel %vm747, %v752, %v751
      %vm754 = vcmp.lt.s32.totalorder %v680, 0
      %v755 = vsub.s32 0, %v680
      %v756 = vsel %vm754, %v755, %v680
      %v757 = vshrl.u32 %v756, 4
      %v758 = vand.u32 %v756, 15
      %v759 = vsub.s32 0, %v758
      %v760 = vsel %vm754, %v759, %v758
      %vm761 = vcmp.lt.s32.totalorder %v681, 0
      %v762 = vsub.s32 0, %v681
      %v763 = vsel %vm761, %v762, %v681
      %v764 = vshrl.u32 %v763, 4
      %v765 = vand.u32 %v763, 15
      %v766 = vsub.s32 0, %v765
      %v767 = vsel %vm761, %v766, %v765
      %vm768 = vcmp.lt.s32.totalorder %v682, 0
      %v769 = vsub.s32 0, %v682
      %v770 = vsel %vm768, %v769, %v682
      %v771 = vshrl.u32 %v770, 4
      %v772 = vand.u32 %v770, 15
      %v773 = vsub.s32 0, %v772
      %v774 = vsel %vm768, %v773, %v772
      %vm775 = vcmp.lt.s32.totalorder %v683, 0
      %v776 = vsub.s32 0, %v683
      %v777 = vsel %vm775, %v776, %v683
      %v778 = vshrl.u32 %v777, 4
      %v779 = vand.u32 %v777, 15
      %v780 = vsub.s32 0, %v779
      %v781 = vsel %vm775, %v780, %v779
      %vm782 = vcmp.lt.s32.totalorder %v684, 0
      %v783 = vsub.s32 0, %v684
      %v784 = vsel %vm782, %v783, %v684
      %v785 = vshrl.u32 %v784, 4
      %v786 = vand.u32 %v784, 15
      %v787 = vsub.s32 0, %v786
      %v788 = vsel %vm782, %v787, %v786
      %vm789 = vcmp.lt.s32.totalorder %v685, 0
      %v790 = vsub.s32 0, %v685
      %v791 = vsel %vm789, %v790, %v685
      %v792 = vshrl.u32 %v791, 4
      %v793 = vand.u32 %v791, 15
      %v794 = vsub.s32 0, %v793
      %v795 = vsel %vm789, %v794, %v793
      %vm796 = vcmp.lt.s32.totalorder %v686, 0
      %v797 = vsub.s32 0, %v686
      %v798 = vsel %vm796, %v797, %v686
      %v799 = vshrl.u32 %v798, 4
      %v800 = vand.u32 %v798, 15
      %v801 = vsub.s32 0, %v800
      %v802 = vsel %vm796, %v801, %v800
      %vm803 = vcmp.lt.s32.totalorder %v687, 0
      %v804 = vsub.s32 0, %v687
      %v805 = vsel %vm803, %v804, %v687
      %v806 = vshrl.u32 %v805, 4
      %v807 = vand.u32 %v805, 15
      %v808 = vsub.s32 0, %v807
      %v809 = vsel %vm803, %v808, %v807
      %vm810 = vcmp.lt.s32.totalorder %v688, 0
      %v811 = vsub.s32 0, %v688
      %v812 = vsel %vm810, %v811, %v688
      %v813 = vshrl.u32 %v812, 4
      %v814 = vand.u32 %v812, 15
      %v815 = vsub.s32 0, %v814
      %v816 = vsel %vm810, %v815, %v814
      %vm817 = vcmp.lt.s32.totalorder %v689, 0
      %v818 = vsub.s32 0, %v689
      %v819 = vsel %vm817, %v818, %v689
      %v820 = vshrl.u32 %v819, 4
      %v821 = vand.u32 %v819, 15
      %v822 = vsub.s32 0, %v821
      %v823 = vsel %vm817, %v822, %v821
      %vm824 = vcmp.lt.s32.totalorder %v690, 0
      %v825 = vsub.s32 0, %v690
      %v826 = vsel %vm824, %v825, %v690
      %v827 = vshrl.u32 %v826, 4
      %v828 = vand.u32 %v826, 15
      %v829 = vsub.s32 0, %v828
      %v830 = vsel %vm824, %v829, %v828
      %vm831 = vcmp.lt.s32.totalorder %v691, 0
      %v832 = vsub.s32 0, %v691
      %v833 = vsel %vm831, %v832, %v691
      %v834 = vshrl.u32 %v833, 4
      %v835 = vand.u32 %v833, 15
      %v836 = vsub.s32 0, %v835
      %v837 = vsel %vm831, %v836, %v835
      %vm838 = vcmp.lt.s32.totalorder %v692, 0
      %v839 = vsub.s32 0, %v692
      %v840 = vsel %vm838, %v839, %v692
      %v841 = vshrl.u32 %v840, 4
      %v842 = vand.u32 %v840, 15
      %v843 = vsub.s32 0, %v842
      %v844 = vsel %vm838, %v843, %v842
      %vm845 = vcmp.lt.s32.totalorder %v693, 0
      %v846 = vsub.s32 0, %v693
      %v847 = vsel %vm845, %v846, %v693
      %v848 = vshrl.u32 %v847, 4
      %v849 = vand.u32 %v847, 15
      %v850 = vsub.s32 0, %v849
      %v851 = vsel %vm845, %v850, %v849
      %vm852 = vcmp.lt.s32.totalorder %v694, 0
      %v853 = vsub.s32 0, %v694
      %v854 = vsel %vm852, %v853, %v694
      %v855 = vshrl.u32 %v854, 4
      %v856 = vand.u32 %v854, 15
      %v857 = vsub.s32 0, %v856
      %v858 = vsel %vm852, %v857, %v856
      %vm859 = vcmp.lt.s32.totalorder %v695, 0
      %v860 = vsub.s32 0, %v695
      %v861 = vsel %vm859, %v860, %v695
      %v862 = vshrl.u32 %v861, 4
      %v863 = vand.u32 %v861, 15
      %v864 = vsub.s32 0, %v863
      %v865 = vsel %vm859, %v864, %v863
      %vm866 = vcmp.lt.s32.totalorder %v696, 0
      %v867 = vsub.s32 0, %v696
      %v868 = vsel %vm866, %v867, %v696
      %v869 = vshrl.u32 %v868, 4
      %v870 = vand.u32 %v868, 15
      %v871 = vsub.s32 0, %v870
      %v872 = vsel %vm866, %v871, %v870
      %vm873 = vcmp.lt.s32.totalorder %v697, 0
      %v874 = vsub.s32 0, %v697
      %v875 = vsel %vm873, %v874, %v697
      %v876 = vshrl.u32 %v875, 4
      %v877 = vand.u32 %v875, 15
      %v878 = vsub.s32 0, %v877
      %v879 = vsel %vm873, %v878, %v877
      %vm880 = vcmp.lt.s32.totalorder %v698, 0
      %v881 = vsub.s32 0, %v698
      %v882 = vsel %vm880, %v881, %v698
      %v883 = vshrl.u32 %v882, 4
      %v884 = vand.u32 %v882, 15
      %v885 = vsub.s32 0, %v884
      %v886 = vsel %vm880, %v885, %v884
      %vm887 = vcmp.lt.s32.totalorder %v699, 0
      %v888 = vsub.s32 0, %v699
      %v889 = vsel %vm887, %v888, %v699
      %v890 = vshrl.u32 %v889, 4
      %v891 = vand.u32 %v889, 15
      %v892 = vsub.s32 0, %v891
      %v893 = vsel %vm887, %v892, %v891
      %vm894 = vcmp.lt.s32.totalorder %v700, 0
      %v895 = vsub.s32 0, %v700
      %v896 = vsel %vm894, %v895, %v700
      %v897 = vshrl.u32 %v896, 4
      %v898 = vand.u32 %v896, 15
      %v899 = vsub.s32 0, %v898
      %v900 = vsel %vm894, %v899, %v898
      %vm901 = vcmp.lt.s32.totalorder %v701, 0
      %v902 = vsub.s32 0, %v701
      %v903 = vsel %vm901, %v902, %v701
      %v904 = vshrl.u32 %v903, 4
      %v905 = vand.u32 %v903, 15
      %v906 = vsub.s32 0, %v905
      %v907 = vsel %vm901, %v906, %v905
      %vm908 = vcmp.lt.s32.totalorder %v702, 0
      %v909 = vsub.s32 0, %v702
      %v910 = vsel %vm908, %v909, %v702
      %v911 = vshrl.u32 %v910, 4
      %v912 = vand.u32 %v910, 15
      %v913 = vsub.s32 0, %v912
      %v914 = vsel %vm908, %v913, %v912
      %vm915 = vcmp.lt.s32.totalorder %v703, 0
      %v916 = vsub.s32 0, %v703
      %v917 = vsel %vm915, %v916, %v703
      %v918 = vshrl.u32 %v917, 4
      %v919 = vand.u32 %v917, 15
      %v920 = vsub.s32 0, %v919
      %v921 = vsel %vm915, %v920, %v919
      %vm922 = vcmp.lt.s32.totalorder %v704, 0
      %v923 = vsub.s32 0, %v704
      %v924 = vsel %vm922, %v923, %v704
      %v925 = vshrl.u32 %v924, 4
      %v926 = vand.u32 %v924, 15
      %v927 = vsub.s32 0, %v926
      %v928 = vsel %vm922, %v927, %v926
      %vm929 = vcmp.ne.s32.totalorder %v711, 0
      %vm930 = vcmp.ne.s32.totalorder %v718, 0
      %vm931 = vcmp.ne.s32.totalorder %v725, 0
      %vm932 = vcmp.ne.s32.totalorder %v732, 0
      %vm933 = vcmp.ne.s32.totalorder %v739, 0
      %vm934 = vcmp.ne.s32.totalorder %v746, 0
      %vm935 = vcmp.ne.s32.totalorder %v753, 0
      %vm936 = vcmp.ne.s32.totalorder %v760, 0
      %vm937 = vcmp.ne.s32.totalorder %v767, 0
      %vm938 = vcmp.ne.s32.totalorder %v774, 0
      %vm939 = vcmp.ne.s32.totalorder %v781, 0
      %vm940 = vcmp.ne.s32.totalorder %v788, 0
      %vm941 = vcmp.ne.s32.totalorder %v795, 0
      %vm942 = vcmp.ne.s32.totalorder %v802, 0
      %vm943 = vcmp.ne.s32.totalorder %v809, 0
      %vm944 = vcmp.ne.s32.totalorder %v816, 0
      %vm945 = vcmp.ne.s32.totalorder %v823, 0
      %vm946 = vcmp.ne.s32.totalorder %v830, 0
      %vm947 = vcmp.ne.s32.totalorder %v837, 0
      %vm948 = vcmp.ne.s32.totalorder %v844, 0
      %vm949 = vcmp.ne.s32.totalorder %v851, 0
      %vm950 = vcmp.ne.s32.totalorder %v858, 0
      %vm951 = vcmp.ne.s32.totalorder %v865, 0
      %vm952 = vcmp.ne.s32.totalorder %v872, 0
      %vm953 = vcmp.ne.s32.totalorder %v879, 0
      %vm954 = vcmp.ne.s32.totalorder %v886, 0
      %vm955 = vcmp.ne.s32.totalorder %v893, 0
      %vm956 = vcmp.ne.s32.totalorder %v900, 0
      %vm957 = vcmp.ne.s32.totalorder %v907, 0
      %vm958 = vcmp.ne.s32.totalorder %v914, 0
      %vm959 = vcmp.ne.s32.totalorder %v921, 0
      %vm960 = vcmp.ne.s32.totalorder %v928, 0
      %vm961 = vcmp.lt.s32.totalorder %v711, 0
      %vm962 = vcmp.lt.s32.totalorder %v718, 0
      %vm963 = vcmp.lt.s32.totalorder %v725, 0
      %vm964 = vcmp.lt.s32.totalorder %v732, 0
      %vm965 = vcmp.lt.s32.totalorder %v739, 0
      %vm966 = vcmp.lt.s32.totalorder %v746, 0
      %vm967 = vcmp.lt.s32.totalorder %v753, 0
      %vm968 = vcmp.lt.s32.totalorder %v760, 0
      %vm969 = vcmp.lt.s32.totalorder %v767, 0
      %vm970 = vcmp.lt.s32.totalorder %v774, 0
      %vm971 = vcmp.lt.s32.totalorder %v781, 0
      %vm972 = vcmp.lt.s32.totalorder %v788, 0
      %vm973 = vcmp.lt.s32.totalorder %v795, 0
      %vm974 = vcmp.lt.s32.totalorder %v802, 0
      %vm975 = vcmp.lt.s32.totalorder %v809, 0
      %vm976 = vcmp.lt.s32.totalorder %v816, 0
      %vm977 = vcmp.lt.s32.totalorder %v823, 0
      %vm978 = vcmp.lt.s32.totalorder %v830, 0
      %vm979 = vcmp.lt.s32.totalorder %v837, 0
      %vm980 = vcmp.lt.s32.totalorder %v844, 0
      %vm981 = vcmp.lt.s32.totalorder %v851, 0
      %vm982 = vcmp.lt.s32.totalorder %v858, 0
      %vm983 = vcmp.lt.s32.totalorder %v865, 0
      %vm984 = vcmp.lt.s32.totalorder %v872, 0
      %vm985 = vcmp.lt.s32.totalorder %v879, 0
      %vm986 = vcmp.lt.s32.totalorder %v886, 0
      %vm987 = vcmp.lt.s32.totalorder %v893, 0
      %vm988 = vcmp.lt.s32.totalorder %v900, 0
      %vm989 = vcmp.lt.s32.totalorder %v907, 0
      %vm990 = vcmp.lt.s32.totalorder %v914, 0
      %vm991 = vcmp.lt.s32.totalorder %v921, 0
      %vm992 = vcmp.lt.s32.totalorder %v928, 0
      %vm993 = vmand %vm961, %vm929
      %vm994 = vmand %vm962, %vm930
      %vm995 = vmand %vm963, %vm931
      %vm996 = vmand %vm964, %vm932
      %vm997 = vmand %vm965, %vm933
      %vm998 = vmand %vm966, %vm934
      %vm999 = vmand %vm967, %vm935
      %vm1000 = vmand %vm968, %vm936
      %vm1001 = vmand %vm969, %vm937
      %vm1002 = vmand %vm970, %vm938
      %vm1003 = vmand %vm971, %vm939
      %vm1004 = vmand %vm972, %vm940
      %vm1005 = vmand %vm973, %vm941
      %vm1006 = vmand %vm974, %vm942
      %vm1007 = vmand %vm975, %vm943
      %vm1008 = vmand %vm976, %vm944
      %vm1009 = vmand %vm977, %vm945
      %vm1010 = vmand %vm978, %vm946
      %vm1011 = vmand %vm979, %vm947
      %vm1012 = vmand %vm980, %vm948
      %vm1013 = vmand %vm981, %vm949
      %vm1014 = vmand %vm982, %vm950
      %vm1015 = vmand %vm983, %vm951
      %vm1016 = vmand %vm984, %vm952
      %vm1017 = vmand %vm985, %vm953
      %vm1018 = vmand %vm986, %vm954
      %vm1019 = vmand %vm987, %vm955
      %vm1020 = vmand %vm988, %vm956
      %vm1021 = vmand %vm989, %vm957
      %vm1022 = vmand %vm990, %vm958
      %vm1023 = vmand %vm991, %vm959
      %vm1024 = vmand %vm992, %vm960
      %v1025 = vadd.s32 %v711, 16
      %v1026 = vadd.s32 %v718, 16
      %v1027 = vadd.s32 %v725, 16
      %v1028 = vadd.s32 %v732, 16
      %v1029 = vadd.s32 %v739, 16
      %v1030 = vadd.s32 %v746, 16
      %v1031 = vadd.s32 %v753, 16
      %v1032 = vadd.s32 %v760, 16
      %v1033 = vadd.s32 %v767, 16
      %v1034 = vadd.s32 %v774, 16
      %v1035 = vadd.s32 %v781, 16
      %v1036 = vadd.s32 %v788, 16
      %v1037 = vadd.s32 %v795, 16
      %v1038 = vadd.s32 %v802, 16
      %v1039 = vadd.s32 %v809, 16
      %v1040 = vadd.s32 %v816, 16
      %v1041 = vadd.s32 %v823, 16
      %v1042 = vadd.s32 %v830, 16
      %v1043 = vadd.s32 %v837, 16
      %v1044 = vadd.s32 %v844, 16
      %v1045 = vadd.s32 %v851, 16
      %v1046 = vadd.s32 %v858, 16
      %v1047 = vadd.s32 %v865, 16
      %v1048 = vadd.s32 %v872, 16
      %v1049 = vadd.s32 %v879, 16
      %v1050 = vadd.s32 %v886, 16
      %v1051 = vadd.s32 %v893, 16
      %v1052 = vadd.s32 %v900, 16
      %v1053 = vadd.s32 %v907, 16
      %v1054 = vadd.s32 %v914, 16
      %v1055 = vadd.s32 %v921, 16
      %v1056 = vadd.s32 %v928, 16
      %v1057 = vsel %vm993, %v1025, %v711
      %v1058 = vsel %vm994, %v1026, %v718
      %v1059 = vsel %vm995, %v1027, %v725
      %v1060 = vsel %vm996, %v1028, %v732
      %v1061 = vsel %vm997, %v1029, %v739
      %v1062 = vsel %vm998, %v1030, %v746
      %v1063 = vsel %vm999, %v1031, %v753
      %v1064 = vsel %vm1000, %v1032, %v760
      %v1065 = vsel %vm1001, %v1033, %v767
      %v1066 = vsel %vm1002, %v1034, %v774
      %v1067 = vsel %vm1003, %v1035, %v781
      %v1068 = vsel %vm1004, %v1036, %v788
      %v1069 = vsel %vm1005, %v1037, %v795
      %v1070 = vsel %vm1006, %v1038, %v802
      %v1071 = vsel %vm1007, %v1039, %v809
      %v1072 = vsel %vm1008, %v1040, %v816
      %v1073 = vsel %vm1009, %v1041, %v823
      %v1074 = vsel %vm1010, %v1042, %v830
      %v1075 = vsel %vm1011, %v1043, %v837
      %v1076 = vsel %vm1012, %v1044, %v844
      %v1077 = vsel %vm1013, %v1045, %v851
      %v1078 = vsel %vm1014, %v1046, %v858
      %v1079 = vsel %vm1015, %v1047, %v865
      %v1080 = vsel %vm1016, %v1048, %v872
      %v1081 = vsel %vm1017, %v1049, %v879
      %v1082 = vsel %vm1018, %v1050, %v886
      %v1083 = vsel %vm1019, %v1051, %v893
      %v1084 = vsel %vm1020, %v1052, %v900
      %v1085 = vsel %vm1021, %v1053, %v907
      %v1086 = vsel %vm1022, %v1054, %v914
      %v1087 = vsel %vm1023, %v1055, %v921
      %v1088 = vsel %vm1024, %v1056, %v928
      %v1089 = vpack.c.bf16 %v641, %v640
      %v1090 = vpack.c.bf16 %v643, %v642
      %v1091 = vpack.c.bf16 %v645, %v644
      %v1092 = vpack.c.bf16 %v647, %v646
      %v1093 = vpack.c.bf16 %v649, %v648
      %v1094 = vpack.c.bf16 %v651, %v650
      %v1095 = vpack.c.bf16 %v653, %v652
      %v1096 = vpack.c.bf16 %v655, %v654
      %v1097 = vpack.c.bf16 %v657, %v656
      %v1098 = vpack.c.bf16 %v659, %v658
      %v1099 = vpack.c.bf16 %v661, %v660
      %v1100 = vpack.c.bf16 %v663, %v662
      %v1101 = vpack.c.bf16 %v665, %v664
      %v1102 = vpack.c.bf16 %v667, %v666
      %v1103 = vpack.c.bf16 %v669, %v668
      %v1104 = vpack.c.bf16 %v671, %v670
      %vm1105 = vcmp.ge.s32.totalorder %v1057, 1
      %vm1106 = vcmp.ge.s32.totalorder %v1058, 1
      %vm1107 = vcmp.ge.s32.totalorder %v1059, 1
      %vm1108 = vcmp.ge.s32.totalorder %v1060, 1
      %vm1109 = vcmp.ge.s32.totalorder %v1061, 1
      %vm1110 = vcmp.ge.s32.totalorder %v1062, 1
      %vm1111 = vcmp.ge.s32.totalorder %v1063, 1
      %vm1112 = vcmp.ge.s32.totalorder %v1064, 1
      %vm1113 = vcmp.ge.s32.totalorder %v1065, 1
      %vm1114 = vcmp.ge.s32.totalorder %v1066, 1
      %vm1115 = vcmp.ge.s32.totalorder %v1067, 1
      %vm1116 = vcmp.ge.s32.totalorder %v1068, 1
      %vm1117 = vcmp.ge.s32.totalorder %v1069, 1
      %vm1118 = vcmp.ge.s32.totalorder %v1070, 1
      %vm1119 = vcmp.ge.s32.totalorder %v1071, 1
      %vm1120 = vcmp.ge.s32.totalorder %v1072, 1
      %vm1121 = vcmp.ge.s32.totalorder %v1073, 1
      %vm1122 = vcmp.ge.s32.totalorder %v1074, 1
      %vm1123 = vcmp.ge.s32.totalorder %v1075, 1
      %vm1124 = vcmp.ge.s32.totalorder %v1076, 1
      %vm1125 = vcmp.ge.s32.totalorder %v1077, 1
      %vm1126 = vcmp.ge.s32.totalorder %v1078, 1
      %vm1127 = vcmp.ge.s32.totalorder %v1079, 1
      %vm1128 = vcmp.ge.s32.totalorder %v1080, 1
      %vm1129 = vcmp.ge.s32.totalorder %v1081, 1
      %vm1130 = vcmp.ge.s32.totalorder %v1082, 1
      %vm1131 = vcmp.ge.s32.totalorder %v1083, 1
      %vm1132 = vcmp.ge.s32.totalorder %v1084, 1
      %vm1133 = vcmp.ge.s32.totalorder %v1085, 1
      %vm1134 = vcmp.ge.s32.totalorder %v1086, 1
      %vm1135 = vcmp.ge.s32.totalorder %v1087, 1
      %vm1136 = vcmp.ge.s32.totalorder %v1088, 1
      %v1137 = vrot.slane %v640, 7
      %v1138 = vrot.slane %v641, 7
      %v1139 = vrot.slane %v642, 7
      %v1140 = vrot.slane %v643, 7
      %v1141 = vrot.slane %v644, 7
      %v1142 = vrot.slane %v645, 7
      %v1143 = vrot.slane %v646, 7
      %v1144 = vrot.slane %v647, 7
      %v1145 = vrot.slane %v648, 7
      %v1146 = vrot.slane %v649, 7
      %v1147 = vrot.slane %v650, 7
      %v1148 = vrot.slane %v651, 7
      %v1149 = vrot.slane %v652, 7
      %v1150 = vrot.slane %v653, 7
      %v1151 = vrot.slane %v654, 7
      %v1152 = vrot.slane %v655, 7
      %v1153 = vrot.slane %v656, 7
      %v1154 = vrot.slane %v657, 7
      %v1155 = vrot.slane %v658, 7
      %v1156 = vrot.slane %v659, 7
      %v1157 = vrot.slane %v660, 7
      %v1158 = vrot.slane %v661, 7
      %v1159 = vrot.slane %v662, 7
      %v1160 = vrot.slane %v663, 7
      %v1161 = vrot.slane %v664, 7
      %v1162 = vrot.slane %v665, 7
      %v1163 = vrot.slane %v666, 7
      %v1164 = vrot.slane %v667, 7
      %v1165 = vrot.slane %v668, 7
      %v1166 = vrot.slane %v669, 7
      %v1167 = vrot.slane %v670, 7
      %v1168 = vrot.slane %v671, 7
      %vm1169 = vcmp.lt.s32.totalorder %v673, 1
      %v1170 = vsel %vm1169, %v1167, %v1168
      %v1171 = vsel %vm1169, %v1166, %v1167
      %v1172 = vsel %vm1169, %v1165, %v1166
      %v1173 = vsel %vm1169, %v1164, %v1165
      %v1174 = vsel %vm1169, %v1163, %v1164
      %v1175 = vsel %vm1169, %v1162, %v1163
      %v1176 = vsel %vm1169, %v1161, %v1162
      %v1177 = vsel %vm1169, %v1160, %v1161
      %v1178 = vsel %vm1169, %v1159, %v1160
      %v1179 = vsel %vm1169, %v1158, %v1159
      %v1180 = vsel %vm1169, %v1157, %v1158
      %v1181 = vsel %vm1169, %v1156, %v1157
      %v1182 = vsel %vm1169, %v1155, %v1156
      %v1183 = vsel %vm1169, %v1154, %v1155
      %v1184 = vsel %vm1169, %v1153, %v1154
      %v1185 = vsel %vm1169, %v1152, %v1153
      %v1186 = vsel %vm1169, %v1151, %v1152
      %v1187 = vsel %vm1169, %v1150, %v1151
      %v1188 = vsel %vm1169, %v1149, %v1150
      %v1189 = vsel %vm1169, %v1148, %v1149
      %v1190 = vsel %vm1169, %v1147, %v1148
      %v1191 = vsel %vm1169, %v1146, %v1147
      %v1192 = vsel %vm1169, %v1145, %v1146
      %v1193 = vsel %vm1169, %v1144, %v1145
      %v1194 = vsel %vm1169, %v1143, %v1144
      %v1195 = vsel %vm1169, %v1142, %v1143
      %v1196 = vsel %vm1169, %v1141, %v1142
      %v1197 = vsel %vm1169, %v1140, %v1141
      %v1198 = vsel %vm1169, %v1139, %v1140
      %v1199 = vsel %vm1169, %v1138, %v1139
      %v1200 = vsel %vm1169, %v1137, %v1138
      %v1201 = vsel %vm1169, %v1168, %v1137
      %v1202 = vsel %vm1105, 1, 0
      %v1203 = vsel %vm1106, 1, 0
      %v1204 = vsel %vm1107, 1, 0
      %v1205 = vsel %vm1108, 1, 0
      %v1206 = vsel %vm1109, 1, 0
      %v1207 = vsel %vm1110, 1, 0
      %v1208 = vsel %vm1111, 1, 0
      %v1209 = vsel %vm1112, 1, 0
      %v1210 = vsel %vm1113, 1, 0
      %v1211 = vsel %vm1114, 1, 0
      %v1212 = vsel %vm1115, 1, 0
      %v1213 = vsel %vm1116, 1, 0
      %v1214 = vsel %vm1117, 1, 0
      %v1215 = vsel %vm1118, 1, 0
      %v1216 = vsel %vm1119, 1, 0
      %v1217 = vsel %vm1120, 1, 0
      %v1218 = vsel %vm1121, 1, 0
      %v1219 = vsel %vm1122, 1, 0
      %v1220 = vsel %vm1123, 1, 0
      %v1221 = vsel %vm1124, 1, 0
      %v1222 = vsel %vm1125, 1, 0
      %v1223 = vsel %vm1126, 1, 0
      %v1224 = vsel %vm1127, 1, 0
      %v1225 = vsel %vm1128, 1, 0
      %v1226 = vsel %vm1129, 1, 0
      %v1227 = vsel %vm1130, 1, 0
      %v1228 = vsel %vm1131, 1, 0
      %v1229 = vsel %vm1132, 1, 0
      %v1230 = vsel %vm1133, 1, 0
      %v1231 = vsel %vm1134, 1, 0
      %v1232 = vsel %vm1135, 1, 0
      %v1233 = vsel %vm1136, 1, 0
      %vm1234 = vcmp.eq.s32.totalorder %v1202, 1
      %vm1235 = vcmp.eq.s32.totalorder %v1203, 1
      %vm1236 = vcmp.eq.s32.totalorder %v1204, 1
      %vm1237 = vcmp.eq.s32.totalorder %v1205, 1
      %vm1238 = vcmp.eq.s32.totalorder %v1206, 1
      %vm1239 = vcmp.eq.s32.totalorder %v1207, 1
      %vm1240 = vcmp.eq.s32.totalorder %v1208, 1
      %vm1241 = vcmp.eq.s32.totalorder %v1209, 1
      %vm1242 = vcmp.eq.s32.totalorder %v1210, 1
      %vm1243 = vcmp.eq.s32.totalorder %v1211, 1
      %vm1244 = vcmp.eq.s32.totalorder %v1212, 1
      %vm1245 = vcmp.eq.s32.totalorder %v1213, 1
      %vm1246 = vcmp.eq.s32.totalorder %v1214, 1
      %vm1247 = vcmp.eq.s32.totalorder %v1215, 1
      %vm1248 = vcmp.eq.s32.totalorder %v1216, 1
      %vm1249 = vcmp.eq.s32.totalorder %v1217, 1
      %vm1250 = vcmp.eq.s32.totalorder %v1218, 1
      %vm1251 = vcmp.eq.s32.totalorder %v1219, 1
      %vm1252 = vcmp.eq.s32.totalorder %v1220, 1
      %vm1253 = vcmp.eq.s32.totalorder %v1221, 1
      %vm1254 = vcmp.eq.s32.totalorder %v1222, 1
      %vm1255 = vcmp.eq.s32.totalorder %v1223, 1
      %vm1256 = vcmp.eq.s32.totalorder %v1224, 1
      %vm1257 = vcmp.eq.s32.totalorder %v1225, 1
      %vm1258 = vcmp.eq.s32.totalorder %v1226, 1
      %vm1259 = vcmp.eq.s32.totalorder %v1227, 1
      %vm1260 = vcmp.eq.s32.totalorder %v1228, 1
      %vm1261 = vcmp.eq.s32.totalorder %v1229, 1
      %vm1262 = vcmp.eq.s32.totalorder %v1230, 1
      %vm1263 = vcmp.eq.s32.totalorder %v1231, 1
      %vm1264 = vcmp.eq.s32.totalorder %v1232, 1
      %vm1265 = vcmp.eq.s32.totalorder %v1233, 1
      %v1266 = vsel %vm1234, %v1201, 0.0
      %v1267 = vsel %vm1235, %v1200, 0.0
      %v1268 = vsel %vm1236, %v1199, 0.0
      %v1269 = vsel %vm1237, %v1198, 0.0
      %v1270 = vsel %vm1238, %v1197, 0.0
      %v1271 = vsel %vm1239, %v1196, 0.0
      %v1272 = vsel %vm1240, %v1195, 0.0
      %v1273 = vsel %vm1241, %v1194, 0.0
      %v1274 = vsel %vm1242, %v1193, 0.0
      %v1275 = vsel %vm1243, %v1192, 0.0
      %v1276 = vsel %vm1244, %v1191, 0.0
      %v1277 = vsel %vm1245, %v1190, 0.0
      %v1278 = vsel %vm1246, %v1189, 0.0
      %v1279 = vsel %vm1247, %v1188, 0.0
      %v1280 = vsel %vm1248, %v1187, 0.0
      %v1281 = vsel %vm1249, %v1186, 0.0
      %v1282 = vsel %vm1250, %v1185, 0.0
      %v1283 = vsel %vm1251, %v1184, 0.0
      %v1284 = vsel %vm1252, %v1183, 0.0
      %v1285 = vsel %vm1253, %v1182, 0.0
      %v1286 = vsel %vm1254, %v1181, 0.0
      %v1287 = vsel %vm1255, %v1180, 0.0
      %v1288 = vsel %vm1256, %v1179, 0.0
      %v1289 = vsel %vm1257, %v1178, 0.0
      %v1290 = vsel %vm1258, %v1177, 0.0
      %v1291 = vsel %vm1259, %v1176, 0.0
      %v1292 = vsel %vm1260, %v1175, 0.0
      %v1293 = vsel %vm1261, %v1174, 0.0
      %v1294 = vsel %vm1262, %v1173, 0.0
      %v1295 = vsel %vm1263, %v1172, 0.0
      %v1296 = vsel %vm1264, %v1171, 0.0
      %v1297 = vsel %vm1265, %v1170, 0.0
      %v1298 = vpack.c.bf16 %v1267, %v1266
      %v1299 = vpack.c.bf16 %v1269, %v1268
      %v1300 = vpack.c.bf16 %v1271, %v1270
      %v1301 = vpack.c.bf16 %v1273, %v1272
      %v1302 = vpack.c.bf16 %v1275, %v1274
      %v1303 = vpack.c.bf16 %v1277, %v1276
      %v1304 = vpack.c.bf16 %v1279, %v1278
      %v1305 = vpack.c.bf16 %v1281, %v1280
      %v1306 = vpack.c.bf16 %v1283, %v1282
      %v1307 = vpack.c.bf16 %v1285, %v1284
      %v1308 = vpack.c.bf16 %v1287, %v1286
      %v1309 = vpack.c.bf16 %v1289, %v1288
      %v1310 = vpack.c.bf16 %v1291, %v1290
      %v1311 = vpack.c.bf16 %v1293, %v1292
      %v1312 = vpack.c.bf16 %v1295, %v1294
      %v1313 = vpack.c.bf16 %v1297, %v1296
      %vm1314 = vcmp.lt.s32.totalorder %v1057, 15
      %vm1315 = vcmp.lt.s32.totalorder %v1058, 15
      %vm1316 = vcmp.lt.s32.totalorder %v1059, 15
      %vm1317 = vcmp.lt.s32.totalorder %v1060, 15
      %vm1318 = vcmp.lt.s32.totalorder %v1061, 15
      %vm1319 = vcmp.lt.s32.totalorder %v1062, 15
      %vm1320 = vcmp.lt.s32.totalorder %v1063, 15
      %vm1321 = vcmp.lt.s32.totalorder %v1064, 15
      %vm1322 = vcmp.lt.s32.totalorder %v1065, 15
      %vm1323 = vcmp.lt.s32.totalorder %v1066, 15
      %vm1324 = vcmp.lt.s32.totalorder %v1067, 15
      %vm1325 = vcmp.lt.s32.totalorder %v1068, 15
      %vm1326 = vcmp.lt.s32.totalorder %v1069, 15
      %vm1327 = vcmp.lt.s32.totalorder %v1070, 15
      %vm1328 = vcmp.lt.s32.totalorder %v1071, 15
      %vm1329 = vcmp.lt.s32.totalorder %v1072, 15
      %vm1330 = vcmp.lt.s32.totalorder %v1073, 15
      %vm1331 = vcmp.lt.s32.totalorder %v1074, 15
      %vm1332 = vcmp.lt.s32.totalorder %v1075, 15
      %vm1333 = vcmp.lt.s32.totalorder %v1076, 15
      %vm1334 = vcmp.lt.s32.totalorder %v1077, 15
      %vm1335 = vcmp.lt.s32.totalorder %v1078, 15
      %vm1336 = vcmp.lt.s32.totalorder %v1079, 15
      %vm1337 = vcmp.lt.s32.totalorder %v1080, 15
      %vm1338 = vcmp.lt.s32.totalorder %v1081, 15
      %vm1339 = vcmp.lt.s32.totalorder %v1082, 15
      %vm1340 = vcmp.lt.s32.totalorder %v1083, 15
      %vm1341 = vcmp.lt.s32.totalorder %v1084, 15
      %vm1342 = vcmp.lt.s32.totalorder %v1085, 15
      %vm1343 = vcmp.lt.s32.totalorder %v1086, 15
      %vm1344 = vcmp.lt.s32.totalorder %v1087, 15
      %vm1345 = vcmp.lt.s32.totalorder %v1088, 15
      %v1346 = vrot.slane %v640, 1
      %v1347 = vrot.slane %v641, 1
      %v1348 = vrot.slane %v642, 1
      %v1349 = vrot.slane %v643, 1
      %v1350 = vrot.slane %v644, 1
      %v1351 = vrot.slane %v645, 1
      %v1352 = vrot.slane %v646, 1
      %v1353 = vrot.slane %v647, 1
      %v1354 = vrot.slane %v648, 1
      %v1355 = vrot.slane %v649, 1
      %v1356 = vrot.slane %v650, 1
      %v1357 = vrot.slane %v651, 1
      %v1358 = vrot.slane %v652, 1
      %v1359 = vrot.slane %v653, 1
      %v1360 = vrot.slane %v654, 1
      %v1361 = vrot.slane %v655, 1
      %v1362 = vrot.slane %v656, 1
      %v1363 = vrot.slane %v657, 1
      %v1364 = vrot.slane %v658, 1
      %v1365 = vrot.slane %v659, 1
      %v1366 = vrot.slane %v660, 1
      %v1367 = vrot.slane %v661, 1
      %v1368 = vrot.slane %v662, 1
      %v1369 = vrot.slane %v663, 1
      %v1370 = vrot.slane %v664, 1
      %v1371 = vrot.slane %v665, 1
      %v1372 = vrot.slane %v666, 1
      %v1373 = vrot.slane %v667, 1
      %v1374 = vrot.slane %v668, 1
      %v1375 = vrot.slane %v669, 1
      %v1376 = vrot.slane %v670, 1
      %v1377 = vrot.slane %v671, 1
      %vm1378 = vcmp.lt.s32.totalorder %v673, 7
      %v1379 = vsel %vm1378, %v1376, %v1377
      %v1380 = vsel %vm1378, %v1375, %v1376
      %v1381 = vsel %vm1378, %v1374, %v1375
      %v1382 = vsel %vm1378, %v1373, %v1374
      %v1383 = vsel %vm1378, %v1372, %v1373
      %v1384 = vsel %vm1378, %v1371, %v1372
      %v1385 = vsel %vm1378, %v1370, %v1371
      %v1386 = vsel %vm1378, %v1369, %v1370
      %v1387 = vsel %vm1378, %v1368, %v1369
      %v1388 = vsel %vm1378, %v1367, %v1368
      %v1389 = vsel %vm1378, %v1366, %v1367
      %v1390 = vsel %vm1378, %v1365, %v1366
      %v1391 = vsel %vm1378, %v1364, %v1365
      %v1392 = vsel %vm1378, %v1363, %v1364
      %v1393 = vsel %vm1378, %v1362, %v1363
      %v1394 = vsel %vm1378, %v1361, %v1362
      %v1395 = vsel %vm1378, %v1360, %v1361
      %v1396 = vsel %vm1378, %v1359, %v1360
      %v1397 = vsel %vm1378, %v1358, %v1359
      %v1398 = vsel %vm1378, %v1357, %v1358
      %v1399 = vsel %vm1378, %v1356, %v1357
      %v1400 = vsel %vm1378, %v1355, %v1356
      %v1401 = vsel %vm1378, %v1354, %v1355
      %v1402 = vsel %vm1378, %v1353, %v1354
      %v1403 = vsel %vm1378, %v1352, %v1353
      %v1404 = vsel %vm1378, %v1351, %v1352
      %v1405 = vsel %vm1378, %v1350, %v1351
      %v1406 = vsel %vm1378, %v1349, %v1350
      %v1407 = vsel %vm1378, %v1348, %v1349
      %v1408 = vsel %vm1378, %v1347, %v1348
      %v1409 = vsel %vm1378, %v1346, %v1347
      %v1410 = vsel %vm1378, %v1377, %v1346
      %v1411 = vsel %vm1314, 1, 0
      %v1412 = vsel %vm1315, 1, 0
      %v1413 = vsel %vm1316, 1, 0
      %v1414 = vsel %vm1317, 1, 0
      %v1415 = vsel %vm1318, 1, 0
      %v1416 = vsel %vm1319, 1, 0
      %v1417 = vsel %vm1320, 1, 0
      %v1418 = vsel %vm1321, 1, 0
      %v1419 = vsel %vm1322, 1, 0
      %v1420 = vsel %vm1323, 1, 0
      %v1421 = vsel %vm1324, 1, 0
      %v1422 = vsel %vm1325, 1, 0
      %v1423 = vsel %vm1326, 1, 0
      %v1424 = vsel %vm1327, 1, 0
      %v1425 = vsel %vm1328, 1, 0
      %v1426 = vsel %vm1329, 1, 0
      %v1427 = vsel %vm1330, 1, 0
      %v1428 = vsel %vm1331, 1, 0
      %v1429 = vsel %vm1332, 1, 0
      %v1430 = vsel %vm1333, 1, 0
      %v1431 = vsel %vm1334, 1, 0
      %v1432 = vsel %vm1335, 1, 0
      %v1433 = vsel %vm1336, 1, 0
      %v1434 = vsel %vm1337, 1, 0
      %v1435 = vsel %vm1338, 1, 0
      %v1436 = vsel %vm1339, 1, 0
      %v1437 = vsel %vm1340, 1, 0
      %v1438 = vsel %vm1341, 1, 0
      %v1439 = vsel %vm1342, 1, 0
      %v1440 = vsel %vm1343, 1, 0
      %v1441 = vsel %vm1344, 1, 0
      %v1442 = vsel %vm1345, 1, 0
      %vm1443 = vcmp.eq.s32.totalorder %v1411, 1
      %vm1444 = vcmp.eq.s32.totalorder %v1412, 1
      %vm1445 = vcmp.eq.s32.totalorder %v1413, 1
      %vm1446 = vcmp.eq.s32.totalorder %v1414, 1
      %vm1447 = vcmp.eq.s32.totalorder %v1415, 1
      %vm1448 = vcmp.eq.s32.totalorder %v1416, 1
      %vm1449 = vcmp.eq.s32.totalorder %v1417, 1
      %vm1450 = vcmp.eq.s32.totalorder %v1418, 1
      %vm1451 = vcmp.eq.s32.totalorder %v1419, 1
      %vm1452 = vcmp.eq.s32.totalorder %v1420, 1
      %vm1453 = vcmp.eq.s32.totalorder %v1421, 1
      %vm1454 = vcmp.eq.s32.totalorder %v1422, 1
      %vm1455 = vcmp.eq.s32.totalorder %v1423, 1
      %vm1456 = vcmp.eq.s32.totalorder %v1424, 1
      %vm1457 = vcmp.eq.s32.totalorder %v1425, 1
      %vm1458 = vcmp.eq.s32.totalorder %v1426, 1
      %vm1459 = vcmp.eq.s32.totalorder %v1427, 1
      %vm1460 = vcmp.eq.s32.totalorder %v1428, 1
      %vm1461 = vcmp.eq.s32.totalorder %v1429, 1
      %vm1462 = vcmp.eq.s32.totalorder %v1430, 1
      %vm1463 = vcmp.eq.s32.totalorder %v1431, 1
      %vm1464 = vcmp.eq.s32.totalorder %v1432, 1
      %vm1465 = vcmp.eq.s32.totalorder %v1433, 1
      %vm1466 = vcmp.eq.s32.totalorder %v1434, 1
      %vm1467 = vcmp.eq.s32.totalorder %v1435, 1
      %vm1468 = vcmp.eq.s32.totalorder %v1436, 1
      %vm1469 = vcmp.eq.s32.totalorder %v1437, 1
      %vm1470 = vcmp.eq.s32.totalorder %v1438, 1
      %vm1471 = vcmp.eq.s32.totalorder %v1439, 1
      %vm1472 = vcmp.eq.s32.totalorder %v1440, 1
      %vm1473 = vcmp.eq.s32.totalorder %v1441, 1
      %vm1474 = vcmp.eq.s32.totalorder %v1442, 1
      %v1475 = vsel %vm1443, %v1409, 0.0
      %v1476 = vsel %vm1444, %v1408, 0.0
      %v1477 = vsel %vm1445, %v1407, 0.0
      %v1478 = vsel %vm1446, %v1406, 0.0
      %v1479 = vsel %vm1447, %v1405, 0.0
      %v1480 = vsel %vm1448, %v1404, 0.0
      %v1481 = vsel %vm1449, %v1403, 0.0
      %v1482 = vsel %vm1450, %v1402, 0.0
      %v1483 = vsel %vm1451, %v1401, 0.0
      %v1484 = vsel %vm1452, %v1400, 0.0
      %v1485 = vsel %vm1453, %v1399, 0.0
      %v1486 = vsel %vm1454, %v1398, 0.0
      %v1487 = vsel %vm1455, %v1397, 0.0
      %v1488 = vsel %vm1456, %v1396, 0.0
      %v1489 = vsel %vm1457, %v1395, 0.0
      %v1490 = vsel %vm1458, %v1394, 0.0
      %v1491 = vsel %vm1459, %v1393, 0.0
      %v1492 = vsel %vm1460, %v1392, 0.0
      %v1493 = vsel %vm1461, %v1391, 0.0
      %v1494 = vsel %vm1462, %v1390, 0.0
      %v1495 = vsel %vm1463, %v1389, 0.0
      %v1496 = vsel %vm1464, %v1388, 0.0
      %v1497 = vsel %vm1465, %v1387, 0.0
      %v1498 = vsel %vm1466, %v1386, 0.0
      %v1499 = vsel %vm1467, %v1385, 0.0
      %v1500 = vsel %vm1468, %v1384, 0.0
      %v1501 = vsel %vm1469, %v1383, 0.0
      %v1502 = vsel %vm1470, %v1382, 0.0
      %v1503 = vsel %vm1471, %v1381, 0.0
      %v1504 = vsel %vm1472, %v1380, 0.0
      %v1505 = vsel %vm1473, %v1379, 0.0
      %v1506 = vsel %vm1474, %v1410, 0.0
      %v1507 = vpack.c.bf16 %v1476, %v1475
      %v1508 = vpack.c.bf16 %v1478, %v1477
      %v1509 = vpack.c.bf16 %v1480, %v1479
      %v1510 = vpack.c.bf16 %v1482, %v1481
      %v1511 = vpack.c.bf16 %v1484, %v1483
      %v1512 = vpack.c.bf16 %v1486, %v1485
      %v1513 = vpack.c.bf16 %v1488, %v1487
      %v1514 = vpack.c.bf16 %v1490, %v1489
      %v1515 = vpack.c.bf16 %v1492, %v1491
      %v1516 = vpack.c.bf16 %v1494, %v1493
      %v1517 = vpack.c.bf16 %v1496, %v1495
      %v1518 = vpack.c.bf16 %v1498, %v1497
      %v1519 = vpack.c.bf16 %v1500, %v1499
      %v1520 = vpack.c.bf16 %v1502, %v1501
      %v1521 = vpack.c.bf16 %v1504, %v1503
      %v1522 = vpack.c.bf16 %v1506, %v1505
      %1523 = vst [vmem:[#allocation2] sm:$0xff] 0
      %1524 = vst [vmem:[#allocation2 + $0x48] sm:$0xff] %v1298
      %1525 = vst [vmem:[#allocation2 + $0x90] sm:$0xff] %v1299
      %1526 = vst [vmem:[#allocation2 + $0xd8] sm:$0xff] %v1300
      %1527 = vst [vmem:[#allocation2 + $0x120] sm:$0xff] %v1301
      %1528 = vst [vmem:[#allocation2 + $0x168] sm:$0xff] %v1302
      %1529 = vst [vmem:[#allocation2 + $0x1b0] sm:$0xff] %v1303
      %1530 = vst [vmem:[#allocation2 + $0x1f8] sm:$0xff] %v1304
      %1531 = vst [vmem:[#allocation2 + $0x240] sm:$0xff] %v1305
      %1532 = vst [vmem:[#allocation2 + $0x288] sm:$0xff] %v1306
      %1533 = vst [vmem:[#allocation2 + $0x2d0] sm:$0xff] %v1307
      %1534 = vst [vmem:[#allocation2 + $0x318] sm:$0xff] %v1308
      %1535 = vst [vmem:[#allocation2 + $0x360] sm:$0xff] %v1309
      %1536 = vst [vmem:[#allocation2 + $0x3a8] sm:$0xff] %v1310
      %1537 = vst [vmem:[#allocation2 + $0x3f0] sm:$0xff] %v1311
      %1538 = vst [vmem:[#allocation2 + $0x438] sm:$0xff] %v1312
      %1539 = vst [vmem:[#allocation2 + $0x8] sm:$0xff] 0
      %1540 = vst [vmem:[#allocation2 + $0x50] sm:$0xff] %v1089
      %1541 = vst [vmem:[#allocation2 + $0x98] sm:$0xff] %v1090
      %1542 = vst [vmem:[#allocation2 + $0xe0] sm:$0xff] %v1091
      %1543 = vst [vmem:[#allocation2 + $0x128] sm:$0xff] %v1092
      %1544 = vst [vmem:[#allocation2 + $0x170] sm:$0xff] %v1093
      %1545 = vst [vmem:[#allocation2 + $0x1b8] sm:$0xff] %v1094
      %1546 = vst [vmem:[#allocation2 + $0x200] sm:$0xff] %v1095
      %1547 = vst [vmem:[#allocation2 + $0x248] sm:$0xff] %v1096
      %1548 = vst [vmem:[#allocation2 + $0x290] sm:$0xff] %v1097
      %1549 = vst [vmem:[#allocation2 + $0x2d8] sm:$0xff] %v1098
      %1550 = vst [vmem:[#allocation2 + $0x320] sm:$0xff] %v1099
      %1551 = vst [vmem:[#allocation2 + $0x368] sm:$0xff] %v1100
      %1552 = vst [vmem:[#allocation2 + $0x3b0] sm:$0xff] %v1101
      %1553 = vst [vmem:[#allocation2 + $0x3f8] sm:$0xff] %v1102
      %1554 = vst [vmem:[#allocation2 + $0x440] sm:$0xff] %v1103
      %1555 = vst [vmem:[#allocation2 + $0x10] sm:$0xff] 0
      %1556 = vst [vmem:[#allocation2 + $0x58] sm:$0xff] %v1507
      %1557 = vst [vmem:[#allocation2 + $0xa0] sm:$0xff] %v1508
      %1558 = vst [vmem:[#allocation2 + $0xe8] sm:$0xff] %v1509
      %1559 = vst [vmem:[#allocation2 + $0x130] sm:$0xff] %v1510
      %1560 = vst [vmem:[#allocation2 + $0x178] sm:$0xff] %v1511
      %1561 = vst [vmem:[#allocation2 + $0x1c0] sm:$0xff] %v1512
      %1562 = vst [vmem:[#allocation2 + $0x208] sm:$0xff] %v1513
      %1563 = vst [vmem:[#allocation2 + $0x250] sm:$0xff] %v1514
      %1564 = vst [vmem:[#allocation2 + $0x298] sm:$0xff] %v1515
      %1565 = vst [vmem:[#allocation2 + $0x2e0] sm:$0xff] %v1516
      %1566 = vst [vmem:[#allocation2 + $0x328] sm:$0xff] %v1517
      %1567 = vst [vmem:[#allocation2 + $0x370] sm:$0xff] %v1518
      %1568 = vst [vmem:[#allocation2 + $0x3b8] sm:$0xff] %v1519
      %1569 = vst [vmem:[#allocation2 + $0x400] sm:$0xff] %v1520
      %1570 = vst [vmem:[#allocation2 + $0x448] sm:$0xff] %v1521
      %1571 = vst [vmem:[#allocation2 + $0x18] sm:$0xff] %v1298
      %1572 = vst [vmem:[#allocation2 + $0x60] sm:$0xff] %v1299
      %1573 = vst [vmem:[#allocation2 + $0xa8] sm:$0xff] %v1300
      %1574 = vst [vmem:[#allocation2 + $0xf0] sm:$0xff] %v1301
      %1575 = vst [vmem:[#allocation2 + $0x138] sm:$0xff] %v1302
      %1576 = vst [vmem:[#allocation2 + $0x180] sm:$0xff] %v1303
      %1577 = vst [vmem:[#allocation2 + $0x1c8] sm:$0xff] %v1304
      %1578 = vst [vmem:[#allocation2 + $0x210] sm:$0xff] %v1305
      %1579 = vst [vmem:[#allocation2 + $0x258] sm:$0xff] %v1306
      %1580 = vst [vmem:[#allocation2 + $0x2a0] sm:$0xff] %v1307
      %1581 = vst [vmem:[#allocation2 + $0x2e8] sm:$0xff] %v1308
      %1582 = vst [vmem:[#allocation2 + $0x330] sm:$0xff] %v1309
      %1583 = vst [vmem:[#allocation2 + $0x378] sm:$0xff] %v1310
      %1584 = vst [vmem:[#allocation2 + $0x3c0] sm:$0xff] %v1311
      %1585 = vst [vmem:[#allocation2 + $0x408] sm:$0xff] %v1312
      %1586 = vst [vmem:[#allocation2 + $0x450] sm:$0xff] %v1313
      %1587 = vst [vmem:[#allocation2 + $0x20] sm:$0xff] %v1089
      %1588 = vst [vmem:[#allocation2 + $0x68] sm:$0xff] %v1090
      %1589 = vst [vmem:[#allocation2 + $0xb0] sm:$0xff] %v1091
      %1590 = vst [vmem:[#allocation2 + $0xf8] sm:$0xff] %v1092
      %1591 = vst [vmem:[#allocation2 + $0x140] sm:$0xff] %v1093
      %1592 = vst [vmem:[#allocation2 + $0x188] sm:$0xff] %v1094
      %1593 = vst [vmem:[#allocation2 + $0x1d0] sm:$0xff] %v1095
      %1594 = vst [vmem:[#allocation2 + $0x218] sm:$0xff] %v1096
      %1595 = vst [vmem:[#allocation2 + $0x260] sm:$0xff] %v1097
      %1596 = vst [vmem:[#allocation2 + $0x2a8] sm:$0xff] %v1098
      %1597 = vst [vmem:[#allocation2 + $0x2f0] sm:$0xff] %v1099
      %1598 = vst [vmem:[#allocation2 + $0x338] sm:$0xff] %v1100
      %1599 = vst [vmem:[#allocation2 + $0x380] sm:$0xff] %v1101
      %1600 = vst [vmem:[#allocation2 + $0x3c8] sm:$0xff] %v1102
      %1601 = vst [vmem:[#allocation2 + $0x410] sm:$0xff] %v1103
      %1602 = vst [vmem:[#allocation2 + $0x458] sm:$0xff] %v1104
      %1603 = vst [vmem:[#allocation2 + $0x28] sm:$0xff] %v1507
      %1604 = vst [vmem:[#allocation2 + $0x70] sm:$0xff] %v1508
      %1605 = vst [vmem:[#allocation2 + $0xb8] sm:$0xff] %v1509
      %1606 = vst [vmem:[#allocation2 + $0x100] sm:$0xff] %v1510
      %1607 = vst [vmem:[#allocation2 + $0x148] sm:$0xff] %v1511
      %1608 = vst [vmem:[#allocation2 + $0x190] sm:$0xff] %v1512
      %1609 = vst [vmem:[#allocation2 + $0x1d8] sm:$0xff] %v1513
      %1610 = vst [vmem:[#allocation2 + $0x220] sm:$0xff] %v1514
      %1611 = vst [vmem:[#allocation2 + $0x268] sm:$0xff] %v1515
      %1612 = vst [vmem:[#allocation2 + $0x2b0] sm:$0xff] %v1516
      %1613 = vst [vmem:[#allocation2 + $0x2f8] sm:$0xff] %v1517
      %1614 = vst [vmem:[#allocation2 + $0x340] sm:$0xff] %v1518
      %1615 = vst [vmem:[#allocation2 + $0x388] sm:$0xff] %v1519
      %1616 = vst [vmem:[#allocation2 + $0x3d0] sm:$0xff] %v1520
      %1617 = vst [vmem:[#allocation2 + $0x418] sm:$0xff] %v1521
      %1618 = vst [vmem:[#allocation2 + $0x460] sm:$0xff] %v1522
      %1619 = vst [vmem:[#allocation2 + $0x30] sm:$0xff] %v1299
      %1620 = vst [vmem:[#allocation2 + $0x78] sm:$0xff] %v1300
      %1621 = vst [vmem:[#allocation2 + $0xc0] sm:$0xff] %v1301
      %1622 = vst [vmem:[#allocation2 + $0x108] sm:$0xff] %v1302
      %1623 = vst [vmem:[#allocation2 + $0x150] sm:$0xff] %v1303
      %1624 = vst [vmem:[#allocation2 + $0x198] sm:$0xff] %v1304
      %1625 = vst [vmem:[#allocation2 + $0x1e0] sm:$0xff] %v1305
      %1626 = vst [vmem:[#allocation2 + $0x228] sm:$0xff] %v1306
      %1627 = vst [vmem:[#allocation2 + $0x270] sm:$0xff] %v1307
      %1628 = vst [vmem:[#allocation2 + $0x2b8] sm:$0xff] %v1308
      %1629 = vst [vmem:[#allocation2 + $0x300] sm:$0xff] %v1309
      %1630 = vst [vmem:[#allocation2 + $0x348] sm:$0xff] %v1310
      %1631 = vst [vmem:[#allocation2 + $0x390] sm:$0xff] %v1311
      %1632 = vst [vmem:[#allocation2 + $0x3d8] sm:$0xff] %v1312
      %1633 = vst [vmem:[#allocation2 + $0x420] sm:$0xff] %v1313
      %1634 = vst [vmem:[#allocation2 + $0x468] sm:$0xff] 0
      %1635 = vst [vmem:[#allocation2 + $0x38] sm:$0xff] %v1090
      %1636 = vst [vmem:[#allocation2 + $0x80] sm:$0xff] %v1091
      %1637 = vst [vmem:[#allocation2 + $0xc8] sm:$0xff] %v1092
      %1638 = vst [vmem:[#allocation2 + $0x110] sm:$0xff] %v1093
      %1639 = vst [vmem:[#allocation2 + $0x158] sm:$0xff] %v1094
      %1640 = vst [vmem:[#allocation2 + $0x1a0] sm:$0xff] %v1095
      %1641 = vst [vmem:[#allocation2 + $0x1e8] sm:$0xff] %v1096
      %1642 = vst [vmem:[#allocation2 + $0x230] sm:$0xff] %v1097
      %1643 = vst [vmem:[#allocation2 + $0x278] sm:$0xff] %v1098
      %1644 = vst [vmem:[#allocation2 + $0x2c0] sm:$0xff] %v1099
      %1645 = vst [vmem:[#allocation2 + $0x308] sm:$0xff] %v1100
      %1646 = vst [vmem:[#allocation2 + $0x350] sm:$0xff] %v1101
      %1647 = vst [vmem:[#allocation2 + $0x398] sm:$0xff] %v1102
      %1648 = vst [vmem:[#allocation2 + $0x3e0] sm:$0xff] %v1103
      %1649 = vst [vmem:[#allocation2 + $0x428] sm:$0xff] %v1104
      %1650 = vst [vmem:[#allocation2 + $0x470] sm:$0xff] 0
      %1651 = vst [vmem:[#allocation2 + $0x40] sm:$0xff] %v1508
      %1652 = vst [vmem:[#allocation2 + $0x88] sm:$0xff] %v1509
      %1653 = vst [vmem:[#allocation2 + $0xd0] sm:$0xff] %v1510
      %1654 = vst [vmem:[#allocation2 + $0x118] sm:$0xff] %v1511
      %1655 = vst [vmem:[#allocation2 + $0x160] sm:$0xff] %v1512
      %1656 = vst [vmem:[#allocation2 + $0x1a8] sm:$0xff] %v1513
      %1657 = vst [vmem:[#allocation2 + $0x1f0] sm:$0xff] %v1514
      %1658 = vst [vmem:[#allocation2 + $0x238] sm:$0xff] %v1515
      %1659 = vst [vmem:[#allocation2 + $0x280] sm:$0xff] %v1516
      %1660 = vst [vmem:[#allocation2 + $0x2c8] sm:$0xff] %v1517
      %1661 = vst [vmem:[#allocation2 + $0x310] sm:$0xff] %v1518
      %1662 = vst [vmem:[#allocation2 + $0x358] sm:$0xff] %v1519
      %1663 = vst [vmem:[#allocation2 + $0x3a0] sm:$0xff] %v1520
      %1664 = vst [vmem:[#allocation2 + $0x3e8] sm:$0xff] %v1521
      %1665 = vst [vmem:[#allocation2 + $0x430] sm:$0xff] %v1522
      %1666 = vst [vmem:[#allocation2 + $0x478] sm:$0xff] 0
      %v1667 = vld [vmem:[#allocation2] sm:$0xff]
      %v1668 = vld [vmem:[#allocation2 + $0x8] sm:$0xff]
      %v1669 = vld [vmem:[#allocation2 + $0x10] sm:$0xff]
      %v1670 = vld [vmem:[#allocation2 + $0x18] sm:$0xff]
      %v1671 = vld [vmem:[#allocation2 + $0x20] sm:$0xff]
      %v1672 = vld [vmem:[#allocation2 + $0x28] sm:$0xff]
      %v1673 = vld [vmem:[#allocation2 + $0x30] sm:$0xff]
      %v1674 = vld [vmem:[#allocation2 + $0x38] sm:$0xff]
      %v1675 = vld [vmem:[#allocation2 + $0x40] sm:$0xff]
      %v1676 = vld [vmem:[#allocation2 + $0x48] sm:$0xff]
      %v1677 = vld [vmem:[#allocation2 + $0x50] sm:$0xff]
      %v1678 = vld [vmem:[#allocation2 + $0x58] sm:$0xff]
      %v1679 = vld [vmem:[#allocation2 + $0x60] sm:$0xff]
      %v1680 = vld [vmem:[#allocation2 + $0x68] sm:$0xff]
      %v1681 = vld [vmem:[#allocation2 + $0x70] sm:$0xff]
      %v1682 = vld [vmem:[#allocation2 + $0x78] sm:$0xff]
      %v1683 = vld [vmem:[#allocation2 + $0x80] sm:$0xff]
      %v1684 = vld [vmem:[#allocation2 + $0x88] sm:$0xff]
      %v1685 = vld [vmem:[#allocation2 + $0x90] sm:$0xff]
      %v1686 = vld [vmem:[#allocation2 + $0x98] sm:$0xff]
      %v1687 = vld [vmem:[#allocation2 + $0xa0] sm:$0xff]
      %v1688 = vld [vmem:[#allocation2 + $0xa8] sm:$0xff]
      %v1689 = vld [vmem:[#allocation2 + $0xb0] sm:$0xff]
      %v1690 = vld [vmem:[#allocation2 + $0xb8] sm:$0xff]
      %v1691 = vld [vmem:[#allocation2 + $0xc0] sm:$0xff]
      %v1692 = vld [vmem:[#allocation2 + $0xc8] sm:$0xff]
      %v1693 = vld [vmem:[#allocation2 + $0xd0] sm:$0xff]
      %v1694 = vld [vmem:[#allocation2 + $0xd8] sm:$0xff]
      %v1695 = vld [vmem:[#allocation2 + $0xe0] sm:$0xff]
      %v1696 = vld [vmem:[#allocation2 + $0xe8] sm:$0xff]
      %v1697 = vld [vmem:[#allocation2 + $0xf0] sm:$0xff]
      %v1698 = vld [vmem:[#allocation2 + $0xf8] sm:$0xff]
      %v1699 = vld [vmem:[#allocation2 + $0x100] sm:$0xff]
      %v1700 = vld [vmem:[#allocation2 + $0x108] sm:$0xff]
      %v1701 = vld [vmem:[#allocation2 + $0x110] sm:$0xff]
      %v1702 = vld [vmem:[#allocation2 + $0x118] sm:$0xff]
      %v1703 = vld [vmem:[#allocation2 + $0x120] sm:$0xff]
      %v1704 = vld [vmem:[#allocation2 + $0x128] sm:$0xff]
      %v1705 = vld [vmem:[#allocation2 + $0x130] sm:$0xff]
      %v1706 = vld [vmem:[#allocation2 + $0x138] sm:$0xff]
      %v1707 = vld [vmem:[#allocation2 + $0x140] sm:$0xff]
      %v1708 = vld [vmem:[#allocation2 + $0x148] sm:$0xff]
      %v1709 = vld [vmem:[#allocation2 + $0x150] sm:$0xff]
      %v1710 = vld [vmem:[#allocation2 + $0x158] sm:$0xff]
      %v1711 = vld [vmem:[#allocation2 + $0x160] sm:$0xff]
      %v1712 = vld [vmem:[#allocation2 + $0x168] sm:$0xff]
      %v1713 = vld [vmem:[#allocation2 + $0x170] sm:$0xff]
      %v1714 = vld [vmem:[#allocation2 + $0x178] sm:$0xff]
      %v1715 = vld [vmem:[#allocation2 + $0x180] sm:$0xff]
      %v1716 = vld [vmem:[#allocation2 + $0x188] sm:$0xff]
      %v1717 = vld [vmem:[#allocation2 + $0x190] sm:$0xff]
      %v1718 = vld [vmem:[#allocation2 + $0x198] sm:$0xff]
      %v1719 = vld [vmem:[#allocation2 + $0x1a0] sm:$0xff]
      %v1720 = vld [vmem:[#allocation2 + $0x1a8] sm:$0xff]
      %v1721 = vld [vmem:[#allocation2 + $0x1b0] sm:$0xff]
      %v1722 = vld [vmem:[#allocation2 + $0x1b8] sm:$0xff]
      %v1723 = vld [vmem:[#allocation2 + $0x1c0] sm:$0xff]
      %v1724 = vld [vmem:[#allocation2 + $0x1c8] sm:$0xff]
      %v1725 = vld [vmem:[#allocation2 + $0x1d0] sm:$0xff]
      %v1726 = vld [vmem:[#allocation2 + $0x1d8] sm:$0xff]
      %v1727 = vld [vmem:[#allocation2 + $0x1e0] sm:$0xff]
      %v1728 = vld [vmem:[#allocation2 + $0x1e8] sm:$0xff]
      %v1729 = vld [vmem:[#allocation2 + $0x1f0] sm:$0xff]
      %v1730 = vld [vmem:[#allocation2 + $0x1f8] sm:$0xff]
      %v1731 = vld [vmem:[#allocation2 + $0x200] sm:$0xff]
      %v1732 = vld [vmem:[#allocation2 + $0x208] sm:$0xff]
      %v1733 = vld [vmem:[#allocation2 + $0x210] sm:$0xff]
      %v1734 = vld [vmem:[#allocation2 + $0x218] sm:$0xff]
      %v1735 = vld [vmem:[#allocation2 + $0x220] sm:$0xff]
      %v1736 = vld [vmem:[#allocation2 + $0x228] sm:$0xff]
      %v1737 = vld [vmem:[#allocation2 + $0x230] sm:$0xff]
      %v1738 = vld [vmem:[#allocation2 + $0x238] sm:$0xff]
      %v1739 = vld [vmem:[#allocation2 + $0x240] sm:$0xff]
      %v1740 = vld [vmem:[#allocation2 + $0x248] sm:$0xff]
      %v1741 = vld [vmem:[#allocation2 + $0x250] sm:$0xff]
      %v1742 = vld [vmem:[#allocation2 + $0x258] sm:$0xff]
      %v1743 = vld [vmem:[#allocation2 + $0x260] sm:$0xff]
      %v1744 = vld [vmem:[#allocation2 + $0x268] sm:$0xff]
      %v1745 = vld [vmem:[#allocation2 + $0x270] sm:$0xff]
      %v1746 = vld [vmem:[#allocation2 + $0x278] sm:$0xff]
      %v1747 = vld [vmem:[#allocation2 + $0x280] sm:$0xff]
      %v1748 = vld [vmem:[#allocation2 + $0x288] sm:$0xff]
      %v1749 = vld [vmem:[#allocation2 + $0x290] sm:$0xff]
      %v1750 = vld [vmem:[#allocation2 + $0x298] sm:$0xff]
      %v1751 = vld [vmem:[#allocation2 + $0x2a0] sm:$0xff]
      %v1752 = vld [vmem:[#allocation2 + $0x2a8] sm:$0xff]
      %v1753 = vld [vmem:[#allocation2 + $0x2b0] sm:$0xff]
      %v1754 = vld [vmem:[#allocation2 + $0x2b8] sm:$0xff]
      %v1755 = vld [vmem:[#allocation2 + $0x2c0] sm:$0xff]
      %v1756 = vld [vmem:[#allocation2 + $0x2c8] sm:$0xff]
      %v1757 = vld [vmem:[#allocation2 + $0x2d0] sm:$0xff]
      %v1758 = vld [vmem:[#allocation2 + $0x2d8] sm:$0xff]
      %v1759 = vld [vmem:[#allocation2 + $0x2e0] sm:$0xff]
      %v1760 = vld [vmem:[#allocation2 + $0x2e8] sm:$0xff]
      %v1761 = vld [vmem:[#allocation2 + $0x2f0] sm:$0xff]
      %v1762 = vld [vmem:[#allocation2 + $0x2f8] sm:$0xff]
      %v1763 = vld [vmem:[#allocation2 + $0x300] sm:$0xff]
      %v1764 = vld [vmem:[#allocation2 + $0x308] sm:$0xff]
      %v1765 = vld [vmem:[#allocation2 + $0x310] sm:$0xff]
      %v1766 = vld [vmem:[#allocation2 + $0x318] sm:$0xff]
      %v1767 = vld [vmem:[#allocation2 + $0x320] sm:$0xff]
      %v1768 = vld [vmem:[#allocation2 + $0x328] sm:$0xff]
      %v1769 = vld [vmem:[#allocation2 + $0x330] sm:$0xff]
      %v1770 = vld [vmem:[#allocation2 + $0x338] sm:$0xff]
      %v1771 = vld [vmem:[#allocation2 + $0x340] sm:$0xff]
      %v1772 = vld [vmem:[#allocation2 + $0x348] sm:$0xff]
      %v1773 = vld [vmem:[#allocation2 + $0x350] sm:$0xff]
      %v1774 = vld [vmem:[#allocation2 + $0x358] sm:$0xff]
      %v1775 = vld [vmem:[#allocation2 + $0x360] sm:$0xff]
      %v1776 = vld [vmem:[#allocation2 + $0x368] sm:$0xff]
      %v1777 = vld [vmem:[#allocation2 + $0x370] sm:$0xff]
      %v1778 = vld [vmem:[#allocation2 + $0x378] sm:$0xff]
      %v1779 = vld [vmem:[#allocation2 + $0x380] sm:$0xff]
      %v1780 = vld [vmem:[#allocation2 + $0x388] sm:$0xff]
      %v1781 = vld [vmem:[#allocation2 + $0x390] sm:$0xff]
      %v1782 = vld [vmem:[#allocation2 + $0x398] sm:$0xff]
      %v1783 = vld [vmem:[#allocation2 + $0x3a0] sm:$0xff]
      %v1784 = vld [vmem:[#allocation2 + $0x3a8] sm:$0xff]
      %v1785 = vld [vmem:[#allocation2 + $0x3b0] sm:$0xff]
      %v1786 = vld [vmem:[#allocation2 + $0x3b8] sm:$0xff]
      %v1787 = vld [vmem:[#allocation2 + $0x3c0] sm:$0xff]
      %v1788 = vld [vmem:[#allocation2 + $0x3c8] sm:$0xff]
      %v1789 = vld [vmem:[#allocation2 + $0x3d0] sm:$0xff]
      %v1790 = vld [vmem:[#allocation2 + $0x3d8] sm:$0xff]
      %v1791 = vld [vmem:[#allocation2 + $0x3e0] sm:$0xff]
      %v1792 = vld [vmem:[#allocation2 + $0x3e8] sm:$0xff]
      %v1793 = vld [vmem:[#allocation2 + $0x3f0] sm:$0xff]
      %v1794 = vld [vmem:[#allocation2 + $0x3f8] sm:$0xff]
      %v1795 = vld [vmem:[#allocation2 + $0x400] sm:$0xff]
      %v1796 = vld [vmem:[#allocation2 + $0x408] sm:$0xff]
      %v1797 = vld [vmem:[#allocation2 + $0x410] sm:$0xff]
      %v1798 = vld [vmem:[#allocation2 + $0x418] sm:$0xff]
      %v1799 = vld [vmem:[#allocation2 + $0x420] sm:$0xff]
      %v1800 = vld [vmem:[#allocation2 + $0x428] sm:$0xff]
      %v1801 = vld [vmem:[#allocation2 + $0x430] sm:$0xff]
      %v1802 = vld [vmem:[#allocation2 + $0x438] sm:$0xff]
      %v1803 = vld [vmem:[#allocation2 + $0x440] sm:$0xff]
      %v1804 = vld [vmem:[#allocation2 + $0x448] sm:$0xff]
      %v1805 = vld [vmem:[#allocation2 + $0x450] sm:$0xff]
      %v1806 = vld [vmem:[#allocation2 + $0x458] sm:$0xff]
      %v1807 = vld [vmem:[#allocation2 + $0x460] sm:$0xff]
      %v1808 = vld [vmem:[#allocation2 + $0x468] sm:$0xff]
      %v1809 = vld [vmem:[#allocation2 + $0x470] sm:$0xff]
      %v1810 = vld [vmem:[#allocation2 + $0x478] sm:$0xff]
      %v1811 = vld [vmem:[%s3] sm:$0xf]
      %v1812 = vld [vmem:[%s3 + $0x4] sm:$0xf]
      %v1813 = vld [vmem:[%s3 + $0x8] sm:$0xf]
      %v1814 = vld [vmem:[%s3 + $0xc] sm:$0xf]
      %v1815 = vld [vmem:[%s3 + $0x10] sm:$0xf]
      %v1816 = vld [vmem:[%s3 + $0x14] sm:$0xf]
      %v1817 = vld [vmem:[%s3 + $0x18] sm:$0xf]
      %v1818 = vld [vmem:[%s3 + $0x1c] sm:$0xf]
      %v1819 = vld [vmem:[%s3 + $0x20] sm:$0xf]
      %v1820 = vld [vmem:[%s3 + $0x24] sm:$0xf]
      %v1821 = vld [vmem:[%s3 + $0x28] sm:$0xf]
      %v1822 = vld [vmem:[%s3 + $0x2c] sm:$0xf]
      %v1823 = vld [vmem:[%s3 + $0x30] sm:$0xf]
      %v1824 = vld [vmem:[%s3 + $0x34] sm:$0xf]
      %v1825 = vld [vmem:[%s3 + $0x38] sm:$0xf]
      %v1826 = vld [vmem:[%s3 + $0x3c] sm:$0xf]
      %v1827 = vld [vmem:[%s3 + $0x40] sm:$0xf]
      %v1828 = vld [vmem:[%s3 + $0x44] sm:$0xf]
      %v1829 = vld [vmem:[%s3 + $0x48] sm:$0xf]
      %v1830 = vld [vmem:[%s3 + $0x4c] sm:$0xf]
      %v1831 = vld [vmem:[%s3 + $0x50] sm:$0xf]
      %v1832 = vld [vmem:[%s3 + $0x54] sm:$0xf]
      %v1833 = vld [vmem:[%s3 + $0x58] sm:$0xf]
      %v1834 = vld [vmem:[%s3 + $0x5c] sm:$0xf]
      %v1835 = vld [vmem:[%s3 + $0x60] sm:$0xf]
      %v1836 = vld [vmem:[%s3 + $0x64] sm:$0xf]
      %v1837 = vld [vmem:[%s3 + $0x68] sm:$0xf]
      %v1838 = vld [vmem:[%s3 + $0x6c] sm:$0xf]
      %v1839 = vld [vmem:[%s3 + $0x70] sm:$0xf]
      %v1840 = vld [vmem:[%s3 + $0x74] sm:$0xf]
      %v1841 = vld [vmem:[%s3 + $0x78] sm:$0xf]
      %v1842 = vld [vmem:[%s3 + $0x7c] sm:$0xf]
      %v1843 = vld [vmem:[%s3 + $0x80] sm:$0xf]
      %v1844 = vld [vmem:[%s3 + $0x84] sm:$0xf]
      %v1845 = vld [vmem:[%s3 + $0x88] sm:$0xf]
      %v1846 = vld [vmem:[%s3 + $0x8c] sm:$0xf]
      %v1847 = vld [vmem:[%s3 + $0x90] sm:$0xf]
      %v1848 = vld [vmem:[%s3 + $0x94] sm:$0xf]
      %v1849 = vld [vmem:[%s3 + $0x98] sm:$0xf]
      %v1850 = vld [vmem:[%s3 + $0x9c] sm:$0xf]
      %v1851 = vld [vmem:[%s3 + $0xa0] sm:$0xf]
      %v1852 = vld [vmem:[%s3 + $0xa4] sm:$0xf]
      %v1853 = vld [vmem:[%s3 + $0xa8] sm:$0xf]
      %v1854 = vld [vmem:[%s3 + $0xac] sm:$0xf]
      %v1855 = vld [vmem:[%s3 + $0xb0] sm:$0xf]
      %v1856 = vld [vmem:[%s3 + $0xb4] sm:$0xf]
      %v1857 = vld [vmem:[%s3 + $0xb8] sm:$0xf]
      %v1858 = vld [vmem:[%s3 + $0xbc] sm:$0xf]
      %v1859 = vld [vmem:[%s3 + $0xc0] sm:$0xf]
      %v1860 = vld [vmem:[%s3 + $0xc4] sm:$0xf]
      %v1861 = vld [vmem:[%s3 + $0xc8] sm:$0xf]
      %v1862 = vld [vmem:[%s3 + $0xcc] sm:$0xf]
      %v1863 = vld [vmem:[%s3 + $0xd0] sm:$0xf]
      %v1864 = vld [vmem:[%s3 + $0xd4] sm:$0xf]
      %v1865 = vld [vmem:[%s3 + $0xd8] sm:$0xf]
      %v1866 = vld [vmem:[%s3 + $0xdc] sm:$0xf]
      %v1867 = vld [vmem:[%s3 + $0xe0] sm:$0xf]
      %v1868 = vld [vmem:[%s3 + $0xe4] sm:$0xf]
      %v1869 = vld [vmem:[%s3 + $0xe8] sm:$0xf]
      %v1870 = vld [vmem:[%s3 + $0xec] sm:$0xf]
      %v1871 = vld [vmem:[%s3 + $0xf0] sm:$0xf]
      %v1872 = vld [vmem:[%s3 + $0xf4] sm:$0xf]
      %v1873 = vld [vmem:[%s3 + $0xf8] sm:$0xf]
      %v1874 = vld [vmem:[%s3 + $0xfc] sm:$0xf]
      %v1875 = vld [vmem:[%s3 + $0x100] sm:$0xf]
      %v1876 = vld [vmem:[%s3 + $0x104] sm:$0xf]
      %v1877 = vld [vmem:[%s3 + $0x108] sm:$0xf]
      %v1878 = vld [vmem:[%s3 + $0x10c] sm:$0xf]
      %v1879 = vld [vmem:[%s3 + $0x110] sm:$0xf]
      %v1880 = vld [vmem:[%s3 + $0x114] sm:$0xf]
      %v1881 = vld [vmem:[%s3 + $0x118] sm:$0xf]
      %v1882 = vld [vmem:[%s3 + $0x11c] sm:$0xf]
      %v1883 = vld [vmem:[%s3 + $0x120] sm:$0xf]
      %v1884 = vld [vmem:[%s3 + $0x124] sm:$0xf]
      %v1885 = vld [vmem:[%s3 + $0x128] sm:$0xf]
      %v1886 = vld [vmem:[%s3 + $0x12c] sm:$0xf]
      %v1887 = vld [vmem:[%s3 + $0x130] sm:$0xf]
      %v1888 = vld [vmem:[%s3 + $0x134] sm:$0xf]
      %v1889 = vld [vmem:[%s3 + $0x138] sm:$0xf]
      %v1890 = vld [vmem:[%s3 + $0x13c] sm:$0xf]
      %v1891 = vld [vmem:[%s3 + $0x140] sm:$0xf]
      %v1892 = vld [vmem:[%s3 + $0x144] sm:$0xf]
      %v1893 = vld [vmem:[%s3 + $0x148] sm:$0xf]
      %v1894 = vld [vmem:[%s3 + $0x14c] sm:$0xf]
      %v1895 = vld [vmem:[%s3 + $0x150] sm:$0xf]
      %v1896 = vld [vmem:[%s3 + $0x154] sm:$0xf]
      %v1897 = vld [vmem:[%s3 + $0x158] sm:$0xf]
      %v1898 = vld [vmem:[%s3 + $0x15c] sm:$0xf]
      %v1899 = vld [vmem:[%s3 + $0x160] sm:$0xf]
      %v1900 = vld [vmem:[%s3 + $0x164] sm:$0xf]
      %v1901 = vld [vmem:[%s3 + $0x168] sm:$0xf]
      %v1902 = vld [vmem:[%s3 + $0x16c] sm:$0xf]
      %v1903 = vld [vmem:[%s3 + $0x170] sm:$0xf]
      %v1904 = vld [vmem:[%s3 + $0x174] sm:$0xf]
      %v1905 = vld [vmem:[%s3 + $0x178] sm:$0xf]
      %v1906 = vld [vmem:[%s3 + $0x17c] sm:$0xf]
      %v1907 = vld [vmem:[%s3 + $0x180] sm:$0xf]
      %v1908 = vld [vmem:[%s3 + $0x184] sm:$0xf]
      %v1909 = vld [vmem:[%s3 + $0x188] sm:$0xf]
      %v1910 = vld [vmem:[%s3 + $0x18c] sm:$0xf]
      %v1911 = vld [vmem:[%s3 + $0x190] sm:$0xf]
      %v1912 = vld [vmem:[%s3 + $0x194] sm:$0xf]
      %v1913 = vld [vmem:[%s3 + $0x198] sm:$0xf]
      %v1914 = vld [vmem:[%s3 + $0x19c] sm:$0xf]
      %v1915 = vld [vmem:[%s3 + $0x1a0] sm:$0xf]
      %v1916 = vld [vmem:[%s3 + $0x1a4] sm:$0xf]
      %v1917 = vld [vmem:[%s3 + $0x1a8] sm:$0xf]
      %v1918 = vld [vmem:[%s3 + $0x1ac] sm:$0xf]
      %v1919 = vld [vmem:[%s3 + $0x1b0] sm:$0xf]
      %v1920 = vld [vmem:[%s3 + $0x1b4] sm:$0xf]
      %v1921 = vld [vmem:[%s3 + $0x1b8] sm:$0xf]
      %v1922 = vld [vmem:[%s3 + $0x1bc] sm:$0xf]
      %v1923 = vld [vmem:[%s3 + $0x1c0] sm:$0xf]
      %v1924 = vld [vmem:[%s3 + $0x1c4] sm:$0xf]
      %v1925 = vld [vmem:[%s3 + $0x1c8] sm:$0xf]
      %v1926 = vld [vmem:[%s3 + $0x1cc] sm:$0xf]
      %v1927 = vld [vmem:[%s3 + $0x1d0] sm:$0xf]
      %v1928 = vld [vmem:[%s3 + $0x1d4] sm:$0xf]
      %v1929 = vld [vmem:[%s3 + $0x1d8] sm:$0xf]
      %v1930 = vld [vmem:[%s3 + $0x1dc] sm:$0xf]
      %v1931 = vld [vmem:[%s3 + $0x1e0] sm:$0xf]
      %v1932 = vld [vmem:[%s3 + $0x1e4] sm:$0xf]
      %v1933 = vld [vmem:[%s3 + $0x1e8] sm:$0xf]
      %v1934 = vld [vmem:[%s3 + $0x1ec] sm:$0xf]
      %v1935 = vld [vmem:[%s3 + $0x1f0] sm:$0xf]
      %v1936 = vld [vmem:[%s3 + $0x1f4] sm:$0xf]
      %v1937 = vld [vmem:[%s3 + $0x1f8] sm:$0xf]
      %v1938 = vld [vmem:[%s3 + $0x1fc] sm:$0xf]
      %v1939 = vld [vmem:[%s3 + $0x200] sm:$0xf]
      %v1940 = vld [vmem:[%s3 + $0x204] sm:$0xf]
      %v1941 = vld [vmem:[%s3 + $0x208] sm:$0xf]
      %v1942 = vld [vmem:[%s3 + $0x20c] sm:$0xf]
      %v1943 = vld [vmem:[%s3 + $0x210] sm:$0xf]
      %v1944 = vld [vmem:[%s3 + $0x214] sm:$0xf]
      %v1945 = vld [vmem:[%s3 + $0x218] sm:$0xf]
      %v1946 = vld [vmem:[%s3 + $0x21c] sm:$0xf]
      %v1947 = vld [vmem:[%s3 + $0x220] sm:$0xf]
      %v1948 = vld [vmem:[%s3 + $0x224] sm:$0xf]
      %v1949 = vld [vmem:[%s3 + $0x228] sm:$0xf]
      %v1950 = vld [vmem:[%s3 + $0x22c] sm:$0xf]
      %v1951 = vld [vmem:[%s3 + $0x230] sm:$0xf]
      %v1952 = vld [vmem:[%s3 + $0x234] sm:$0xf]
      %v1953 = vld [vmem:[%s3 + $0x238] sm:$0xf]
      %v1954 = vld [vmem:[%s3 + $0x23c] sm:$0xf]
      %v1955 = vld [vmem:[%s4] sm:$0x1]
      %v1957 = vlaneseq
      %v1958 = vshrl.u32 %v1957, 7
      %v1959 = vsub.s32 0, %v1958
      %v1960 = vrot.slane %v1955, %v1959
      %v2106 = vunpack.c.l.b16 %v1811
      %v2107 = vunpack.c.l.b16 %v1812
      %v2108 = vunpack.c.l.b16 %v1813
      %v2109 = vunpack.c.l.b16 %v1814
      %v2110 = vunpack.c.l.b16 %v1815
      %v2111 = vunpack.c.l.b16 %v1816
      %v2112 = vunpack.c.l.b16 %v1817
      %v2113 = vunpack.c.l.b16 %v1818
      %v2114 = vunpack.c.l.b16 %v1819
      %v2115 = vunpack.c.l.b16 %v1820
      %v2116 = vunpack.c.l.b16 %v1821
      %v2117 = vunpack.c.l.b16 %v1822
      %v2118 = vunpack.c.l.b16 %v1823
      %v2119 = vunpack.c.l.b16 %v1824
      %v2120 = vunpack.c.l.b16 %v1825
      %v2121 = vunpack.c.l.b16 %v1826
      %v2122 = vunpack.c.l.b16 %v1827
      %v2123 = vunpack.c.l.b16 %v1828
      %v2124 = vunpack.c.l.b16 %v1829
      %v2125 = vunpack.c.l.b16 %v1830
      %v2126 = vunpack.c.l.b16 %v1831
      %v2127 = vunpack.c.l.b16 %v1832
      %v2128 = vunpack.c.l.b16 %v1833
      %v2129 = vunpack.c.l.b16 %v1834
      %v2130 = vunpack.c.l.b16 %v1835
      %v2131 = vunpack.c.l.b16 %v1836
      %v2132 = vunpack.c.l.b16 %v1837
      %v2133 = vunpack.c.l.b16 %v1838
      %v2134 = vunpack.c.l.b16 %v1839
      %v2135 = vunpack.c.l.b16 %v1840
      %v2136 = vunpack.c.l.b16 %v1841
      %v2137 = vunpack.c.l.b16 %v1842
      %v2138 = vunpack.c.l.b16 %v1843
      %v2139 = vunpack.c.l.b16 %v1844
      %v2140 = vunpack.c.l.b16 %v1845
      %v2141 = vunpack.c.l.b16 %v1846
      %v2142 = vunpack.c.l.b16 %v1847
      %v2143 = vunpack.c.l.b16 %v1848
      %v2144 = vunpack.c.l.b16 %v1849
      %v2145 = vunpack.c.l.b16 %v1850
      %v2146 = vunpack.c.l.b16 %v1851
      %v2147 = vunpack.c.l.b16 %v1852
      %v2148 = vunpack.c.l.b16 %v1853
      %v2149 = vunpack.c.l.b16 %v1854
      %v2150 = vunpack.c.l.b16 %v1855
      %v2151 = vunpack.c.l.b16 %v1856
      %v2152 = vunpack.c.l.b16 %v1857
      %v2153 = vunpack.c.l.b16 %v1858
      %v2154 = vunpack.c.l.b16 %v1859
      %v2155 = vunpack.c.l.b16 %v1860
      %v2156 = vunpack.c.l.b16 %v1861
      %v2157 = vunpack.c.l.b16 %v1862
      %v2158 = vunpack.c.l.b16 %v1863
      %v2159 = vunpack.c.l.b16 %v1864
      %v2160 = vunpack.c.l.b16 %v1865
      %v2161 = vunpack.c.l.b16 %v1866
      %v2162 = vunpack.c.l.b16 %v1867
      %v2163 = vunpack.c.l.b16 %v1868
      %v2164 = vunpack.c.l.b16 %v1869
      %v2165 = vunpack.c.l.b16 %v1870
      %v2166 = vunpack.c.l.b16 %v1871
      %v2167 = vunpack.c.l.b16 %v1872
      %v2168 = vunpack.c.l.b16 %v1873
      %v2169 = vunpack.c.l.b16 %v1874
      %v2170 = vunpack.c.l.b16 %v1875
      %v2171 = vunpack.c.l.b16 %v1876
      %v2172 = vunpack.c.l.b16 %v1877
      %v2173 = vunpack.c.l.b16 %v1878
      %v2174 = vunpack.c.l.b16 %v1879
      %v2175 = vunpack.c.l.b16 %v1880
      %v2176 = vunpack.c.l.b16 %v1881
      %v2177 = vunpack.c.l.b16 %v1882
      %v2178 = vunpack.c.l.b16 %v1883
      %v2179 = vunpack.c.l.b16 %v1884
      %v2180 = vunpack.c.l.b16 %v1885
      %v2181 = vunpack.c.l.b16 %v1886
      %v2182 = vunpack.c.l.b16 %v1887
      %v2183 = vunpack.c.l.b16 %v1888
      %v2184 = vunpack.c.l.b16 %v1889
      %v2185 = vunpack.c.l.b16 %v1890
      %v2186 = vunpack.c.l.b16 %v1891
      %v2187 = vunpack.c.l.b16 %v1892
      %v2188 = vunpack.c.l.b16 %v1893
      %v2189 = vunpack.c.l.b16 %v1894
      %v2190 = vunpack.c.l.b16 %v1895
      %v2191 = vunpack.c.l.b16 %v1896
      %v2192 = vunpack.c.l.b16 %v1897
      %v2193 = vunpack.c.l.b16 %v1898
      %v2194 = vunpack.c.l.b16 %v1899
      %v2195 = vunpack.c.l.b16 %v1900
      %v2196 = vunpack.c.l.b16 %v1901
      %v2197 = vunpack.c.l.b16 %v1902
      %v2198 = vunpack.c.l.b16 %v1903
      %v2199 = vunpack.c.l.b16 %v1904
      %v2200 = vunpack.c.l.b16 %v1905
      %v2201 = vunpack.c.l.b16 %v1906
      %v2202 = vunpack.c.l.b16 %v1907
      %v2203 = vunpack.c.l.b16 %v1908
      %v2204 = vunpack.c.l.b16 %v1909
      %v2205 = vunpack.c.l.b16 %v1910
      %v2206 = vunpack.c.l.b16 %v1911
      %v2207 = vunpack.c.l.b16 %v1912
      %v2208 = vunpack.c.l.b16 %v1913
      %v2209 = vunpack.c.l.b16 %v1914
      %v2210 = vunpack.c.l.b16 %v1915
      %v2211 = vunpack.c.l.b16 %v1916
      %v2212 = vunpack.c.l.b16 %v1917
      %v2213 = vunpack.c.l.b16 %v1918
      %v2214 = vunpack.c.l.b16 %v1919
      %v2215 = vunpack.c.l.b16 %v1920
      %v2216 = vunpack.c.l.b16 %v1921
      %v2217 = vunpack.c.l.b16 %v1922
      %v2218 = vunpack.c.l.b16 %v1923
      %v2219 = vunpack.c.l.b16 %v1924
      %v2220 = vunpack.c.l.b16 %v1925
      %v2221 = vunpack.c.l.b16 %v1926
      %v2222 = vunpack.c.l.b16 %v1927
      %v2223 = vunpack.c.l.b16 %v1928
      %v2224 = vunpack.c.l.b16 %v1929
      %v2225 = vunpack.c.l.b16 %v1930
      %v2226 = vunpack.c.l.b16 %v1931
      %v2227 = vunpack.c.l.b16 %v1932
      %v2228 = vunpack.c.l.b16 %v1933
      %v2229 = vunpack.c.l.b16 %v1934
      %v2230 = vunpack.c.l.b16 %v1935
      %v2231 = vunpack.c.l.b16 %v1936
      %v2232 = vunpack.c.l.b16 %v1937
      %v2233 = vunpack.c.l.b16 %v1938
      %v2234 = vunpack.c.l.b16 %v1939
      %v2235 = vunpack.c.l.b16 %v1940
      %v2236 = vunpack.c.l.b16 %v1941
      %v2237 = vunpack.c.l.b16 %v1942
      %v2238 = vunpack.c.l.b16 %v1943
      %v2239 = vunpack.c.l.b16 %v1944
      %v2240 = vunpack.c.l.b16 %v1945
      %v2241 = vunpack.c.l.b16 %v1946
      %v2242 = vunpack.c.l.b16 %v1947
      %v2243 = vunpack.c.l.b16 %v1948
      %v2244 = vunpack.c.l.b16 %v1949
      %v2245 = vunpack.c.l.b16 %v1950
      %v2246 = vunpack.c.l.b16 %v1951
      %v2247 = vunpack.c.l.b16 %v1952
      %v2248 = vunpack.c.l.b16 %v1953
      %v2249 = vunpack.c.l.b16 %v1954
      %v2250 = vpack.c.b16 %v2107, %v2106
      %v2251 = vpack.c.b16 %v2109, %v2108
      %v2252 = vpack.c.b16 %v2111, %v2110
      %v2253 = vpack.c.b16 %v2113, %v2112
      %v2254 = vpack.c.b16 %v2115, %v2114
      %v2255 = vpack.c.b16 %v2117, %v2116
      %v2256 = vpack.c.b16 %v2119, %v2118
      %v2257 = vpack.c.b16 %v2121, %v2120
      %v2258 = vpack.c.b16 %v2123, %v2122
      %v2259 = vpack.c.b16 %v2125, %v2124
      %v2260 = vpack.c.b16 %v2127, %v2126
      %v2261 = vpack.c.b16 %v2129, %v2128
      %v2262 = vpack.c.b16 %v2131, %v2130
      %v2263 = vpack.c.b16 %v2133, %v2132
      %v2264 = vpack.c.b16 %v2135, %v2134
      %v2265 = vpack.c.b16 %v2137, %v2136
      %v2266 = vpack.c.b16 %v2139, %v2138
      %v2267 = vpack.c.b16 %v2141, %v2140
      %v2268 = vpack.c.b16 %v2143, %v2142
      %v2269 = vpack.c.b16 %v2145, %v2144
      %v2270 = vpack.c.b16 %v2147, %v2146
      %v2271 = vpack.c.b16 %v2149, %v2148
      %v2272 = vpack.c.b16 %v2151, %v2150
      %v2273 = vpack.c.b16 %v2153, %v2152
      %v2274 = vpack.c.b16 %v2155, %v2154
      %v2275 = vpack.c.b16 %v2157, %v2156
      %v2276 = vpack.c.b16 %v2159, %v2158
      %v2277 = vpack.c.b16 %v2161, %v2160
      %v2278 = vpack.c.b16 %v2163, %v2162
      %v2279 = vpack.c.b16 %v2165, %v2164
      %v2280 = vpack.c.b16 %v2167, %v2166
      %v2281 = vpack.c.b16 %v2169, %v2168
      %v2282 = vpack.c.b16 %v2171, %v2170
      %v2283 = vpack.c.b16 %v2173, %v2172
      %v2284 = vpack.c.b16 %v2175, %v2174
      %v2285 = vpack.c.b16 %v2177, %v2176
      %v2286 = vpack.c.b16 %v2179, %v2178
      %v2287 = vpack.c.b16 %v2181, %v2180
      %v2288 = vpack.c.b16 %v2183, %v2182
      %v2289 = vpack.c.b16 %v2185, %v2184
      %v2290 = vpack.c.b16 %v2187, %v2186
      %v2291 = vpack.c.b16 %v2189, %v2188
      %v2292 = vpack.c.b16 %v2191, %v2190
      %v2293 = vpack.c.b16 %v2193, %v2192
      %v2294 = vpack.c.b16 %v2195, %v2194
      %v2295 = vpack.c.b16 %v2197, %v2196
      %v2296 = vpack.c.b16 %v2199, %v2198
      %v2297 = vpack.c.b16 %v2201, %v2200
      %v2298 = vpack.c.b16 %v2203, %v2202
      %v2299 = vpack.c.b16 %v2205, %v2204
      %v2300 = vpack.c.b16 %v2207, %v2206
      %v2301 = vpack.c.b16 %v2209, %v2208
      %v2302 = vpack.c.b16 %v2211, %v2210
      %v2303 = vpack.c.b16 %v2213, %v2212
      %v2304 = vpack.c.b16 %v2215, %v2214
      %v2305 = vpack.c.b16 %v2217, %v2216
      %v2306 = vpack.c.b16 %v2219, %v2218
      %v2307 = vpack.c.b16 %v2221, %v2220
      %v2308 = vpack.c.b16 %v2223, %v2222
      %v2309 = vpack.c.b16 %v2225, %v2224
      %v2310 = vpack.c.b16 %v2227, %v2226
      %v2311 = vpack.c.b16 %v2229, %v2228
      %v2312 = vpack.c.b16 %v2231, %v2230
      %v2313 = vpack.c.b16 %v2233, %v2232
      %v2314 = vpack.c.b16 %v2235, %v2234
      %v2315 = vpack.c.b16 %v2237, %v2236
      %v2316 = vpack.c.b16 %v2239, %v2238
      %v2317 = vpack.c.b16 %v2241, %v2240
      %v2318 = vpack.c.b16 %v2243, %v2242
      %v2319 = vpack.c.b16 %v2245, %v2244
      %v2320 = vpack.c.b16 %v2247, %v2246
      %v2321 = vpack.c.b16 %v2249, %v2248
      %2394 = vmatprep.subr.bf16.mxu0 0
      %2395 = vmatpush1.bf16.msra.mxu0 %v2250
      %2396 = vmatprep.subr.bf16.mxu0 0
      %2397 = vmatpush1.bf16.msra.mxu0 %v2251
      %2398 = vmatprep.subr.bf16.mxu0 0
      %2399 = vmatpush1.bf16.msra.mxu0 %v2252
      %2400 = vmatprep.subr.bf16.mxu0 0
      %2401 = vmatpush1.bf16.msra.mxu0 %v2253
      %2402 = vmatprep.subr.bf16.mxu0 0
      %2403 = vmatpush1.bf16.msra.mxu0 %v2254
      %2404 = vmatprep.subr.bf16.mxu0 0
      %2405 = vmatpush1.bf16.msra.mxu0 %v2255
      %2406 = vmatprep.subr.bf16.mxu0 0
      %2407 = vmatpush1.bf16.msra.mxu0 %v2256
      %2408 = vmatprep.subr.bf16.mxu0 0
      %2409 = vmatpush1.bf16.msra.mxu0 %v2257
      %2410 = vmatprep.subr.bf16.mxu0 0
      %2411 = vmatpush1.bf16.msra.mxu0 %v2258
      %2412 = vmatprep.subr.bf16.mxu0 0
      %2413 = vmatpush1.bf16.msra.mxu0 %v2259
      %2414 = vmatprep.subr.bf16.mxu0 0
      %2415 = vmatpush1.bf16.msra.mxu0 %v2260
      %2416 = vmatprep.subr.bf16.mxu0 0
      %2417 = vmatpush1.bf16.msra.mxu0 %v2261
      %2418 = vmatprep.subr.bf16.mxu0 0
      %2419 = vmatpush1.bf16.msra.mxu0 %v2262
      %2420 = vmatprep.subr.bf16.mxu0 0
      %2421 = vmatpush1.bf16.msra.mxu0 %v2263
      %2422 = vmatprep.subr.bf16.mxu0 0
      %2423 = vmatpush1.bf16.msra.mxu0 %v2264
      %2424 = vmatprep.subr.bf16.mxu0 0
      %2425 = vmatpush1.bf16.msra.mxu0 %v2265
      %2426 = vmatprep.mubr.bf16.mxu0 %v1668
      %2427 = vmatmul.mubr.bf16.gmra.mrb[0].mxu0 %v1667
      %v2428 = vpop.f32.mrb[0].mxu0
      %v2429 = vadd.f32 %v1960, %v2428
      %v2430 = vpop.f32.mrb[0].mxu0
      %v2431 = vpop.f32.mrb[0].mxu0
      %v2432 = vadd.f32 %v1960, %v2431
      %v2433 = vpop.f32.mrb[0].mxu0
      %2434 = vmatprep.mubr.bf16.mxu0 %v1677
      %2435 = vmatmul.mubr.bf16.gmra.mrb[0].mxu0 %v1676
      %v2436 = vpop.f32.mrb[0].mxu0
      %v2437 = vadd.f32 %v1960, %v2436
      %v2438 = vpop.f32.mrb[0].mxu0
      %v2439 = vpop.f32.mrb[0].mxu0
      %v2440 = vadd.f32 %v1960, %v2439
      %v2441 = vpop.f32.mrb[0].mxu0
      %2442 = vmatprep.mubr.bf16.mxu0 %v1686
      %2443 = vmatmul.mubr.bf16.gmra.mrb[0].mxu0 %v1685
      %v2444 = vpop.f32.mrb[0].mxu0
      %v2445 = vadd.f32 %v1960, %v2444
      %v2446 = vpop.f32.mrb[0].mxu0
      %v2447 = vpop.f32.mrb[0].mxu0
      %v2448 = vadd.f32 %v1960, %v2447
      %v2449 = vpop.f32.mrb[0].mxu0
      %2450 = vmatprep.mubr.bf16.mxu0 %v1695
      %2451 = vmatmul.mubr.bf16.gmra.mrb[0].mxu0 %v1694
      %v2452 = vpop.f32.mrb[0].mxu0
      %v2453 = vadd.f32 %v1960, %v2452
      %v2454 = vpop.f32.mrb[0].mxu0
      %v2455 = vpop.f32.mrb[0].mxu0
      %v2456 = vadd.f32 %v1960, %v2455
      %v2457 = vpop.f32.mrb[0].mxu0
      %2458 = vmatprep.mubr.bf16.mxu0 %v1704
      %2459 = vmatmul.mubr.bf16.gmra.mrb[0].mxu0 %v1703
      %v2460 = vpop.f32.mrb[0].mxu0
      %v2461 = vadd.f32 %v1960, %v2460
      %v2462 = vpop.f32.mrb[0].mxu0
      %v2463 = vpop.f32.mrb[0].mxu0
      %v2464 = vadd.f32 %v1960, %v2463
      %v2465 = vpop.f32.mrb[0].mxu0
      %2466 = vmatprep.mubr.bf16.mxu0 %v1713
      %2467 = vmatmul.mubr.bf16.gmra.mrb[0].mxu0 %v1712
      %v2468 = vpop.f32.mrb[0].mxu0
      %v2469 = vadd.f32 %v1960, %v2468
      %v2470 = vpop.f32.mrb[0].mxu0
      %v2471 = vpop.f32.mrb[0].mxu0
      %v2472 = vadd.f32 %v1960, %v2471
      %v2473 = vpop.f32.mrb[0].mxu0
      %2474 = vmatprep.mubr.bf16.mxu0 %v1722
      %2475 = vmatmul.mubr.bf16.gmra.mrb[0].mxu0 %v1721
      %v2476 = vpop.f32.mrb[0].mxu0
      %v2477 = vadd.f32 %v1960, %v2476
      %v2478 = vpop.f32.mrb[0].mxu0
      %v2479 = vpop.f32.mrb[0].mxu0
      %v2480 = vadd.f32 %v1960, %v2479
      %v2481 = vpop.f32.mrb[0].mxu0
      %2482 = vmatprep.mubr.bf16.mxu0 %v1731
      %2483 = vmatmul.mubr.bf16.gmra.mrb[0].mxu0 %v1730
      %v2484 = vpop.f32.mrb[0].mxu0
      %v2485 = vadd.f32 %v1960, %v2484
      %v2486 = vpop.f32.mrb[0].mxu0
      %v2487 = vpop.f32.mrb[0].mxu0
      %v2488 = vadd.f32 %v1960, %v2487
      %v2489 = vpop.f32.mrb[0].mxu0
      %2490 = vmatprep.mubr.bf16.mxu0 %v1740
      %2491 = vmatmul.mubr.bf16.gmra.mrb[0].mxu0 %v1739
      %v2492 = vpop.f32.mrb[0].mxu0
      %v2493 = vadd.f32 %v1960, %v2492
      %v2494 = vpop.f32.mrb[0].mxu0
      %v2495 = vpop.f32.mrb[0].mxu0
      %v2496 = vadd.f32 %v1960, %v2495
      %v2497 = vpop.f32.mrb[0].mxu0
      %2498 = vmatprep.mubr.bf16.mxu0 %v1749
      %2499 = vmatmul.mubr.bf16.gmra.mrb[0].mxu0 %v1748
      %v2500 = vpop.f32.mrb[0].mxu0
      %v2501 = vadd.f32 %v1960, %v2500
      %v2502 = vpop.f32.mrb[0].mxu0
      %v2503 = vpop.f32.mrb[0].mxu0
      %v2504 = vadd.f32 %v1960, %v2503
      %v2505 = vpop.f32.mrb[0].mxu0
      %2506 = vmatprep.mubr.bf16.mxu0 %v1758
      %2507 = vmatmul.mubr.bf16.gmra.mrb[0].mxu0 %v1757
      %v2508 = vpop.f32.mrb[0].mxu0
      %v2509 = vadd.f32 %v1960, %v2508
      %v2510 = vpop.f32.mrb[0].mxu0
      %v2511 = vpop.f32.mrb[0].mxu0
      %v2512 = vadd.f32 %v1960, %v2511
      %v2513 = vpop.f32.mrb[0].mxu0
      %2514 = vmatprep.mubr.bf16.mxu0 %v1767
      %2515 = vmatmul.mubr.bf16.gmra.mrb[0].mxu0 %v1766
      %v2516 = vpop.f32.mrb[0].mxu0
      %v2517 = vadd.f32 %v1960, %v2516
      %v2518 = vpop.f32.mrb[0].mxu0
      %v2519 = vpop.f32.mrb[0].mxu0
      %v2520 = vadd.f32 %v1960, %v2519
      %v2521 = vpop.f32.mrb[0].mxu0
      %2522 = vmatprep.mubr.bf16.mxu0 %v1776
      %2523 = vmatmul.mubr.bf16.gmra.mrb[0].mxu0 %v1775
      %v2524 = vpop.f32.mrb[0].mxu0
      %v2525 = vadd.f32 %v1960, %v2524
      %v2526 = vpop.f32.mrb[0].mxu0
      %v2527 = vpop.f32.mrb[0].mxu0
      %v2528 = vadd.f32 %v1960, %v2527
      %v2529 = vpop.f32.mrb[0].mxu0
      %2530 = vmatprep.mubr.bf16.mxu0 %v1785
      %2531 = vmatmul.mubr.bf16.gmra.mrb[0].mxu0 %v1784
      %v2532 = vpop.f32.mrb[0].mxu0
      %v2533 = vadd.f32 %v1960, %v2532
      %v2534 = vpop.f32.mrb[0].mxu0
      %v2535 = vpop.f32.mrb[0].mxu0
      %v2536 = vadd.f32 %v1960, %v2535
      %v2537 = vpop.f32.mrb[0].mxu0
      %2538 = vmatprep.mubr.bf16.mxu0 %v1794
      %2539 = vmatmul.mubr.bf16.gmra.mrb[0].mxu0 %v1793
      %v2540 = vpop.f32.mrb[0].mxu0
      %v2541 = vadd.f32 %v1960, %v2540
      %v2542 = vpop.f32.mrb[0].mxu0
      %v2543 = vpop.f32.mrb[0].mxu0
      %v2544 = vadd.f32 %v1960, %v2543
      %v2545 = vpop.f32.mrb[0].mxu0
      %2546 = vmatprep.mubr.bf16.mxu0 %v1803
      %2547 = vmatmul.mubr.bf16.gmra.mrb[0].mxu0 %v1802
      %v2548 = vpop.f32.mrb[0].mxu0
      %v2549 = vadd.f32 %v1960, %v2548
      %v2550 = vpop.f32.mrb[0].mxu0
      %v2551 = vpop.f32.mrb[0].mxu0
      %v2552 = vadd.f32 %v1960, %v2551
      %v2553 = vpop.f32.mrb[0].mxu0
      %2554 = vdwg.mxu0
      %2555 = vmatprep.subr.bf16.mxu0 0
      %2556 = vmatpush1.bf16.msra.mxu0 %v2266
      %2557 = vmatprep.subr.bf16.mxu0 0
      %2558 = vmatpush1.bf16.msra.mxu0 %v2267
      %2559 = vmatprep.subr.bf16.mxu0 0
      %2560 = vmatpush1.bf16.msra.mxu0 %v2268
      %2561 = vmatprep.subr.bf16.mxu0 0
      %2562 = vmatpush1.bf16.msra.mxu0 %v2269
      %2563 = vmatprep.subr.bf16.mxu0 0
      %2564 = vmatpush1.bf16.msra.mxu0 %v2270
      %2565 = vmatprep.subr.bf16.mxu0 0
      %2566 = vmatpush1.bf16.msra.mxu0 %v2271
      %2567 = vmatprep.subr.bf16.mxu0 0
      %2568 = vmatpush1.bf16.msra.mxu0 %v2272
      %2569 = vmatprep.subr.bf16.mxu0 0
      %2570 = vmatpush1.bf16.msra.mxu0 %v2273
      %2571 = vmatprep.subr.bf16.mxu0 0
      %2572 = vmatpush1.bf16.msra.mxu0 %v2274
      %2573 = vmatprep.subr.bf16.mxu0 0
      %2574 = vmatpush1.bf16.msra.mxu0 %v2275
      %2575 = vmatprep.subr.bf16.mxu0 0
      %2576 = vmatpush1.bf16.msra.mxu0 %v2276
      %2577 = vmatprep.subr.bf16.mxu0 0
      %2578 = vmatpush1.bf16.msra.mxu0 %v2277
      %2579 = vmatprep.subr.bf16.mxu0 0
      %2580 = vmatpush1.bf16.msra.mxu0 %v2278
      %2581 = vmatprep.subr.bf16.mxu0 0
      %2582 = vmatpush1.bf16.msra.mxu0 %v2279
      %2583 = vmatprep.subr.bf16.mxu0 0
      %2584 = vmatpush1.bf16.msra.mxu0 %v2280
      %2585 = vmatprep.subr.bf16.mxu0 0
      %2586 = vmatpush1.bf16.msra.mxu0 %v2281
      %2587 = vmatprep.mubr.bf16.mxu0 %v1670
      %2588 = vmatmul.mubr.bf16.gmra.mrb[0].mxu0 %v1669
      %v2589 = vpop.f32.mrb[0].mxu0
      %v2590 = vadd.f32 %v2429, %v2589
      %v2591 = vpop.f32.mrb[0].mxu0
      %v2592 = vpop.f32.mrb[0].mxu0
      %v2593 = vadd.f32 %v2432, %v2592
      %v2594 = vpop.f32.mrb[0].mxu0
      %2595 = vmatprep.mubr.bf16.mxu0 %v1679
      %2596 = vmatmul.mubr.bf16.gmra.mrb[0].mxu0 %v1678
      %v2597 = vpop.f32.mrb[0].mxu0
      %v2598 = vadd.f32 %v2437, %v2597
      %v2599 = vpop.f32.mrb[0].mxu0
      %v2600 = vpop.f32.mrb[0].mxu0
      %v2601 = vadd.f32 %v2440, %v2600
      %v2602 = vpop.f32.mrb[0].mxu0
      %2603 = vmatprep.mubr.bf16.mxu0 %v1688
      %2604 = vmatmul.mubr.bf16.gmra.mrb[0].mxu0 %v1687
      %v2605 = vpop.f32.mrb[0].mxu0
      %v2606 = vadd.f32 %v2445, %v2605
      %v2607 = vpop.f32.mrb[0].mxu0
      %v2608 = vpop.f32.mrb[0].mxu0
      %v2609 = vadd.f32 %v2448, %v2608
      %v2610 = vpop.f32.mrb[0].mxu0
      %2611 = vmatprep.mubr.bf16.mxu0 %v1697
      %2612 = vmatmul.mubr.bf16.gmra.mrb[0].mxu0 %v1696
      %v2613 = vpop.f32.mrb[0].mxu0
      %v2614 = vadd.f32 %v2453, %v2613
      %v2615 = vpop.f32.mrb[0].mxu0
      %v2616 = vpop.f32.mrb[0].mxu0
      %v2617 = vadd.f32 %v2456, %v2616
      %v2618 = vpop.f32.mrb[0].mxu0
      %2619 = vmatprep.mubr.bf16.mxu0 %v1706
      %2620 = vmatmul.mubr.bf16.gmra.mrb[0].mxu0 %v1705
      %v2621 = vpop.f32.mrb[0].mxu0
      %v2622 = vadd.f32 %v2461, %v2621
      %v2623 = vpop.f32.mrb[0].mxu0
      %v2624 = vpop.f32.mrb[0].mxu0
      %v2625 = vadd.f32 %v2464, %v2624
      %v2626 = vpop.f32.mrb[0].mxu0
      %2627 = vmatprep.mubr.bf16.mxu0 %v1715
      %2628 = vmatmul.mubr.bf16.gmra.mrb[0].mxu0 %v1714
      %v2629 = vpop.f32.mrb[0].mxu0
      %v2630 = vadd.f32 %v2469, %v2629
      %v2631 = vpop.f32.mrb[0].mxu0
      %v2632 = vpop.f32.mrb[0].mxu0
      %v2633 = vadd.f32 %v2472, %v2632
      %v2634 = vpop.f32.mrb[0].mxu0
      %2635 = vmatprep.mubr.bf16.mxu0 %v1724
      %2636 = vmatmul.mubr.bf16.gmra.mrb[0].mxu0 %v1723
      %v2637 = vpop.f32.mrb[0].mxu0
      %v2638 = vadd.f32 %v2477, %v2637
      %v2639 = vpop.f32.mrb[0].mxu0
      %v2640 = vpop.f32.mrb[0].mxu0
      %v2641 = vadd.f32 %v2480, %v2640
      %v2642 = vpop.f32.mrb[0].mxu0
      %2643 = vmatprep.mubr.bf16.mxu0 %v1733
      %2644 = vmatmul.mubr.bf16.gmra.mrb[0].mxu0 %v1732
      %v2645 = vpop.f32.mrb[0].mxu0
      %v2646 = vadd.f32 %v2485, %v2645
      %v2647 = vpop.f32.mrb[0].mxu0
      %v2648 = vpop.f32.mrb[0].mxu0
      %v2649 = vadd.f32 %v2488, %v2648
      %v2650 = vpop.f32.mrb[0].mxu0
      %2651 = vmatprep.mubr.bf16.mxu0 %v1742
      %2652 = vmatmul.mubr.bf16.gmra.mrb[0].mxu0 %v1741
      %v2653 = vpop.f32.mrb[0].mxu0
      %v2654 = vadd.f32 %v2493, %v2653
      %v2655 = vpop.f32.mrb[0].mxu0
      %v2656 = vpop.f32.mrb[0].mxu0
      %v2657 = vadd.f32 %v2496, %v2656
      %v2658 = vpop.f32.mrb[0].mxu0
      %2659 = vmatprep.mubr.bf16.mxu0 %v1751
      %2660 = vmatmul.mubr.bf16.gmra.mrb[0].mxu0 %v1750
      %v2661 = vpop.f32.mrb[0].mxu0
      %v2662 = vadd.f32 %v2501, %v2661
      %v2663 = vpop.f32.mrb[0].mxu0
      %v2664 = vpop.f32.mrb[0].mxu0
      %v2665 = vadd.f32 %v2504, %v2664
      %v2666 = vpop.f32.mrb[0].mxu0
      %2667 = vmatprep.mubr.bf16.mxu0 %v1760
      %2668 = vmatmul.mubr.bf16.gmra.mrb[0].mxu0 %v1759
      %v2669 = vpop.f32.mrb[0].mxu0
      %v2670 = vadd.f32 %v2509, %v2669
      %v2671 = vpop.f32.mrb[0].mxu0
      %v2672 = vpop.f32.mrb[0].mxu0
      %v2673 = vadd.f32 %v2512, %v2672
      %v2674 = vpop.f32.mrb[0].mxu0
      %2675 = vmatprep.mubr.bf16.mxu0 %v1769
      %2676 = vmatmul.mubr.bf16.gmra.mrb[0].mxu0 %v1768
      %v2677 = vpop.f32.mrb[0].mxu0
      %v2678 = vadd.f32 %v2517, %v2677
      %v2679 = vpop.f32.mrb[0].mxu0
      %v2680 = vpop.f32.mrb[0].mxu0
      %v2681 = vadd.f32 %v2520, %v2680
      %v2682 = vpop.f32.mrb[0].mxu0
      %2683 = vmatprep.mubr.bf16.mxu0 %v1778
      %2684 = vmatmul.mubr.bf16.gmra.mrb[0].mxu0 %v1777
      %v2685 = vpop.f32.mrb[0].mxu0
      %v2686 = vadd.f32 %v2525, %v2685
      %v2687 = vpop.f32.mrb[0].mxu0
      %v2688 = vpop.f32.mrb[0].mxu0
      %v2689 = vadd.f32 %v2528, %v2688
      %v2690 = vpop.f32.mrb[0].mxu0
      %2691 = vmatprep.mubr.bf16.mxu0 %v1787
      %2692 = vmatmul.mubr.bf16.gmra.mrb[0].mxu0 %v1786
      %v2693 = vpop.f32.mrb[0].mxu0
      %v2694 = vadd.f32 %v2533, %v2693
      %v2695 = vpop.f32.mrb[0].mxu0
      %v2696 = vpop.f32.mrb[0].mxu0
      %v2697 = vadd.f32 %v2536, %v2696
      %v2698 = vpop.f32.mrb[0].mxu0
      %2699 = vmatprep.mubr.bf16.mxu0 %v1796
      %2700 = vmatmul.mubr.bf16.gmra.mrb[0].mxu0 %v1795
      %v2701 = vpop.f32.mrb[0].mxu0
      %v2702 = vadd.f32 %v2541, %v2701
      %v2703 = vpop.f32.mrb[0].mxu0
      %v2704 = vpop.f32.mrb[0].mxu0
      %v2705 = vadd.f32 %v2544, %v2704
      %v2706 = vpop.f32.mrb[0].mxu0
      %2707 = vmatprep.mubr.bf16.mxu0 %v1805
      %2708 = vmatmul.mubr.bf16.gmra.mrb[0].mxu0 %v1804
      %v2709 = vpop.f32.mrb[0].mxu0
      %v2710 = vadd.f32 %v2549, %v2709
      %v2711 = vpop.f32.mrb[0].mxu0
      %v2712 = vpop.f32.mrb[0].mxu0
      %v2713 = vadd.f32 %v2552, %v2712
      %v2714 = vpop.f32.mrb[0].mxu0
      %2715 = vdwg.mxu0
      %2716 = vmatprep.subr.bf16.mxu0 0
      %2717 = vmatpush1.bf16.msra.mxu0 %v2282
      %2718 = vmatprep.subr.bf16.mxu0 0
      %2719 = vmatpush1.bf16.msra.mxu0 %v2283
      %2720 = vmatprep.subr.bf16.mxu0 0
      %2721 = vmatpush1.bf16.msra.mxu0 %v2284
      %2722 = vmatprep.subr.bf16.mxu0 0
      %2723 = vmatpush1.bf16.msra.mxu0 %v2285
      %2724 = vmatprep.subr.bf16.mxu0 0
      %2725 = vmatpush1.bf16.msra.mxu0 %v2286
      %2726 = vmatprep.subr.bf16.mxu0 0
      %2727 = vmatpush1.bf16.msra.mxu0 %v2287
      %2728 = vmatprep.subr.bf16.mxu0 0
      %2729 = vmatpush1.bf16.msra.mxu0 %v2288
      %2730 = vmatprep.subr.bf16.mxu0 0
      %2731 = vmatpush1.bf16.msra.mxu0 %v2289
      %2732 = vmatprep.subr.bf16.mxu0 0
      %2733 = vmatpush1.bf16.msra.mxu0 %v2290
      %2734 = vmatprep.subr.bf16.mxu0 0
      %2735 = vmatpush1.bf16.msra.mxu0 %v2291
      %2736 = vmatprep.subr.bf16.mxu0 0
      %2737 = vmatpush1.bf16.msra.mxu0 %v2292
      %2738 = vmatprep.subr.bf16.mxu0 0
      %2739 = vmatpush1.bf16.msra.mxu0 %v2293
      %2740 = vmatprep.subr.bf16.mxu0 0
      %2741 = vmatpush1.bf16.msra.mxu0 %v2294
      %2742 = vmatprep.subr.bf16.mxu0 0
      %2743 = vmatpush1.bf16.msra.mxu0 %v2295
      %2744 = vmatprep.subr.bf16.mxu0 0
      %2745 = vmatpush1.bf16.msra.mxu0 %v2296
      %2746 = vmatprep.subr.bf16.mxu0 0
      %2747 = vmatpush1.bf16.msra.mxu0 %v2297
      %2748 = vmatprep.mubr.bf16.mxu0 %v1672
      %2749 = vmatmul.mubr.bf16.gmra.mrb[0].mxu0 %v1671
      %v2750 = vpop.f32.mrb[0].mxu0
      %v2751 = vadd.f32 %v2590, %v2750
      %v2752 = vpop.f32.mrb[0].mxu0
      %v2753 = vpop.f32.mrb[0].mxu0
      %v2754 = vadd.f32 %v2593, %v2753
      %v2755 = vpop.f32.mrb[0].mxu0
      %2756 = vmatprep.mubr.bf16.mxu0 %v1681
      %2757 = vmatmul.mubr.bf16.gmra.mrb[0].mxu0 %v1680
      %v2758 = vpop.f32.mrb[0].mxu0
      %v2759 = vadd.f32 %v2598, %v2758
      %v2760 = vpop.f32.mrb[0].mxu0
      %v2761 = vpop.f32.mrb[0].mxu0
      %v2762 = vadd.f32 %v2601, %v2761
      %v2763 = vpop.f32.mrb[0].mxu0
      %2764 = vmatprep.mubr.bf16.mxu0 %v1690
      %2765 = vmatmul.mubr.bf16.gmra.mrb[0].mxu0 %v1689
      %v2766 = vpop.f32.mrb[0].mxu0
      %v2767 = vadd.f32 %v2606, %v2766
      %v2768 = vpop.f32.mrb[0].mxu0
      %v2769 = vpop.f32.mrb[0].mxu0
      %v2770 = vadd.f32 %v2609, %v2769
      %v2771 = vpop.f32.mrb[0].mxu0
      %2772 = vmatprep.mubr.bf16.mxu0 %v1699
      %2773 = vmatmul.mubr.bf16.gmra.mrb[0].mxu0 %v1698
      %v2774 = vpop.f32.mrb[0].mxu0
      %v2775 = vadd.f32 %v2614, %v2774
      %v2776 = vpop.f32.mrb[0].mxu0
      %v2777 = vpop.f32.mrb[0].mxu0
      %v2778 = vadd.f32 %v2617, %v2777
      %v2779 = vpop.f32.mrb[0].mxu0
      %2780 = vmatprep.mubr.bf16.mxu0 %v1708
      %2781 = vmatmul.mubr.bf16.gmra.mrb[0].mxu0 %v1707
      %v2782 = vpop.f32.mrb[0].mxu0
      %v2783 = vadd.f32 %v2622, %v2782
      %v2784 = vpop.f32.mrb[0].mxu0
      %v2785 = vpop.f32.mrb[0].mxu0
      %v2786 = vadd.f32 %v2625, %v2785
      %v2787 = vpop.f32.mrb[0].mxu0
      %2788 = vmatprep.mubr.bf16.mxu0 %v1717
      %2789 = vmatmul.mubr.bf16.gmra.mrb[0].mxu0 %v1716
      %v2790 = vpop.f32.mrb[0].mxu0
      %v2791 = vadd.f32 %v2630, %v2790
      %v2792 = vpop.f32.mrb[0].mxu0
      %v2793 = vpop.f32.mrb[0].mxu0
      %v2794 = vadd.f32 %v2633, %v2793
      %v2795 = vpop.f32.mrb[0].mxu0
      %2796 = vmatprep.mubr.bf16.mxu0 %v1726
      %2797 = vmatmul.mubr.bf16.gmra.mrb[0].mxu0 %v1725
      %v2798 = vpop.f32.mrb[0].mxu0
      %v2799 = vadd.f32 %v2638, %v2798
      %v2800 = vpop.f32.mrb[0].mxu0
      %v2801 = vpop.f32.mrb[0].mxu0
      %v2802 = vadd.f32 %v2641, %v2801
      %v2803 = vpop.f32.mrb[0].mxu0
      %2804 = vmatprep.mubr.bf16.mxu0 %v1735
      %2805 = vmatmul.mubr.bf16.gmra.mrb[0].mxu0 %v1734
      %v2806 = vpop.f32.mrb[0].mxu0
      %v2807 = vadd.f32 %v2646, %v2806
      %v2808 = vpop.f32.mrb[0].mxu0
      %v2809 = vpop.f32.mrb[0].mxu0
      %v2810 = vadd.f32 %v2649, %v2809
      %v2811 = vpop.f32.mrb[0].mxu0
      %2812 = vmatprep.mubr.bf16.mxu0 %v1744
      %2813 = vmatmul.mubr.bf16.gmra.mrb[0].mxu0 %v1743
      %v2814 = vpop.f32.mrb[0].mxu0
      %v2815 = vadd.f32 %v2654, %v2814
      %v2816 = vpop.f32.mrb[0].mxu0
      %v2817 = vpop.f32.mrb[0].mxu0
      %v2818 = vadd.f32 %v2657, %v2817
      %v2819 = vpop.f32.mrb[0].mxu0
      %2820 = vmatprep.mubr.bf16.mxu0 %v1753
      %2821 = vmatmul.mubr.bf16.gmra.mrb[0].mxu0 %v1752
      %v2822 = vpop.f32.mrb[0].mxu0
      %v2823 = vadd.f32 %v2662, %v2822
      %v2824 = vpop.f32.mrb[0].mxu0
      %v2825 = vpop.f32.mrb[0].mxu0
      %v2826 = vadd.f32 %v2665, %v2825
      %v2827 = vpop.f32.mrb[0].mxu0
      %2828 = vmatprep.mubr.bf16.mxu0 %v1762
      %2829 = vmatmul.mubr.bf16.gmra.mrb[0].mxu0 %v1761
      %v2830 = vpop.f32.mrb[0].mxu0
      %v2831 = vadd.f32 %v2670, %v2830
      %v2832 = vpop.f32.mrb[0].mxu0
      %v2833 = vpop.f32.mrb[0].mxu0
      %v2834 = vadd.f32 %v2673, %v2833
      %v2835 = vpop.f32.mrb[0].mxu0
      %2836 = vmatprep.mubr.bf16.mxu0 %v1771
      %2837 = vmatmul.mubr.bf16.gmra.mrb[0].mxu0 %v1770
      %v2838 = vpop.f32.mrb[0].mxu0
      %v2839 = vadd.f32 %v2678, %v2838
      %v2840 = vpop.f32.mrb[0].mxu0
      %v2841 = vpop.f32.mrb[0].mxu0
      %v2842 = vadd.f32 %v2681, %v2841
      %v2843 = vpop.f32.mrb[0].mxu0
      %2844 = vmatprep.mubr.bf16.mxu0 %v1780
      %2845 = vmatmul.mubr.bf16.gmra.mrb[0].mxu0 %v1779
      %v2846 = vpop.f32.mrb[0].mxu0
      %v2847 = vadd.f32 %v2686, %v2846
      %v2848 = vpop.f32.mrb[0].mxu0
      %v2849 = vpop.f32.mrb[0].mxu0
      %v2850 = vadd.f32 %v2689, %v2849
      %v2851 = vpop.f32.mrb[0].mxu0
      %2852 = vmatprep.mubr.bf16.mxu0 %v1789
      %2853 = vmatmul.mubr.bf16.gmra.mrb[0].mxu0 %v1788
      %v2854 = vpop.f32.mrb[0].mxu0
      %v2855 = vadd.f32 %v2694, %v2854
      %v2856 = vpop.f32.mrb[0].mxu0
      %v2857 = vpop.f32.mrb[0].mxu0
      %v2858 = vadd.f32 %v2697, %v2857
      %v2859 = vpop.f32.mrb[0].mxu0
      %2860 = vmatprep.mubr.bf16.mxu0 %v1798
      %2861 = vmatmul.mubr.bf16.gmra.mrb[0].mxu0 %v1797
      %v2862 = vpop.f32.mrb[0].mxu0
      %v2863 = vadd.f32 %v2702, %v2862
      %v2864 = vpop.f32.mrb[0].mxu0
      %v2865 = vpop.f32.mrb[0].mxu0
      %v2866 = vadd.f32 %v2705, %v2865
      %v2867 = vpop.f32.mrb[0].mxu0
      %2868 = vmatprep.mubr.bf16.mxu0 %v1807
      %2869 = vmatmul.mubr.bf16.gmra.mrb[0].mxu0 %v1806
      %v2870 = vpop.f32.mrb[0].mxu0
      %v2871 = vadd.f32 %v2710, %v2870
      %v2872 = vpop.f32.mrb[0].mxu0
      %v2873 = vpop.f32.mrb[0].mxu0
      %v2874 = vadd.f32 %v2713, %v2873
      %v2875 = vpop.f32.mrb[0].mxu0
      %2876 = vdwg.mxu0
      %2877 = vmatprep.subr.bf16.mxu0 0
      %2878 = vmatpush1.bf16.msra.mxu0 %v2298
      %2879 = vmatprep.subr.bf16.mxu0 0
      %2880 = vmatpush1.bf16.msra.mxu0 %v2299
      %2881 = vmatprep.subr.bf16.mxu0 0
      %2882 = vmatpush1.bf16.msra.mxu0 %v2300
      %2883 = vmatprep.subr.bf16.mxu0 0
      %2884 = vmatpush1.bf16.msra.mxu0 %v2301
      %2885 = vmatprep.subr.bf16.mxu0 0
      %2886 = vmatpush1.bf16.msra.mxu0 %v2302
      %2887 = vmatprep.subr.bf16.mxu0 0
      %2888 = vmatpush1.bf16.msra.mxu0 %v2303
      %2889 = vmatprep.subr.bf16.mxu0 0
      %2890 = vmatpush1.bf16.msra.mxu0 %v2304
      %2891 = vmatprep.subr.bf16.mxu0 0
      %2892 = vmatpush1.bf16.msra.mxu0 %v2305
      %2893 = vmatprep.subr.bf16.mxu0 0
      %2894 = vmatpush1.bf16.msra.mxu0 %v2306
      %2895 = vmatprep.subr.bf16.mxu0 0
      %2896 = vmatpush1.bf16.msra.mxu0 %v2307
      %2897 = vmatprep.subr.bf16.mxu0 0
      %2898 = vmatpush1.bf16.msra.mxu0 %v2308
      %2899 = vmatprep.subr.bf16.mxu0 0
      %2900 = vmatpush1.bf16.msra.mxu0 %v2309
      %2901 = vmatprep.subr.bf16.mxu0 0
      %2902 = vmatpush1.bf16.msra.mxu0 %v2310
      %2903 = vmatprep.subr.bf16.mxu0 0
      %2904 = vmatpush1.bf16.msra.mxu0 %v2311
      %2905 = vmatprep.subr.bf16.mxu0 0
      %2906 = vmatpush1.bf16.msra.mxu0 %v2312
      %2907 = vmatprep.subr.bf16.mxu0 0
      %2908 = vmatpush1.bf16.msra.mxu0 %v2313
      %2909 = vmatprep.mubr.bf16.mxu0 %v1674
      %2910 = vmatmul.mubr.bf16.gmra.mrb[0].mxu0 %v1673
      %v2911 = vpop.f32.mrb[0].mxu0
      %v2912 = vadd.f32 %v2751, %v2911
      %v2913 = vpop.f32.mrb[0].mxu0
      %v2914 = vpop.f32.mrb[0].mxu0
      %v2915 = vadd.f32 %v2754, %v2914
      %v2916 = vpop.f32.mrb[0].mxu0
      %2917 = vmatprep.mubr.bf16.mxu0 %v1683
      %2918 = vmatmul.mubr.bf16.gmra.mrb[0].mxu0 %v1682
      %v2919 = vpop.f32.mrb[0].mxu0
      %v2920 = vadd.f32 %v2759, %v2919
      %v2921 = vpop.f32.mrb[0].mxu0
      %v2922 = vpop.f32.mrb[0].mxu0
      %v2923 = vadd.f32 %v2762, %v2922
      %v2924 = vpop.f32.mrb[0].mxu0
      %2925 = vmatprep.mubr.bf16.mxu0 %v1692
      %2926 = vmatmul.mubr.bf16.gmra.mrb[0].mxu0 %v1691
      %v2927 = vpop.f32.mrb[0].mxu0
      %v2928 = vadd.f32 %v2767, %v2927
      %v2929 = vpop.f32.mrb[0].mxu0
      %v2930 = vpop.f32.mrb[0].mxu0
      %v2931 = vadd.f32 %v2770, %v2930
      %v2932 = vpop.f32.mrb[0].mxu0
      %2933 = vmatprep.mubr.bf16.mxu0 %v1701
      %2934 = vmatmul.mubr.bf16.gmra.mrb[0].mxu0 %v1700
      %v2935 = vpop.f32.mrb[0].mxu0
      %v2936 = vadd.f32 %v2775, %v2935
      %v2937 = vpop.f32.mrb[0].mxu0
      %v2938 = vpop.f32.mrb[0].mxu0
      %v2939 = vadd.f32 %v2778, %v2938
      %v2940 = vpop.f32.mrb[0].mxu0
      %2941 = vmatprep.mubr.bf16.mxu0 %v1710
      %2942 = vmatmul.mubr.bf16.gmra.mrb[0].mxu0 %v1709
      %v2943 = vpop.f32.mrb[0].mxu0
      %v2944 = vadd.f32 %v2783, %v2943
      %v2945 = vpop.f32.mrb[0].mxu0
      %v2946 = vpop.f32.mrb[0].mxu0
      %v2947 = vadd.f32 %v2786, %v2946
      %v2948 = vpop.f32.mrb[0].mxu0
      %2949 = vmatprep.mubr.bf16.mxu0 %v1719
      %2950 = vmatmul.mubr.bf16.gmra.mrb[0].mxu0 %v1718
      %v2951 = vpop.f32.mrb[0].mxu0
      %v2952 = vadd.f32 %v2791, %v2951
      %v2953 = vpop.f32.mrb[0].mxu0
      %v2954 = vpop.f32.mrb[0].mxu0
      %v2955 = vadd.f32 %v2794, %v2954
      %v2956 = vpop.f32.mrb[0].mxu0
      %2957 = vmatprep.mubr.bf16.mxu0 %v1728
      %2958 = vmatmul.mubr.bf16.gmra.mrb[0].mxu0 %v1727
      %v2959 = vpop.f32.mrb[0].mxu0
      %v2960 = vadd.f32 %v2799, %v2959
      %v2961 = vpop.f32.mrb[0].mxu0
      %v2962 = vpop.f32.mrb[0].mxu0
      %v2963 = vadd.f32 %v2802, %v2962
      %v2964 = vpop.f32.mrb[0].mxu0
      %2965 = vmatprep.mubr.bf16.mxu0 %v1737
      %2966 = vmatmul.mubr.bf16.gmra.mrb[0].mxu0 %v1736
      %v2967 = vpop.f32.mrb[0].mxu0
      %v2968 = vadd.f32 %v2807, %v2967
      %v2969 = vpop.f32.mrb[0].mxu0
      %v2970 = vpop.f32.mrb[0].mxu0
      %v2971 = vadd.f32 %v2810, %v2970
      %v2972 = vpop.f32.mrb[0].mxu0
      %2973 = vmatprep.mubr.bf16.mxu0 %v1746
      %2974 = vmatmul.mubr.bf16.gmra.mrb[0].mxu0 %v1745
      %v2975 = vpop.f32.mrb[0].mxu0
      %v2976 = vadd.f32 %v2815, %v2975
      %v2977 = vpop.f32.mrb[0].mxu0
      %v2978 = vpop.f32.mrb[0].mxu0
      %v2979 = vadd.f32 %v2818, %v2978
      %v2980 = vpop.f32.mrb[0].mxu0
      %2981 = vmatprep.mubr.bf16.mxu0 %v1755
      %2982 = vmatmul.mubr.bf16.gmra.mrb[0].mxu0 %v1754
      %v2983 = vpop.f32.mrb[0].mxu0
      %v2984 = vadd.f32 %v2823, %v2983
      %v2985 = vpop.f32.mrb[0].mxu0
      %v2986 = vpop.f32.mrb[0].mxu0
      %v2987 = vadd.f32 %v2826, %v2986
      %v2988 = vpop.f32.mrb[0].mxu0
      %2989 = vmatprep.mubr.bf16.mxu0 %v1764
      %2990 = vmatmul.mubr.bf16.gmra.mrb[0].mxu0 %v1763
      %v2991 = vpop.f32.mrb[0].mxu0
      %v2992 = vadd.f32 %v2831, %v2991
      %v2993 = vpop.f32.mrb[0].mxu0
      %v2994 = vpop.f32.mrb[0].mxu0
      %v2995 = vadd.f32 %v2834, %v2994
      %v2996 = vpop.f32.mrb[0].mxu0
      %2997 = vmatprep.mubr.bf16.mxu0 %v1773
      %2998 = vmatmul.mubr.bf16.gmra.mrb[0].mxu0 %v1772
      %v2999 = vpop.f32.mrb[0].mxu0
      %v3000 = vadd.f32 %v2839, %v2999
      %v3001 = vpop.f32.mrb[0].mxu0
      %v3002 = vpop.f32.mrb[0].mxu0
      %v3003 = vadd.f32 %v2842, %v3002
      %v3004 = vpop.f32.mrb[0].mxu0
      %3005 = vmatprep.mubr.bf16.mxu0 %v1782
      %3006 = vmatmul.mubr.bf16.gmra.mrb[0].mxu0 %v1781
      %v3007 = vpop.f32.mrb[0].mxu0
      %v3008 = vadd.f32 %v2847, %v3007
      %v3009 = vpop.f32.mrb[0].mxu0
      %v3010 = vpop.f32.mrb[0].mxu0
      %v3011 = vadd.f32 %v2850, %v3010
      %v3012 = vpop.f32.mrb[0].mxu0
      %3013 = vmatprep.mubr.bf16.mxu0 %v1791
      %3014 = vmatmul.mubr.bf16.gmra.mrb[0].mxu0 %v1790
      %v3015 = vpop.f32.mrb[0].mxu0
      %v3016 = vadd.f32 %v2855, %v3015
      %v3017 = vpop.f32.mrb[0].mxu0
      %v3018 = vpop.f32.mrb[0].mxu0
      %v3019 = vadd.f32 %v2858, %v3018
      %v3020 = vpop.f32.mrb[0].mxu0
      %3021 = vmatprep.mubr.bf16.mxu0 %v1800
      %3022 = vmatmul.mubr.bf16.gmra.mrb[0].mxu0 %v1799
      %v3023 = vpop.f32.mrb[0].mxu0
      %v3024 = vadd.f32 %v2863, %v3023
      %v3025 = vpop.f32.mrb[0].mxu0
      %v3026 = vpop.f32.mrb[0].mxu0
      %v3027 = vadd.f32 %v2866, %v3026
      %v3028 = vpop.f32.mrb[0].mxu0
      %3029 = vmatprep.mubr.bf16.mxu0 %v1809
      %3030 = vmatmul.mubr.bf16.gmra.mrb[0].mxu0 %v1808
      %v3031 = vpop.f32.mrb[0].mxu0
      %v3032 = vadd.f32 %v2871, %v3031
      %v3033 = vpop.f32.mrb[0].mxu0
      %v3034 = vpop.f32.mrb[0].mxu0
      %v3035 = vadd.f32 %v2874, %v3034
      %v3036 = vpop.f32.mrb[0].mxu0
      %3037 = vdwg.mxu0
      %3038 = vmatprep.subr.bf16.mxu0 0
      %3039 = vmatpush1.bf16.msra.mxu0 %v2314
      %3040 = vmatprep.subr.bf16.mxu0 0
      %3041 = vmatpush1.bf16.msra.mxu0 %v2315
      %3042 = vmatprep.subr.bf16.mxu0 0
      %3043 = vmatpush1.bf16.msra.mxu0 %v2316
      %3044 = vmatprep.subr.bf16.mxu0 0
      %3045 = vmatpush1.bf16.msra.mxu0 %v2317
      %3046 = vmatprep.subr.bf16.mxu0 0
      %3047 = vmatpush1.bf16.msra.mxu0 %v2318
      %3048 = vmatprep.subr.bf16.mxu0 0
      %3049 = vmatpush1.bf16.msra.mxu0 %v2319
      %3050 = vmatprep.subr.bf16.mxu0 0
      %3051 = vmatpush1.bf16.msra.mxu0 %v2320
      %3052 = vmatprep.subr.bf16.mxu0 0
      %3053 = vmatpush1.bf16.msra.mxu0 %v2321
      %3054 = vmatprep.subr.bf16.mxu0 0
      %3055 = vmatpush1.bf16.msra.mxu0 0
      %3056 = vmatprep.subr.bf16.mxu0 0
      %3057 = vmatpush1.bf16.msra.mxu0 0
      %3058 = vmatprep.subr.bf16.mxu0 0
      %3059 = vmatpush1.bf16.msra.mxu0 0
      %3060 = vmatprep.subr.bf16.mxu0 0
      %3061 = vmatpush1.bf16.msra.mxu0 0
      %3062 = vmatprep.subr.bf16.mxu0 0
      %3063 = vmatpush1.bf16.msra.mxu0 0
      %3064 = vmatprep.subr.bf16.mxu0 0
      %3065 = vmatpush1.bf16.msra.mxu0 0
      %3066 = vmatprep.subr.bf16.mxu0 0
      %3067 = vmatpush1.bf16.msra.mxu0 0
      %3068 = vmatprep.subr.bf16.mxu0 0
      %3069 = vmatpush1.bf16.msra.mxu0 0
      %3070 = vmatprep.mubr.bf16.mxu0 0
      %3071 = vmatmul.mubr.bf16.gmra.mrb[0].mxu0 %v1675
      %v3072 = vpop.f32.mrb[0].mxu0
      %v3073 = vadd.f32 %v2912, %v3072
      %v3074 = vpop.f32.mrb[0].mxu0
      %v3075 = vpop.f32.mrb[0].mxu0
      %v3076 = vadd.f32 %v2915, %v3075
      %v3077 = vpop.f32.mrb[0].mxu0
      %3078 = vmatprep.mubr.bf16.mxu0 0
      %3079 = vmatmul.mubr.bf16.gmra.mrb[0].mxu0 %v1684
      %v3080 = vpop.f32.mrb[0].mxu0
      %v3081 = vadd.f32 %v2920, %v3080
      %v3082 = vpop.f32.mrb[0].mxu0
      %v3083 = vpop.f32.mrb[0].mxu0
      %v3084 = vadd.f32 %v2923, %v3083
      %v3085 = vpop.f32.mrb[0].mxu0
      %3086 = vmatprep.mubr.bf16.mxu0 0
      %3087 = vmatmul.mubr.bf16.gmra.mrb[0].mxu0 %v1693
      %v3088 = vpop.f32.mrb[0].mxu0
      %v3089 = vadd.f32 %v2928, %v3088
      %v3090 = vpop.f32.mrb[0].mxu0
      %v3091 = vpop.f32.mrb[0].mxu0
      %v3092 = vadd.f32 %v2931, %v3091
      %v3093 = vpop.f32.mrb[0].mxu0
      %3094 = vmatprep.mubr.bf16.mxu0 0
      %3095 = vmatmul.mubr.bf16.gmra.mrb[0].mxu0 %v1702
      %v3096 = vpop.f32.mrb[0].mxu0
      %v3097 = vadd.f32 %v2936, %v3096
      %v3098 = vpop.f32.mrb[0].mxu0
      %v3099 = vpop.f32.mrb[0].mxu0
      %v3100 = vadd.f32 %v2939, %v3099
      %v3101 = vpop.f32.mrb[0].mxu0
      %3102 = vmatprep.mubr.bf16.mxu0 0
      %3103 = vmatmul.mubr.bf16.gmra.mrb[0].mxu0 %v1711
      %v3104 = vpop.f32.mrb[0].mxu0
      %v3105 = vadd.f32 %v2944, %v3104
      %v3106 = vpop.f32.mrb[0].mxu0
      %v3107 = vpop.f32.mrb[0].mxu0
      %v3108 = vadd.f32 %v2947, %v3107
      %v3109 = vpop.f32.mrb[0].mxu0
      %3110 = vmatprep.mubr.bf16.mxu0 0
      %3111 = vmatmul.mubr.bf16.gmra.mrb[0].mxu0 %v1720
      %v3112 = vpop.f32.mrb[0].mxu0
      %v3113 = vadd.f32 %v2952, %v3112
      %v3114 = vpop.f32.mrb[0].mxu0
      %v3115 = vpop.f32.mrb[0].mxu0
      %v3116 = vadd.f32 %v2955, %v3115
      %v3117 = vpop.f32.mrb[0].mxu0
      %3118 = vmatprep.mubr.bf16.mxu0 0
      %3119 = vmatmul.mubr.bf16.gmra.mrb[0].mxu0 %v1729
      %v3120 = vpop.f32.mrb[0].mxu0
      %v3121 = vadd.f32 %v2960, %v3120
      %v3122 = vpop.f32.mrb[0].mxu0
      %v3123 = vpop.f32.mrb[0].mxu0
      %v3124 = vadd.f32 %v2963, %v3123
      %v3125 = vpop.f32.mrb[0].mxu0
      %3126 = vmatprep.mubr.bf16.mxu0 0
      %3127 = vmatmul.mubr.bf16.gmra.mrb[0].mxu0 %v1738
      %v3128 = vpop.f32.mrb[0].mxu0
      %v3129 = vadd.f32 %v2968, %v3128
      %v3130 = vpop.f32.mrb[0].mxu0
      %v3131 = vpop.f32.mrb[0].mxu0
      %v3132 = vadd.f32 %v2971, %v3131
      %v3133 = vpop.f32.mrb[0].mxu0
      %3134 = vmatprep.mubr.bf16.mxu0 0
      %3135 = vmatmul.mubr.bf16.gmra.mrb[0].mxu0 %v1747
      %v3136 = vpop.f32.mrb[0].mxu0
      %v3137 = vadd.f32 %v2976, %v3136
      %v3138 = vpop.f32.mrb[0].mxu0
      %v3139 = vpop.f32.mrb[0].mxu0
      %v3140 = vadd.f32 %v2979, %v3139
      %v3141 = vpop.f32.mrb[0].mxu0
      %3142 = vmatprep.mubr.bf16.mxu0 0
      %3143 = vmatmul.mubr.bf16.gmra.mrb[0].mxu0 %v1756
      %v3144 = vpop.f32.mrb[0].mxu0
      %v3145 = vadd.f32 %v2984, %v3144
      %v3146 = vpop.f32.mrb[0].mxu0
      %v3147 = vpop.f32.mrb[0].mxu0
      %v3148 = vadd.f32 %v2987, %v3147
      %v3149 = vpop.f32.mrb[0].mxu0
      %3150 = vmatprep.mubr.bf16.mxu0 0
      %3151 = vmatmul.mubr.bf16.gmra.mrb[0].mxu0 %v1765
      %v3152 = vpop.f32.mrb[0].mxu0
      %v3153 = vadd.f32 %v2992, %v3152
      %v3154 = vpop.f32.mrb[0].mxu0
      %v3155 = vpop.f32.mrb[0].mxu0
      %v3156 = vadd.f32 %v2995, %v3155
      %v3157 = vpop.f32.mrb[0].mxu0
      %3158 = vmatprep.mubr.bf16.mxu0 0
      %3159 = vmatmul.mubr.bf16.gmra.mrb[0].mxu0 %v1774
      %v3160 = vpop.f32.mrb[0].mxu0
      %v3161 = vadd.f32 %v3000, %v3160
      %v3162 = vpop.f32.mrb[0].mxu0
      %v3163 = vpop.f32.mrb[0].mxu0
      %v3164 = vadd.f32 %v3003, %v3163
      %v3165 = vpop.f32.mrb[0].mxu0
      %3166 = vmatprep.mubr.bf16.mxu0 0
      %3167 = vmatmul.mubr.bf16.gmra.mrb[0].mxu0 %v1783
      %v3168 = vpop.f32.mrb[0].mxu0
      %v3169 = vadd.f32 %v3008, %v3168
      %v3170 = vpop.f32.mrb[0].mxu0
      %v3171 = vpop.f32.mrb[0].mxu0
      %v3172 = vadd.f32 %v3011, %v3171
      %v3173 = vpop.f32.mrb[0].mxu0
      %3174 = vmatprep.mubr.bf16.mxu0 0
      %3175 = vmatmul.mubr.bf16.gmra.mrb[0].mxu0 %v1792
      %v3176 = vpop.f32.mrb[0].mxu0
      %v3177 = vadd.f32 %v3016, %v3176
      %v3178 = vpop.f32.mrb[0].mxu0
      %v3179 = vpop.f32.mrb[0].mxu0
      %v3180 = vadd.f32 %v3019, %v3179
      %v3181 = vpop.f32.mrb[0].mxu0
      %3182 = vmatprep.mubr.bf16.mxu0 0
      %3183 = vmatmul.mubr.bf16.gmra.mrb[0].mxu0 %v1801
      %v3184 = vpop.f32.mrb[0].mxu0
      %v3185 = vadd.f32 %v3024, %v3184
      %v3186 = vpop.f32.mrb[0].mxu0
      %v3187 = vpop.f32.mrb[0].mxu0
      %v3188 = vadd.f32 %v3027, %v3187
      %v3189 = vpop.f32.mrb[0].mxu0
      %3190 = vmatprep.mubr.bf16.mxu0 0
      %3191 = vmatmul.mubr.bf16.gmra.mrb[0].mxu0 %v1810
      %v3192 = vpop.f32.mrb[0].mxu0
      %v3193 = vadd.f32 %v3032, %v3192
      %v3194 = vpop.f32.mrb[0].mxu0
      %v3195 = vpop.f32.mrb[0].mxu0
      %v3196 = vadd.f32 %v3035, %v3195
      %v3197 = vpop.f32.mrb[0].mxu0
      %3198 = vdwg.mxu0
      %v3199 = vmax.f32 %v3073, 0.0
      %v3200 = vmax.f32 %v3076, 0.0
      %v3201 = vmax.f32 %v3081, 0.0
      %v3202 = vmax.f32 %v3084, 0.0
      %v3203 = vmax.f32 %v3089, 0.0
      %v3204 = vmax.f32 %v3092, 0.0
      %v3205 = vmax.f32 %v3097, 0.0
      %v3206 = vmax.f32 %v3100, 0.0
      %v3207 = vmax.f32 %v3105, 0.0
      %v3208 = vmax.f32 %v3108, 0.0
      %v3209 = vmax.f32 %v3113, 0.0
      %v3210 = vmax.f32 %v3116, 0.0
      %v3211 = vmax.f32 %v3121, 0.0
      %v3212 = vmax.f32 %v3124, 0.0
      %v3213 = vmax.f32 %v3129, 0.0
      %v3214 = vmax.f32 %v3132, 0.0
      %v3215 = vmax.f32 %v3137, 0.0
      %v3216 = vmax.f32 %v3140, 0.0
      %v3217 = vmax.f32 %v3145, 0.0
      %v3218 = vmax.f32 %v3148, 0.0
      %v3219 = vmax.f32 %v3153, 0.0
      %v3220 = vmax.f32 %v3156, 0.0
      %v3221 = vmax.f32 %v3161, 0.0
      %v3222 = vmax.f32 %v3164, 0.0
      %v3223 = vmax.f32 %v3169, 0.0
      %v3224 = vmax.f32 %v3172, 0.0
      %v3225 = vmax.f32 %v3177, 0.0
      %v3226 = vmax.f32 %v3180, 0.0
      %v3227 = vmax.f32 %v3185, 0.0
      %v3228 = vmax.f32 %v3188, 0.0
      %v3229 = vmax.f32 %v3193, 0.0
      %v3230 = vmax.f32 %v3196, 0.0
      %v3231 = vpack.c.bf16 %v3200, %v3199
      %v3232 = vpack.c.bf16 %v3202, %v3201
      %v3233 = vpack.c.bf16 %v3204, %v3203
      %v3234 = vpack.c.bf16 %v3206, %v3205
      %v3235 = vpack.c.bf16 %v3208, %v3207
      %v3236 = vpack.c.bf16 %v3210, %v3209
      %v3237 = vpack.c.bf16 %v3212, %v3211
      %v3238 = vpack.c.bf16 %v3214, %v3213
      %v3239 = vpack.c.bf16 %v3216, %v3215
      %v3240 = vpack.c.bf16 %v3218, %v3217
      %v3241 = vpack.c.bf16 %v3220, %v3219
      %v3242 = vpack.c.bf16 %v3222, %v3221
      %v3243 = vpack.c.bf16 %v3224, %v3223
      %v3244 = vpack.c.bf16 %v3226, %v3225
      %v3245 = vpack.c.bf16 %v3228, %v3227
      %v3246 = vpack.c.bf16 %v3230, %v3229
      %v3247 = vld [vmem:[%s5] sm:$0xf]
      %v3248 = vld [vmem:[%s5 + $0x4] sm:$0xf]
      %v3249 = vld [vmem:[%s5 + $0x8] sm:$0xf]
      %v3250 = vld [vmem:[%s5 + $0xc] sm:$0xf]
      %v3251 = vld [vmem:[%s5 + $0x10] sm:$0xf]
      %v3252 = vld [vmem:[%s5 + $0x14] sm:$0xf]
      %v3253 = vld [vmem:[%s5 + $0x18] sm:$0xf]
      %v3254 = vld [vmem:[%s5 + $0x1c] sm:$0xf]
      %v3255 = vld [vmem:[%s5 + $0x20] sm:$0xf]
      %v3256 = vld [vmem:[%s5 + $0x24] sm:$0xf]
      %v3257 = vld [vmem:[%s5 + $0x28] sm:$0xf]
      %v3258 = vld [vmem:[%s5 + $0x2c] sm:$0xf]
      %v3259 = vld [vmem:[%s5 + $0x30] sm:$0xf]
      %v3260 = vld [vmem:[%s5 + $0x34] sm:$0xf]
      %v3261 = vld [vmem:[%s5 + $0x38] sm:$0xf]
      %v3262 = vld [vmem:[%s5 + $0x3c] sm:$0xf]
      %v3263 = vld [vmem:[%s6] sm:$0x1]
      %v3265 = vlaneseq
      %v3266 = vshrl.u32 %v3265, 7
      %v3267 = vsub.s32 0, %v3266
      %v3268 = vrot.slane %v3263, %v3267
      %v3286 = vunpack.c.l.b16 %v3247
      %v3287 = vunpack.c.l.b16 %v3248
      %v3288 = vunpack.c.l.b16 %v3249
      %v3289 = vunpack.c.l.b16 %v3250
      %v3290 = vunpack.c.l.b16 %v3251
      %v3291 = vunpack.c.l.b16 %v3252
      %v3292 = vunpack.c.l.b16 %v3253
      %v3293 = vunpack.c.l.b16 %v3254
      %v3294 = vunpack.c.l.b16 %v3255
      %v3295 = vunpack.c.l.b16 %v3256
      %v3296 = vunpack.c.l.b16 %v3257
      %v3297 = vunpack.c.l.b16 %v3258
      %v3298 = vunpack.c.l.b16 %v3259
      %v3299 = vunpack.c.l.b16 %v3260
      %v3300 = vunpack.c.l.b16 %v3261
      %v3301 = vunpack.c.l.b16 %v3262
      %v3302 = vpack.c.b16 %v3287, %v3286
      %v3303 = vpack.c.b16 %v3289, %v3288
      %v3304 = vpack.c.b16 %v3291, %v3290
      %v3305 = vpack.c.b16 %v3293, %v3292
      %v3306 = vpack.c.b16 %v3295, %v3294
      %v3307 = vpack.c.b16 %v3297, %v3296
      %v3308 = vpack.c.b16 %v3299, %v3298
      %v3309 = vpack.c.b16 %v3301, %v3300
      %3318 = vmatprep.subr.bf16.mxu0 0
      %3319 = vmatpush1.bf16.msra.mxu0 %v3302
      %3320 = vmatprep.subr.bf16.mxu0 0
      %3321 = vmatpush1.bf16.msra.mxu0 %v3303
      %3322 = vmatprep.subr.bf16.mxu0 0
      %3323 = vmatpush1.bf16.msra.mxu0 %v3304
      %3324 = vmatprep.subr.bf16.mxu0 0
      %3325 = vmatpush1.bf16.msra.mxu0 %v3305
      %3326 = vmatprep.subr.bf16.mxu0 0
      %3327 = vmatpush1.bf16.msra.mxu0 %v3306
      %3328 = vmatprep.subr.bf16.mxu0 0
      %3329 = vmatpush1.bf16.msra.mxu0 %v3307
      %3330 = vmatprep.subr.bf16.mxu0 0
      %3331 = vmatpush1.bf16.msra.mxu0 %v3308
      %3332 = vmatprep.subr.bf16.mxu0 0
      %3333 = vmatpush1.bf16.msra.mxu0 %v3309
      %3334 = vmatprep.subr.bf16.mxu0 0
      %3335 = vmatpush1.bf16.msra.mxu0 0
      %3336 = vmatprep.subr.bf16.mxu0 0
      %3337 = vmatpush1.bf16.msra.mxu0 0
      %3338 = vmatprep.subr.bf16.mxu0 0
      %3339 = vmatpush1.bf16.msra.mxu0 0
      %3340 = vmatprep.subr.bf16.mxu0 0
      %3341 = vmatpush1.bf16.msra.mxu0 0
      %3342 = vmatprep.subr.bf16.mxu0 0
      %3343 = vmatpush1.bf16.msra.mxu0 0
      %3344 = vmatprep.subr.bf16.mxu0 0
      %3345 = vmatpush1.bf16.msra.mxu0 0
      %3346 = vmatprep.subr.bf16.mxu0 0
      %3347 = vmatpush1.bf16.msra.mxu0 0
      %3348 = vmatprep.subr.bf16.mxu0 0
      %3349 = vmatpush1.bf16.msra.mxu0 0
      %3350 = vmatprep.mubr.bf16.mxu0 0
      %3351 = vmatmul.mubr.bf16.gmra.mrb[0].mxu0 %v3231
      %v3352 = vpop.f32.mrb[0].mxu0
      %v3353 = vadd.f32 %v3268, %v3352
      %v3354 = vpop.f32.mrb[0].mxu0
      %v3355 = vpop.f32.mrb[0].mxu0
      %v3356 = vadd.f32 %v3268, %v3355
      %v3357 = vpop.f32.mrb[0].mxu0
      %3358 = vmatprep.mubr.bf16.mxu0 0
      %3359 = vmatmul.mubr.bf16.gmra.mrb[0].mxu0 %v3232
      %v3360 = vpop.f32.mrb[0].mxu0
      %v3361 = vadd.f32 %v3268, %v3360
      %v3362 = vpop.f32.mrb[0].mxu0
      %v3363 = vpop.f32.mrb[0].mxu0
      %v3364 = vadd.f32 %v3268, %v3363
      %v3365 = vpop.f32.mrb[0].mxu0
      %3366 = vmatprep.mubr.bf16.mxu0 0
      %3367 = vmatmul.mubr.bf16.gmra.mrb[0].mxu0 %v3233
      %v3368 = vpop.f32.mrb[0].mxu0
      %v3369 = vadd.f32 %v3268, %v3368
      %v3370 = vpop.f32.mrb[0].mxu0
      %v3371 = vpop.f32.mrb[0].mxu0
      %v3372 = vadd.f32 %v3268, %v3371
      %v3373 = vpop.f32.mrb[0].mxu0
      %3374 = vmatprep.mubr.bf16.mxu0 0
      %3375 = vmatmul.mubr.bf16.gmra.mrb[0].mxu0 %v3234
      %v3376 = vpop.f32.mrb[0].mxu0
      %v3377 = vadd.f32 %v3268, %v3376
      %v3378 = vpop.f32.mrb[0].mxu0
      %v3379 = vpop.f32.mrb[0].mxu0
      %v3380 = vadd.f32 %v3268, %v3379
      %v3381 = vpop.f32.mrb[0].mxu0
      %3382 = vmatprep.mubr.bf16.mxu0 0
      %3383 = vmatmul.mubr.bf16.gmra.mrb[0].mxu0 %v3235
      %v3384 = vpop.f32.mrb[0].mxu0
      %v3385 = vadd.f32 %v3268, %v3384
      %v3386 = vpop.f32.mrb[0].mxu0
      %v3387 = vpop.f32.mrb[0].mxu0
      %v3388 = vadd.f32 %v3268, %v3387
      %v3389 = vpop.f32.mrb[0].mxu0
      %3390 = vmatprep.mubr.bf16.mxu0 0
      %3391 = vmatmul.mubr.bf16.gmra.mrb[0].mxu0 %v3236
      %v3392 = vpop.f32.mrb[0].mxu0
      %v3393 = vadd.f32 %v3268, %v3392
      %v3394 = vpop.f32.mrb[0].mxu0
      %v3395 = vpop.f32.mrb[0].mxu0
      %v3396 = vadd.f32 %v3268, %v3395
      %v3397 = vpop.f32.mrb[0].mxu0
      %3398 = vmatprep.mubr.bf16.mxu0 0
      %3399 = vmatmul.mubr.bf16.gmra.mrb[0].mxu0 %v3237
      %v3400 = vpop.f32.mrb[0].mxu0
      %v3401 = vadd.f32 %v3268, %v3400
      %v3402 = vpop.f32.mrb[0].mxu0
      %v3403 = vpop.f32.mrb[0].mxu0
      %v3404 = vadd.f32 %v3268, %v3403
      %v3405 = vpop.f32.mrb[0].mxu0
      %3406 = vmatprep.mubr.bf16.mxu0 0
      %3407 = vmatmul.mubr.bf16.gmra.mrb[0].mxu0 %v3238
      %v3408 = vpop.f32.mrb[0].mxu0
      %v3409 = vadd.f32 %v3268, %v3408
      %v3410 = vpop.f32.mrb[0].mxu0
      %v3411 = vpop.f32.mrb[0].mxu0
      %v3412 = vadd.f32 %v3268, %v3411
      %v3413 = vpop.f32.mrb[0].mxu0
      %3414 = vmatprep.mubr.bf16.mxu0 0
      %3415 = vmatmul.mubr.bf16.gmra.mrb[0].mxu0 %v3239
      %v3416 = vpop.f32.mrb[0].mxu0
      %v3417 = vadd.f32 %v3268, %v3416
      %v3418 = vpop.f32.mrb[0].mxu0
      %v3419 = vpop.f32.mrb[0].mxu0
      %v3420 = vadd.f32 %v3268, %v3419
      %v3421 = vpop.f32.mrb[0].mxu0
      %3422 = vmatprep.mubr.bf16.mxu0 0
      %3423 = vmatmul.mubr.bf16.gmra.mrb[0].mxu0 %v3240
      %v3424 = vpop.f32.mrb[0].mxu0
      %v3425 = vadd.f32 %v3268, %v3424
      %v3426 = vpop.f32.mrb[0].mxu0
      %v3427 = vpop.f32.mrb[0].mxu0
      %v3428 = vadd.f32 %v3268, %v3427
      %v3429 = vpop.f32.mrb[0].mxu0
      %3430 = vmatprep.mubr.bf16.mxu0 0
      %3431 = vmatmul.mubr.bf16.gmra.mrb[0].mxu0 %v3241
      %v3432 = vpop.f32.mrb[0].mxu0
      %v3433 = vadd.f32 %v3268, %v3432
      %v3434 = vpop.f32.mrb[0].mxu0
      %v3435 = vpop.f32.mrb[0].mxu0
      %v3436 = vadd.f32 %v3268, %v3435
      %v3437 = vpop.f32.mrb[0].mxu0
      %3438 = vmatprep.mubr.bf16.mxu0 0
      %3439 = vmatmul.mubr.bf16.gmra.mrb[0].mxu0 %v3242
      %v3440 = vpop.f32.mrb[0].mxu0
      %v3441 = vadd.f32 %v3268, %v3440
      %v3442 = vpop.f32.mrb[0].mxu0
      %v3443 = vpop.f32.mrb[0].mxu0
      %v3444 = vadd.f32 %v3268, %v3443
      %v3445 = vpop.f32.mrb[0].mxu0
      %3446 = vmatprep.mubr.bf16.mxu0 0
      %3447 = vmatmul.mubr.bf16.gmra.mrb[0].mxu0 %v3243
      %v3448 = vpop.f32.mrb[0].mxu0
      %v3449 = vadd.f32 %v3268, %v3448
      %v3450 = vpop.f32.mrb[0].mxu0
      %v3451 = vpop.f32.mrb[0].mxu0
      %v3452 = vadd.f32 %v3268, %v3451
      %v3453 = vpop.f32.mrb[0].mxu0
      %3454 = vmatprep.mubr.bf16.mxu0 0
      %3455 = vmatmul.mubr.bf16.gmra.mrb[0].mxu0 %v3244
      %v3456 = vpop.f32.mrb[0].mxu0
      %v3457 = vadd.f32 %v3268, %v3456
      %v3458 = vpop.f32.mrb[0].mxu0
      %v3459 = vpop.f32.mrb[0].mxu0
      %v3460 = vadd.f32 %v3268, %v3459
      %v3461 = vpop.f32.mrb[0].mxu0
      %3462 = vmatprep.mubr.bf16.mxu0 0
      %3463 = vmatmul.mubr.bf16.gmra.mrb[0].mxu0 %v3245
      %v3464 = vpop.f32.mrb[0].mxu0
      %v3465 = vadd.f32 %v3268, %v3464
      %v3466 = vpop.f32.mrb[0].mxu0
      %v3467 = vpop.f32.mrb[0].mxu0
      %v3468 = vadd.f32 %v3268, %v3467
      %v3469 = vpop.f32.mrb[0].mxu0
      %3470 = vmatprep.mubr.bf16.mxu0 0
      %3471 = vmatmul.mubr.bf16.gmra.mrb[0].mxu0 %v3246
      %v3472 = vpop.f32.mrb[0].mxu0
      %v3473 = vadd.f32 %v3268, %v3472
      %v3474 = vpop.f32.mrb[0].mxu0
      %v3475 = vpop.f32.mrb[0].mxu0
      %v3476 = vadd.f32 %v3268, %v3475
      %v3477 = vpop.f32.mrb[0].mxu0
      %3478 = vdwg.mxu0
      %v3479 = vunpack.c.l.bf16 %v280
      %v3480 = vunpack.c.l.bf16 %v281
      %v3481 = vunpack.c.l.bf16 %v282
      %v3482 = vunpack.c.l.bf16 %v283
      %v3483 = vunpack.c.l.bf16 %v284
      %v3484 = vunpack.c.l.bf16 %v285
      %v3485 = vunpack.c.l.bf16 %v286
      %v3486 = vunpack.c.l.bf16 %v287
      %v3487 = vunpack.c.l.bf16 %v288
      %v3488 = vunpack.c.l.bf16 %v289
      %v3489 = vunpack.c.l.bf16 %v290
      %v3490 = vunpack.c.l.bf16 %v291
      %v3491 = vunpack.c.l.bf16 %v292
      %v3492 = vunpack.c.l.bf16 %v293
      %v3493 = vunpack.c.l.bf16 %v294
      %v3494 = vunpack.c.l.bf16 %v295
      %v3495 = vunpack.c.l.bf16 %v296
      %v3496 = vunpack.c.l.bf16 %v297
      %v3497 = vunpack.c.l.bf16 %v298
      %v3498 = vunpack.c.l.bf16 %v299
      %v3499 = vunpack.c.l.bf16 %v300
      %v3500 = vunpack.c.l.bf16 %v301
      %v3501 = vunpack.c.l.bf16 %v302
      %v3502 = vunpack.c.l.bf16 %v303
      %v3503 = vunpack.c.l.bf16 %v304
      %v3504 = vunpack.c.l.bf16 %v305
      %v3505 = vunpack.c.l.bf16 %v306
      %v3506 = vunpack.c.l.bf16 %v307
      %v3507 = vunpack.c.l.bf16 %v308
      %v3508 = vunpack.c.l.bf16 %v309
      %v3509 = vunpack.c.l.bf16 %v310
      %v3510 = vunpack.c.l.bf16 %v311
      %v3511 = vadd.f32 %v3353, %v3479
      %v3512 = vadd.f32 %v3356, %v3480
      %v3513 = vadd.f32 %v3361, %v3481
      %v3514 = vadd.f32 %v3364, %v3482
      %v3515 = vadd.f32 %v3369, %v3483
      %v3516 = vadd.f32 %v3372, %v3484
      %v3517 = vadd.f32 %v3377, %v3485
      %v3518 = vadd.f32 %v3380, %v3486
      %v3519 = vadd.f32 %v3385, %v3487
      %v3520 = vadd.f32 %v3388, %v3488
      %v3521 = vadd.f32 %v3393, %v3489
      %v3522 = vadd.f32 %v3396, %v3490
      %v3523 = vadd.f32 %v3401, %v3491
      %v3524 = vadd.f32 %v3404, %v3492
      %v3525 = vadd.f32 %v3409, %v3493
      %v3526 = vadd.f32 %v3412, %v3494
      %v3527 = vadd.f32 %v3417, %v3495
      %v3528 = vadd.f32 %v3420, %v3496
      %v3529 = vadd.f32 %v3425, %v3497
      %v3530 = vadd.f32 %v3428, %v3498
      %v3531 = vadd.f32 %v3433, %v3499
      %v3532 = vadd.f32 %v3436, %v3500
      %v3533 = vadd.f32 %v3441, %v3501
      %v3534 = vadd.f32 %v3444, %v3502
      %v3535 = vadd.f32 %v3449, %v3503
      %v3536 = vadd.f32 %v3452, %v3504
      %v3537 = vadd.f32 %v3457, %v3505
      %v3538 = vadd.f32 %v3460, %v3506
      %v3539 = vadd.f32 %v3465, %v3507
      %v3540 = vadd.f32 %v3468, %v3508
      %v3541 = vadd.f32 %v3473, %v3509
      %v3542 = vadd.f32 %v3476, %v3510
      %v3543 = vmax.f32 %v3511, 0.0
      %v3544 = vmax.f32 %v3512, 0.0
      %v3545 = vmax.f32 %v3513, 0.0
      %v3546 = vmax.f32 %v3514, 0.0
      %v3547 = vmax.f32 %v3515, 0.0
      %v3548 = vmax.f32 %v3516, 0.0
      %v3549 = vmax.f32 %v3517, 0.0
      %v3550 = vmax.f32 %v3518, 0.0
      %v3551 = vmax.f32 %v3519, 0.0
      %v3552 = vmax.f32 %v3520, 0.0
      %v3553 = vmax.f32 %v3521, 0.0
      %v3554 = vmax.f32 %v3522, 0.0
      %v3555 = vmax.f32 %v3523, 0.0
      %v3556 = vmax.f32 %v3524, 0.0
      %v3557 = vmax.f32 %v3525, 0.0
      %v3558 = vmax.f32 %v3526, 0.0
      %v3559 = vmax.f32 %v3527, 0.0
      %v3560 = vmax.f32 %v3528, 0.0
      %v3561 = vmax.f32 %v3529, 0.0
      %v3562 = vmax.f32 %v3530, 0.0
      %v3563 = vmax.f32 %v3531, 0.0
      %v3564 = vmax.f32 %v3532, 0.0
      %v3565 = vmax.f32 %v3533, 0.0
      %v3566 = vmax.f32 %v3534, 0.0
      %v3567 = vmax.f32 %v3535, 0.0
      %v3568 = vmax.f32 %v3536, 0.0
      %v3569 = vmax.f32 %v3537, 0.0
      %v3570 = vmax.f32 %v3538, 0.0
      %v3571 = vmax.f32 %v3539, 0.0
      %v3572 = vmax.f32 %v3540, 0.0
      %v3573 = vmax.f32 %v3541, 0.0
      %v3574 = vmax.f32 %v3542, 0.0
      %v3575 = vpack.c.bf16 %v3544, %v3543
      %v3576 = vpack.c.bf16 %v3546, %v3545
      %v3577 = vpack.c.bf16 %v3548, %v3547
      %v3578 = vpack.c.bf16 %v3550, %v3549
      %v3579 = vpack.c.bf16 %v3552, %v3551
      %v3580 = vpack.c.bf16 %v3554, %v3553
      %v3581 = vpack.c.bf16 %v3556, %v3555
      %v3582 = vpack.c.bf16 %v3558, %v3557
      %v3583 = vpack.c.bf16 %v3560, %v3559
      %v3584 = vpack.c.bf16 %v3562, %v3561
      %v3585 = vpack.c.bf16 %v3564, %v3563
      %v3586 = vpack.c.bf16 %v3566, %v3565
      %v3587 = vpack.c.bf16 %v3568, %v3567
      %v3588 = vpack.c.bf16 %v3570, %v3569
      %v3589 = vpack.c.bf16 %v3572, %v3571
      %v3590 = vpack.c.bf16 %v3574, %v3573
      %v3607 = vunpack.c.l.b16 %v3575
      %v3608 = vunpack.c.h.b16 %v3575
      %v3609 = vunpack.c.l.b16 %v3576
      %v3610 = vunpack.c.h.b16 %v3576
      %v3611 = vunpack.c.l.b16 %v3577
      %v3612 = vunpack.c.h.b16 %v3577
      %v3613 = vunpack.c.l.b16 %v3578
      %v3614 = vunpack.c.h.b16 %v3578
      %v3615 = vunpack.c.l.b16 %v3579
      %v3616 = vunpack.c.h.b16 %v3579
      %v3617 = vunpack.c.l.b16 %v3580
      %v3618 = vunpack.c.h.b16 %v3580
      %v3619 = vunpack.c.l.b16 %v3581
      %v3620 = vunpack.c.h.b16 %v3581
      %v3621 = vunpack.c.l.b16 %v3582
      %v3622 = vunpack.c.h.b16 %v3582
      %v3623 = vunpack.c.l.b16 %v3583
      %v3624 = vunpack.c.h.b16 %v3583
      %v3625 = vunpack.c.l.b16 %v3584
      %v3626 = vunpack.c.h.b16 %v3584
      %v3627 = vunpack.c.l.b16 %v3585
      %v3628 = vunpack.c.h.b16 %v3585
      %v3629 = vunpack.c.l.b16 %v3586
      %v3630 = vunpack.c.h.b16 %v3586
      %v3631 = vunpack.c.l.b16 %v3587
      %v3632 = vunpack.c.h.b16 %v3587
      %v3633 = vunpack.c.l.b16 %v3588
      %v3634 = vunpack.c.h.b16 %v3588
      %v3635 = vunpack.c.l.b16 %v3589
      %v3636 = vunpack.c.h.b16 %v3589
      %v3637 = vunpack.c.l.b16 %v3590
      %v3638 = vunpack.c.h.b16 %v3590
      %v3639 = vpack.c.b16 %v3607, %v3607
      %v3640 = vpack.c.b16 %v3608, %v3608
      %v3641 = vpack.c.b16 %v3609, %v3609
      %v3642 = vpack.c.b16 %v3610, %v3610
      %v3643 = vpack.c.b16 %v3611, %v3611
      %v3644 = vpack.c.b16 %v3612, %v3612
      %v3645 = vpack.c.b16 %v3613, %v3613
      %v3646 = vpack.c.b16 %v3614, %v3614
      %v3647 = vpack.c.b16 %v3615, %v3615
      %v3648 = vpack.c.b16 %v3616, %v3616
      %v3649 = vpack.c.b16 %v3617, %v3617
      %v3650 = vpack.c.b16 %v3618, %v3618
      %v3651 = vpack.c.b16 %v3619, %v3619
      %v3652 = vpack.c.b16 %v3620, %v3620
      %v3653 = vpack.c.b16 %v3621, %v3621
      %v3654 = vpack.c.b16 %v3622, %v3622
      %v3655 = vpack.c.b16 %v3623, %v3623
      %v3656 = vpack.c.b16 %v3624, %v3624
      %v3657 = vpack.c.b16 %v3625, %v3625
      %v3658 = vpack.c.b16 %v3626, %v3626
      %v3659 = vpack.c.b16 %v3627, %v3627
      %v3660 = vpack.c.b16 %v3628, %v3628
      %v3661 = vpack.c.b16 %v3629, %v3629
      %v3662 = vpack.c.b16 %v3630, %v3630
      %v3663 = vpack.c.b16 %v3631, %v3631
      %v3664 = vpack.c.b16 %v3632, %v3632
      %v3665 = vpack.c.b16 %v3633, %v3633
      %v3666 = vpack.c.b16 %v3634, %v3634
      %v3667 = vpack.c.b16 %v3635, %v3635
      %v3668 = vpack.c.b16 %v3636, %v3636
      %v3669 = vpack.c.b16 %v3637, %v3637
      %v3670 = vpack.c.b16 %v3638, %v3638
      %3703 = vst [vmem:[%s278] sm:$0xf] %v3639
      %3704 = vst [vmem:[%s278 + $0x4] sm:$0xf] %v3640
      %3705 = vst [vmem:[%s278 + $0x8] sm:$0xf] %v3641
      %3706 = vst [vmem:[%s278 + $0xc] sm:$0xf] %v3642
      %3707 = vst [vmem:[%s278 + $0x10] sm:$0xf] %v3643
      %3708 = vst [vmem:[%s278 + $0x14] sm:$0xf] %v3644
      %3709 = vst [vmem:[%s278 + $0x18] sm:$0xf] %v3645
      %3710 = vst [vmem:[%s278 + $0x1c] sm:$0xf] %v3646
      %3711 = vst [vmem:[%s278 + $0x20] sm:$0xf] %v3647
      %3712 = vst [vmem:[%s278 + $0x24] sm:$0xf] %v3648
      %3713 = vst [vmem:[%s278 + $0x28] sm:$0xf] %v3649
      %3714 = vst [vmem:[%s278 + $0x2c] sm:$0xf] %v3650
      %3715 = vst [vmem:[%s278 + $0x30] sm:$0xf] %v3651
      %3716 = vst [vmem:[%s278 + $0x34] sm:$0xf] %v3652
      %3717 = vst [vmem:[%s278 + $0x38] sm:$0xf] %v3653
      %3718 = vst [vmem:[%s278 + $0x3c] sm:$0xf] %v3654
      %3719 = vst [vmem:[%s278 + $0x40] sm:$0xf] %v3655
      %3720 = vst [vmem:[%s278 + $0x44] sm:$0xf] %v3656
      %3721 = vst [vmem:[%s278 + $0x48] sm:$0xf] %v3657
      %3722 = vst [vmem:[%s278 + $0x4c] sm:$0xf] %v3658
      %3723 = vst [vmem:[%s278 + $0x50] sm:$0xf] %v3659
      %3724 = vst [vmem:[%s278 + $0x54] sm:$0xf] %v3660
      %3725 = vst [vmem:[%s278 + $0x58] sm:$0xf] %v3661
      %3726 = vst [vmem:[%s278 + $0x5c] sm:$0xf] %v3662
      %3727 = vst [vmem:[%s278 + $0x60] sm:$0xf] %v3663
      %3728 = vst [vmem:[%s278 + $0x64] sm:$0xf] %v3664
      %3729 = vst [vmem:[%s278 + $0x68] sm:$0xf] %v3665
      %3730 = vst [vmem:[%s278 + $0x6c] sm:$0xf] %v3666
      %3731 = vst [vmem:[%s278 + $0x70] sm:$0xf] %v3667
      %3732 = vst [vmem:[%s278 + $0x74] sm:$0xf] %v3668
      %3733 = vst [vmem:[%s278 + $0x78] sm:$0xf] %v3669
      %3734 = vst [vmem:[%s278 + $0x7c] sm:$0xf] %v3670
      %p3735 = scmp.lt.s32.totalorder %s18, 1
      %s3736 = scalar_select %p3735, %s18, 1
      %s3737 = smul.addr %s3736, 32
      %s3738 = smul.addr %s3737, 4
      %s3739 = scalar_lea.vmem %s7, %s3738
      // Predicated region
      $region49: #{bottleneck_pallas_nchw.1} parent=47 // pred_check
        %p3740 = pneg %p188
      $region50: #{bottleneck_pallas_nchw.1} parent=47 // pred_check_branch
        %3742 = sbr.rel (%p3740) target = $region52
      $region51: #{bottleneck_pallas_nchw.1} parent=47 // pred_region
        _
      $region52: #{bottleneck_pallas_nchw.1} parent=47 // pred_fallthru
        _
    $region48: #{bottleneck_pallas_nchw.1} parent=5 // pred_fallthru
      _
    %p3743 = scmp.le.s32.totalorder 2, %s13
    // Predicated region
    $region53: #{bottleneck_pallas_nchw.1} parent=5 // pred_check
      %p3744 = pneg %p3743
    $region54: #{bottleneck_pallas_nchw.1} parent=5 // pred_check_branch
      %3746 = sbr.rel (%p3744) target = $region56
    $region55: #{bottleneck_pallas_nchw.1} parent=5 // pred_region
      %s3747 = ssub.s32 %s13, 2
      // Predicated region
      $region57: #{bottleneck_pallas_nchw.1} parent=55 // pred_check
        %p3748 = pneg %p194
      $region58: #{bottleneck_pallas_nchw.1} parent=55 // pred_check_branch
        %3750 = sbr.rel (%p3748) target = $region60
      $region59: #{bottleneck_pallas_nchw.1} parent=55 // pred_region
        %p3751 = scmp.lt.s32.totalorder %s19, 1
        %s3752 = scalar_select %p3751, %s19, 1
        %s3753 = smul.addr %s3752, 32
        %s3754 = smul.addr %s3753, 4
        %s3755 = scalar_lea.vmem %s7, %s3754
      $region60: #{bottleneck_pallas_nchw.1} parent=55 // pred_fallthru
        _
    $region56: #{bottleneck_pallas_nchw.1} parent=5 // pred_fallthru
      _
  $region6: #{bottleneck_pallas_nchw.1} parent=0 // loop_footer
    %s17 = sadd.s32 1, %s13
  $region7: #{bottleneck_pallas_nchw.1} parent=0 // loop_footer_branch
    %12 = sbr.rel target = $region3
  $region8: #{bottleneck_pallas_nchw.1} parent=0 // loop_exit
    _

</llo_original>
